<compile_context>
chip_gen: v7x
topology: tpu7x:2x2x1
jax: 0.10.0
libtpu: 0.0.40
codegen_flags: <defaults>
</compile_context>

<pallas_src>
import functools

import jax
import jax.numpy as jnp
import numpy as np
from jax import lax
from jax.experimental import pallas as pl
from jax.experimental.pallas import tpu as pltpu


def _round_up(n, m):
    return ((n + m - 1) // m) * m


def _make_gru_kernel(T, Bt, D, Hp, L, Op, compute_dtype, unroll):
    """Kernel body for fixed (static) sizes. Hp = per-gate lane-padded width."""
    G = 3 * Hp

    def kernel(*refs):
        # in_refs : x_t (T, Bt, D), then per layer (w_ih, w_hh, bias_i, b_hn),
        #           then fc_w (Hp, Op), fc_b (1, Op)
        # out_refs: out (Bt, Op)
        # scratch : gi (T, Bt, 3Hp) f32, seq (T, Bt, Hp) f32
        x_ref = refs[0]
        idx = 1
        layers = []
        for _ in range(L):
            layers.append(refs[idx:idx + 4])
            idx += 4
        fc_w_ref = refs[idx]
        fc_b_ref = refs[idx + 1]
        out_ref = refs[idx + 2]
        gi_ref = refs[idx + 3]
        seq_ref = refs[idx + 4]

        h = jnp.zeros((Bt, Hp), jnp.float32)
        for l in range(L):
            w_ih_ref, w_hh_ref, bias_i_ref, b_hn_ref = layers[l]

            # ---- hoisted input-to-hidden matmul: ONE (T*Bt, D_l)@(D_l, 3Hp) ----
            if l == 0:
                inp = x_ref[...].reshape(T * Bt, D).astype(compute_dtype)
            else:
                inp = seq_ref[...].reshape(T * Bt, Hp).astype(compute_dtype)
            gi_all = jnp.dot(inp, w_ih_ref[...],
                             preferred_element_type=jnp.float32)
            gi_all = gi_all + bias_i_ref[...]        # fused b_ih(+b_hh for r,z)
            gi_ref[...] = gi_all.reshape(T, Bt, G)

            w_hh = w_hh_ref[...]                                  # (Hp, 3Hp)
            b_hn = jnp.broadcast_to(b_hn_ref[...], (Bt, Hp))      # hoisted bcast
            write_seq = (l < L - 1)                               # skip dead store

            def step(t, h_prev):
                gi = gi_ref[t]                                    # (Bt, 3Hp) f32
                gh = jnp.dot(h_prev.astype(compute_dtype), w_hh,
                             preferred_element_type=jnp.float32)  # (Bt, 3Hp)
                r = jax.nn.sigmoid(gi[:, 0:Hp] + gh[:, 0:Hp])
                z = jax.nn.sigmoid(gi[:, Hp:2 * Hp] + gh[:, Hp:2 * Hp])
                n = jnp.tanh(gi[:, 2 * Hp:3 * Hp]
                             + r * (gh[:, 2 * Hp:3 * Hp] + b_hn))
                h_new = n + z * (h_prev - n)
                if write_seq:
                    seq_ref[t] = h_new
                return h_new

            h = lax.fori_loop(0, T, step, jnp.zeros((Bt, Hp), jnp.float32),
                              unroll=unroll)

        # out = fc(out[:, -1, :]); out[:, -1, :] == h of the last layer
        logits = jnp.dot(h.astype(compute_dtype), fc_w_ref[...],
                         preferred_element_type=jnp.float32) + fc_b_ref[...]
        out_ref[...] = logits.astype(out_ref.dtype)

    return kernel


def _pack_gate_cols(w_t, H, Hp):
    """(D_in, 3H) -> (D_in, 3*Hp): each gate's H cols at the start of a 128 slab."""
    d_in = w_t.shape[0]
    w3 = w_t.reshape(d_in, 3, H)
    out = jnp.zeros((d_in, 3, Hp), w_t.dtype).at[:, :, :H].set(w3)
    return out.reshape(d_in, 3 * Hp)


def _pad_rows(w, rows_p):
    out = jnp.zeros((rows_p, w.shape[1]), w.dtype).at[:w.shape[0], :].set(w)
    return out


def gru_model_forward(x, params, *, hidden_dim, layer_dim, output_dim,
                      compute_dtype=jnp.bfloat16, batch_tile=8):
    """Pallas implementation of GRUModel.forward.

    x: (B, T, D) float32.
    params: PyTorch-shaped tensors:
        w_ih_l{k}: (3H, D_k), w_hh_l{k}: (3H, H), b_ih_l{k}: (3H,), b_hh_l{k}: (3H,)
        fc_w: (O, H), fc_b: (O,)
    """
    B, T, D = x.shape
    H, L, O = hidden_dim, layer_dim, output_dim
    Hp = _round_up(H, 128)          # lane-aligned per-gate slab
    Op = _round_up(O, 128)          # lane-dense output
    Bt = max(8, _round_up(batch_tile, 8))
    Bpad = _round_up(max(B, Bt), Bt)
    cdt = compute_dtype

    # ---- pack / pad parameters (wrapper-side, once) ----
    flat = []
    for l in range(L):
        w_ih = params[f"w_ih_l{l}"]           # (3H, D_l)
        w_hh = params[f"w_hh_l{l}"]           # (3H, H)
        b_ih = params[f"b_ih_l{l}"]
        b_hh = params[f"b_hh_l{l}"]
        d_in_p = D if l == 0 else Hp
        w_ih_p = _pad_rows(_pack_gate_cols(jnp.transpose(w_ih), H, Hp), d_in_p)
        w_hh_p = _pad_rows(_pack_gate_cols(jnp.transpose(w_hh), H, Hp), Hp)
        bi3 = b_ih.reshape(3, H)
        bh3 = b_hh.reshape(3, H)
        fused = jnp.stack([bi3[0] + bh3[0], bi3[1] + bh3[1], bi3[2]], axis=0)
        bias_i = (jnp.zeros((3, Hp), jnp.float32).at[:, :H].set(fused)
                  .reshape(1, 3 * Hp))
        b_hn = jnp.zeros((1, Hp), jnp.float32).at[0, :H].set(bh3[2])
        flat += [w_ih_p.astype(cdt), w_hh_p.astype(cdt), bias_i, b_hn]

    fc_w_p = (jnp.zeros((Hp, Op), jnp.float32)
              .at[:H, :O].set(jnp.transpose(params["fc_w"]))).astype(cdt)
    fc_b_p = jnp.zeros((1, Op), jnp.float32).at[0, :O].set(params["fc_b"])
    flat += [fc_w_p, fc_b_p]

    # ---- batch-pad + time-major input: (T, Bpad, D) ----
    x_p = jnp.zeros((Bpad, T, D), jnp.float32).at[:B].set(x.astype(jnp.float32))
    x_t = jnp.transpose(x_p, (1, 0, 2))

    # ---- specs ----
    in_specs = [pl.BlockSpec((T, Bt, D), lambda i: (0, i, 0))]
    for l in range(L):
        d_in_p = D if l == 0 else Hp
        in_specs += [
            pl.BlockSpec((d_in_p, 3 * Hp), lambda i: (0, 0)),
            pl.BlockSpec((Hp, 3 * Hp), lambda i: (0, 0)),
            pl.BlockSpec((1, 3 * Hp), lambda i: (0, 0)),
            pl.BlockSpec((1, Hp), lambda i: (0, 0)),
        ]
    in_specs += [pl.BlockSpec((Hp, Op), lambda i: (0, 0)),
                 pl.BlockSpec((1, Op), lambda i: (0, 0))]
    out_specs = pl.BlockSpec((Bt, Op), lambda i: (i, 0))

    scratch_shapes = [pltpu.VMEM((T, Bt, 3 * Hp), jnp.float32),
                      pltpu.VMEM((T, Bt, Hp), jnp.float32)]

    # ---- explicit VMEM budget (safe on v7x's 64 MiB) ----
    est = T * Bt * D * 4 * 2 + Bt * Op * 4 * 2
    for a in flat:
        est += int(np.prod(a.shape)) * jnp.dtype(a.dtype).itemsize * 2
    est += T * Bt * 3 * Hp * 4 + T * Bt * Hp * 4
    vmem_limit = int(min(64 * 2 ** 20, max(2 * est, 16 * 2 ** 20)))

    unroll = True if T <= 16 else 8
    kernel = _make_gru_kernel(T, Bt, D, Hp, L, Op, cdt, unroll)

    out = pl.pallas_call(
        kernel,
        out_shape=jax.ShapeDtypeStruct((Bpad, Op), jnp.float32),
        grid_spec=pltpu.PrefetchScalarGridSpec(
            num_scalar_prefetch=0,
            grid=(Bpad // Bt,),
            in_specs=in_specs,
            out_specs=out_specs,
            scratch_shapes=scratch_shapes),
        compiler_params=pltpu.CompilerParams(
            dimension_semantics=("parallel",),
            vmem_limit_bytes=vmem_limit),
    )(x_t, *flat)

    return out[:B, :O].astype(x.dtype)


def gru_model_reference(x, params, *, hidden_dim, layer_dim, output_dim):
    """Pure-JAX reference matching torch.nn.GRU semantics (gate order r, z, n)."""
    B, T, D = x.shape
    H, L = hidden_dim, layer_dim
    seq = x.astype(jnp.float32)
    for l in range(L):
        w_ih = params[f"w_ih_l{l}"]
        w_hh = params[f"w_hh_l{l}"]
        b_ih = params[f"b_ih_l{l}"]
        b_hh = params[f"b_hh_l{l}"]
        h = jnp.zeros((B, H), jnp.float32)
        outs = []
        for t in range(T):
            xt = seq[:, t, :]
            gi = xt @ w_ih.T + b_ih
            gh = h @ w_hh.T + b_hh
            r = jax.nn.sigmoid(gi[:, :H] + gh[:, :H])
            z = jax.nn.sigmoid(gi[:, H:2 * H] + gh[:, H:2 * H])
            n = jnp.tanh(gi[:, 2 * H:] + r * gh[:, 2 * H:])
            h = (1.0 - z) * n + z * h
            outs.append(h)
        seq = jnp.stack(outs, axis=1)
    return seq[:, -1, :] @ params["fc_w"].T + params["fc_b"]


def init_params(key, input_dim, hidden_dim, layer_dim, output_dim):
    """Deterministic init mimicking PyTorch's uniform(-1/sqrt(H), 1/sqrt(H))."""
    H = hidden_dim
    std = 1.0 / np.sqrt(H)
    params = {}
    for l in range(layer_dim):
        d_in = input_dim if l == 0 else hidden_dim
        key, k1, k2, k3, k4 = jax.random.split(key, 5)
        params[f"w_ih_l{l}"] = jax.random.uniform(k1, (3 * H, d_in), jnp.float32, -std, std)
        params[f"w_hh_l{l}"] = jax.random.uniform(k2, (3 * H, H), jnp.float32, -std, std)
        params[f"b_ih_l{l}"] = jax.random.uniform(k3, (3 * H,), jnp.float32, -std, std)
        params[f"b_hh_l{l}"] = jax.random.uniform(k4, (3 * H,), jnp.float32, -std, std)
    key, k5, k6 = jax.random.split(key, 3)
    params["fc_w"] = jax.random.uniform(k5, (output_dim, H), jnp.float32, -std, std)
    params["fc_b"] = jax.random.uniform(k6, (output_dim,), jnp.float32, -std, std)
    return params


if __name__ == "__main__":
    B, T = 2, 8            # batch, sequence length
    INPUT_DIM = 16
    HIDDEN_DIM = 32
    LAYER_DIM = 2
    OUTPUT_DIM = 4

    key = jax.random.PRNGKey(0)
    key, kx = jax.random.split(key)
    x = jax.random.normal(kx, (B, T, INPUT_DIM), jnp.float32)
    params = init_params(key, INPUT_DIM, HIDDEN_DIM, LAYER_DIM, OUTPUT_DIM)

    ref = gru_model_reference(x, params, hidden_dim=HIDDEN_DIM,
                              layer_dim=LAYER_DIM, output_dim=OUTPUT_DIM)

    # f32 matmul operands: tight parity with the PyTorch f32 GRU semantics.
    fwd_f32 = jax.jit(functools.partial(
        gru_model_forward, hidden_dim=HIDDEN_DIM, layer_dim=LAYER_DIM,
        output_dim=OUTPUT_DIM, compute_dtype=jnp.float32))
    out_f32 = jax.block_until_ready(fwd_f32(x, params))
    np.testing.assert_allclose(np.asarray(out_f32), np.asarray(ref),
                               rtol=1e-4, atol=1e-4)

    # bf16 matmul operands (f32 MXU accumulation, f32 gate math): fast path.
    fwd_bf16 = jax.jit(functools.partial(
        gru_model_forward, hidden_dim=HIDDEN_DIM, layer_dim=LAYER_DIM,
        output_dim=OUTPUT_DIM, compute_dtype=jnp.bfloat16))
    out_bf16 = jax.block_until_ready(fwd_bf16(x, params))
    np.testing.assert_allclose(np.asarray(out_bf16), np.asarray(ref),
                               rtol=5e-2, atol=5e-2)

    print("KERNEL_OK")
</pallas_src>

<mosaic_0001>
module attributes {stable_mosaic.version = 11 : i64} {
  func.func @kernel(%arg0: i32, %arg1: memref<8x8x16xf32, #tpu.memory_space<vmem>>, %arg2: memref<16x384xf32, #tpu.memory_space<vmem>>, %arg3: memref<128x384xf32, #tpu.memory_space<vmem>>, %arg4: memref<1x384xf32, #tpu.memory_space<vmem>>, %arg5: memref<1x128xf32, #tpu.memory_space<vmem>>, %arg6: memref<128x384xf32, #tpu.memory_space<vmem>>, %arg7: memref<128x384xf32, #tpu.memory_space<vmem>>, %arg8: memref<1x384xf32, #tpu.memory_space<vmem>>, %arg9: memref<1x128xf32, #tpu.memory_space<vmem>>, %arg10: memref<128x128xf32, #tpu.memory_space<vmem>>, %arg11: memref<1x128xf32, #tpu.memory_space<vmem>>, %arg12: memref<8x128xf32, #tpu.memory_space<vmem>>, %arg13: memref<8x8x384xf32, #tpu.memory_space<vmem>>, %arg14: memref<8x8x128xf32, #tpu.memory_space<vmem>>) attributes {dimension_semantics = [#tpu.dimension_semantics<parallel>], iteration_bounds = array<i64: 1>, scalar_prefetch = 0 : i64, scratch_operands = 2 : i64, tpu.core_type = #tpu.core_type<tc>, window_params = [{transform_indices = @transform_0, window_bounds = array<i64: 8, 8, 16>}, {pipeline_mode = #tpu.pipeline_mode<synchronous>, transform_indices = @transform_1, window_bounds = array<i64: 16, 384>}, {pipeline_mode = #tpu.pipeline_mode<synchronous>, transform_indices = @transform_2, window_bounds = array<i64: 128, 384>}, {pipeline_mode = #tpu.pipeline_mode<synchronous>, transform_indices = @transform_3, window_bounds = array<i64: 1, 384>}, {pipeline_mode = #tpu.pipeline_mode<synchronous>, transform_indices = @transform_4, window_bounds = array<i64: 1, 128>}, {pipeline_mode = #tpu.pipeline_mode<synchronous>, transform_indices = @transform_5, window_bounds = array<i64: 128, 384>}, {pipeline_mode = #tpu.pipeline_mode<synchronous>, transform_indices = @transform_6, window_bounds = array<i64: 128, 384>}, {pipeline_mode = #tpu.pipeline_mode<synchronous>, transform_indices = @transform_7, window_bounds = array<i64: 1, 384>}, {pipeline_mode = #tpu.pipeline_mode<synchronous>, transform_indices = @transform_8, window_bounds = array<i64: 1, 128>}, {pipeline_mode = #tpu.pipeline_mode<synchronous>, transform_indices = @transform_9, window_bounds = array<i64: 128, 128>}, {pipeline_mode = #tpu.pipeline_mode<synchronous>, transform_indices = @transform_10, window_bounds = array<i64: 1, 128>}, {transform_indices = @transform_11, window_bounds = array<i64: 8, 128>}]} {
    %c0 = arith.constant 0 : index
    %c0_0 = arith.constant 0 : index
    %c0_1 = arith.constant 0 : index
    %0 = vector.load %arg1[%c0, %c0_0, %c0_1] : memref<8x8x16xf32, #tpu.memory_space<vmem>>, vector<8x8x16xf32>
    %1 = vector.shape_cast %0 : vector<8x8x16xf32> to vector<64x16xf32>
    %c0_2 = arith.constant 0 : index
    %c0_3 = arith.constant 0 : index
    %2 = vector.load %arg2[%c0_2, %c0_3] : memref<16x384xf32, #tpu.memory_space<vmem>>, vector<16x384xf32>
    %cst = arith.constant dense<0.000000e+00> : vector<64x384xf32>
    %3 = tpu.matmul %1, %2, %cst {dimension_numbers = #tpu.dot_dimension_numbers<[1], [0], [0], [1], [0, 0, 1, 1], [], []>} : vector<64x16xf32>, vector<16x384xf32>, vector<64x384xf32> -> vector<64x384xf32>
    %c0_4 = arith.constant 0 : index
    %c0_5 = arith.constant 0 : index
    %4 = vector.load %arg4[%c0_4, %c0_5] : memref<1x384xf32, #tpu.memory_space<vmem>>, vector<1x384xf32>
    %5 = vector.broadcast %4 : vector<1x384xf32> to vector<64x384xf32>
    %6 = arith.addf %3, %5 : vector<64x384xf32>
    %7 = vector.shape_cast %6 : vector<64x384xf32> to vector<8x8x384xf32>
    %c0_6 = arith.constant 0 : index
    %c0_7 = arith.constant 0 : index
    %c0_8 = arith.constant 0 : index
    %8 = vector.load %arg13[%c0_6, %c0_7, %c0_8] : memref<8x8x384xf32, #tpu.memory_space<vmem>>, vector<8x8x384xf32>
    tpu.vector_store %arg13[%c0_6, %c0_7, %c0_8], %7 {strides = array<i32>} : memref<8x8x384xf32, #tpu.memory_space<vmem>>, vector<8x8x384xf32>,
    %c0_9 = arith.constant 0 : index
    %c0_10 = arith.constant 0 : index
    %9 = vector.load %arg3[%c0_9, %c0_10] : memref<128x384xf32, #tpu.memory_space<vmem>>, vector<128x384xf32>
    %c0_11 = arith.constant 0 : index
    %c0_12 = arith.constant 0 : index
    %10 = vector.load %arg5[%c0_11, %c0_12] : memref<1x128xf32, #tpu.memory_space<vmem>>, vector<1x128xf32>
    %11 = vector.shape_cast %10 : vector<1x128xf32> to vector<1x128xf32>
    %12 = vector.broadcast %11 : vector<1x128xf32> to vector<8x128xf32>
    %cst_13 = arith.constant 0.000000e+00 : f32
    %13 = vector.broadcast %cst_13 : f32 to vector<8x128xf32>
    %c0_i32 = arith.constant 0 : i32
    %14 = arith.index_cast %c0_i32 : i32 to index
    %c0_14 = arith.constant 0 : index
    %c0_15 = arith.constant 0 : index
    %15 = vector.load %arg13[%14, %c0_14, %c0_15] : memref<8x8x384xf32, #tpu.memory_space<vmem>>, vector<1x8x384xf32>
    %16 = vector.shape_cast %15 : vector<1x8x384xf32> to vector<8x384xf32>
    %cst_16 = arith.constant dense<0.000000e+00> : vector<8x384xf32>
    %17 = tpu.matmul %13, %9, %cst_16 {dimension_numbers = #tpu.dot_dimension_numbers<[1], [0], [0], [1], [0, 0, 1, 1], [], []>} : vector<8x128xf32>, vector<128x384xf32>, vector<8x384xf32> -> vector<8x384xf32>
    %18 = vector.extract_strided_slice %16 {offsets = [0, 0], sizes = [8, 128], strides = [1, 1]} : vector<8x384xf32> to vector<8x128xf32>
    %19 = vector.extract_strided_slice %17 {offsets = [0, 0], sizes = [8, 128], strides = [1, 1]} : vector<8x384xf32> to vector<8x128xf32>
    %20 = arith.addf %18, %19 : vector<8x128xf32>
    %21 = arith.negf %20 : vector<8x128xf32>
    %22 = math.exp %21 : vector<8x128xf32>
    %cst_17 = arith.constant 1.000000e+00 : f32
    %23 = vector.broadcast %cst_17 : f32 to vector<8x128xf32>
    %24 = arith.addf %23, %22 : vector<8x128xf32>
    %25 = arith.divf %23, %24 : vector<8x128xf32>
    %26 = vector.extract_strided_slice %16 {offsets = [0, 128], sizes = [8, 128], strides = [1, 1]} : vector<8x384xf32> to vector<8x128xf32>
    %27 = vector.extract_strided_slice %17 {offsets = [0, 128], sizes = [8, 128], strides = [1, 1]} : vector<8x384xf32> to vector<8x128xf32>
    %28 = arith.addf %26, %27 : vector<8x128xf32>
    %29 = arith.negf %28 : vector<8x128xf32>
    %30 = math.exp %29 : vector<8x128xf32>
    %cst_18 = arith.constant 1.000000e+00 : f32
    %31 = vector.broadcast %cst_18 : f32 to vector<8x128xf32>
    %32 = arith.addf %31, %30 : vector<8x128xf32>
    %33 = arith.divf %31, %32 : vector<8x128xf32>
    %34 = vector.extract_strided_slice %16 {offsets = [0, 256], sizes = [8, 128], strides = [1, 1]} : vector<8x384xf32> to vector<8x128xf32>
    %35 = vector.extract_strided_slice %17 {offsets = [0, 256], sizes = [8, 128], strides = [1, 1]} : vector<8x384xf32> to vector<8x128xf32>
    %36 = arith.addf %35, %12 : vector<8x128xf32>
    %37 = arith.mulf %25, %36 : vector<8x128xf32>
    %38 = arith.addf %34, %37 : vector<8x128xf32>
    %39 = math.tanh %38 : vector<8x128xf32>
    %40 = arith.subf %13, %39 : vector<8x128xf32>
    %41 = arith.mulf %33, %40 : vector<8x128xf32>
    %42 = arith.addf %39, %41 : vector<8x128xf32>
    %43 = arith.index_cast %c0_i32 : i32 to index
    %c0_19 = arith.constant 0 : index
    %c0_20 = arith.constant 0 : index
    %44 = vector.load %arg14[%43, %c0_19, %c0_20] : memref<8x8x128xf32, #tpu.memory_space<vmem>>, vector<1x8x128xf32>
    %45 = vector.shape_cast %44 : vector<1x8x128xf32> to vector<8x128xf32>
    %46 = vector.shape_cast %42 : vector<8x128xf32> to vector<1x8x128xf32>
    tpu.vector_store %arg14[%43, %c0_19, %c0_20], %46 {strides = array<i32>} : memref<8x8x128xf32, #tpu.memory_space<vmem>>, vector<1x8x128xf32>,
    %c1_i32 = arith.constant 1 : i32
    %47 = arith.index_cast %c1_i32 : i32 to index
    %c0_21 = arith.constant 0 : index
    %c0_22 = arith.constant 0 : index
    %48 = vector.load %arg13[%47, %c0_21, %c0_22] : memref<8x8x384xf32, #tpu.memory_space<vmem>>, vector<1x8x384xf32>
    %49 = vector.shape_cast %48 : vector<1x8x384xf32> to vector<8x384xf32>
    %cst_23 = arith.constant dense<0.000000e+00> : vector<8x384xf32>
    %50 = tpu.matmul %42, %9, %cst_23 {dimension_numbers = #tpu.dot_dimension_numbers<[1], [0], [0], [1], [0, 0, 1, 1], [], []>} : vector<8x128xf32>, vector<128x384xf32>, vector<8x384xf32> -> vector<8x384xf32>
    %51 = vector.extract_strided_slice %49 {offsets = [0, 0], sizes = [8, 128], strides = [1, 1]} : vector<8x384xf32> to vector<8x128xf32>
    %52 = vector.extract_strided_slice %50 {offsets = [0, 0], sizes = [8, 128], strides = [1, 1]} : vector<8x384xf32> to vector<8x128xf32>
    %53 = arith.addf %51, %52 : vector<8x128xf32>
    %54 = arith.negf %53 : vector<8x128xf32>
    %55 = math.exp %54 : vector<8x128xf32>
    %cst_24 = arith.constant 1.000000e+00 : f32
    %56 = vector.broadcast %cst_24 : f32 to vector<8x128xf32>
    %57 = arith.addf %56, %55 : vector<8x128xf32>
    %58 = arith.divf %56, %57 : vector<8x128xf32>
    %59 = vector.extract_strided_slice %49 {offsets = [0, 128], sizes = [8, 128], strides = [1, 1]} : vector<8x384xf32> to vector<8x128xf32>
    %60 = vector.extract_strided_slice %50 {offsets = [0, 128], sizes = [8, 128], strides = [1, 1]} : vector<8x384xf32> to vector<8x128xf32>
    %61 = arith.addf %59, %60 : vector<8x128xf32>
    %62 = arith.negf %61 : vector<8x128xf32>
    %63 = math.exp %62 : vector<8x128xf32>
    %cst_25 = arith.constant 1.000000e+00 : f32
    %64 = vector.broadcast %cst_25 : f32 to vector<8x128xf32>
    %65 = arith.addf %64, %63 : vector<8x128xf32>
    %66 = arith.divf %64, %65 : vector<8x128xf32>
    %67 = vector.extract_strided_slice %49 {offsets = [0, 256], sizes = [8, 128], strides = [1, 1]} : vector<8x384xf32> to vector<8x128xf32>
    %68 = vector.extract_strided_slice %50 {offsets = [0, 256], sizes = [8, 128], strides = [1, 1]} : vector<8x384xf32> to vector<8x128xf32>
    %69 = arith.addf %68, %12 : vector<8x128xf32>
    %70 = arith.mulf %58, %69 : vector<8x128xf32>
    %71 = arith.addf %67, %70 : vector<8x128xf32>
    %72 = math.tanh %71 : vector<8x128xf32>
    %73 = arith.subf %42, %72 : vector<8x128xf32>
    %74 = arith.mulf %66, %73 : vector<8x128xf32>
    %75 = arith.addf %72, %74 : vector<8x128xf32>
    %76 = arith.index_cast %c1_i32 : i32 to index
    %c0_26 = arith.constant 0 : index
    %c0_27 = arith.constant 0 : index
    %77 = vector.load %arg14[%76, %c0_26, %c0_27] : memref<8x8x128xf32, #tpu.memory_space<vmem>>, vector<1x8x128xf32>
    %78 = vector.shape_cast %77 : vector<1x8x128xf32> to vector<8x128xf32>
    %79 = vector.shape_cast %75 : vector<8x128xf32> to vector<1x8x128xf32>
    tpu.vector_store %arg14[%76, %c0_26, %c0_27], %79 {strides = array<i32>} : memref<8x8x128xf32, #tpu.memory_space<vmem>>, vector<1x8x128xf32>,
    %c2_i32 = arith.constant 2 : i32
    %80 = arith.index_cast %c2_i32 : i32 to index
    %c0_28 = arith.constant 0 : index
    %c0_29 = arith.constant 0 : index
    %81 = vector.load %arg13[%80, %c0_28, %c0_29] : memref<8x8x384xf32, #tpu.memory_space<vmem>>, vector<1x8x384xf32>
    %82 = vector.shape_cast %81 : vector<1x8x384xf32> to vector<8x384xf32>
    %cst_30 = arith.constant dense<0.000000e+00> : vector<8x384xf32>
    %83 = tpu.matmul %75, %9, %cst_30 {dimension_numbers = #tpu.dot_dimension_numbers<[1], [0], [0], [1], [0, 0, 1, 1], [], []>} : vector<8x128xf32>, vector<128x384xf32>, vector<8x384xf32> -> vector<8x384xf32>
    %84 = vector.extract_strided_slice %82 {offsets = [0, 0], sizes = [8, 128], strides = [1, 1]} : vector<8x384xf32> to vector<8x128xf32>
    %85 = vector.extract_strided_slice %83 {offsets = [0, 0], sizes = [8, 128], strides = [1, 1]} : vector<8x384xf32> to vector<8x128xf32>
    %86 = arith.addf %84, %85 : vector<8x128xf32>
    %87 = arith.negf %86 : vector<8x128xf32>
    %88 = math.exp %87 : vector<8x128xf32>
    %cst_31 = arith.constant 1.000000e+00 : f32
    %89 = vector.broadcast %cst_31 : f32 to vector<8x128xf32>
    %90 = arith.addf %89, %88 : vector<8x128xf32>
    %91 = arith.divf %89, %90 : vector<8x128xf32>
    %92 = vector.extract_strided_slice %82 {offsets = [0, 128], sizes = [8, 128], strides = [1, 1]} : vector<8x384xf32> to vector<8x128xf32>
    %93 = vector.extract_strided_slice %83 {offsets = [0, 128], sizes = [8, 128], strides = [1, 1]} : vector<8x384xf32> to vector<8x128xf32>
    %94 = arith.addf %92, %93 : vector<8x128xf32>
    %95 = arith.negf %94 : vector<8x128xf32>
    %96 = math.exp %95 : vector<8x128xf32>
    %cst_32 = arith.constant 1.000000e+00 : f32
    %97 = vector.broadcast %cst_32 : f32 to vector<8x128xf32>
    %98 = arith.addf %97, %96 : vector<8x128xf32>
    %99 = arith.divf %97, %98 : vector<8x128xf32>
    %100 = vector.extract_strided_slice %82 {offsets = [0, 256], sizes = [8, 128], strides = [1, 1]} : vector<8x384xf32> to vector<8x128xf32>
    %101 = vector.extract_strided_slice %83 {offsets = [0, 256], sizes = [8, 128], strides = [1, 1]} : vector<8x384xf32> to vector<8x128xf32>
    %102 = arith.addf %101, %12 : vector<8x128xf32>
    %103 = arith.mulf %91, %102 : vector<8x128xf32>
    %104 = arith.addf %100, %103 : vector<8x128xf32>
    %105 = math.tanh %104 : vector<8x128xf32>
    %106 = arith.subf %75, %105 : vector<8x128xf32>
    %107 = arith.mulf %99, %106 : vector<8x128xf32>
    %108 = arith.addf %105, %107 : vector<8x128xf32>
    %109 = arith.index_cast %c2_i32 : i32 to index
    %c0_33 = arith.constant 0 : index
    %c0_34 = arith.constant 0 : index
    %110 = vector.load %arg14[%109, %c0_33, %c0_34] : memref<8x8x128xf32, #tpu.memory_space<vmem>>, vector<1x8x128xf32>
    %111 = vector.shape_cast %110 : vector<1x8x128xf32> to vector<8x128xf32>
    %112 = vector.shape_cast %108 : vector<8x128xf32> to vector<1x8x128xf32>
    tpu.vector_store %arg14[%109, %c0_33, %c0_34], %112 {strides = array<i32>} : memref<8x8x128xf32, #tpu.memory_space<vmem>>, vector<1x8x128xf32>,
    %c3_i32 = arith.constant 3 : i32
    %113 = arith.index_cast %c3_i32 : i32 to index
    %c0_35 = arith.constant 0 : index
    %c0_36 = arith.constant 0 : index
    %114 = vector.load %arg13[%113, %c0_35, %c0_36] : memref<8x8x384xf32, #tpu.memory_space<vmem>>, vector<1x8x384xf32>
    %115 = vector.shape_cast %114 : vector<1x8x384xf32> to vector<8x384xf32>
    %cst_37 = arith.constant dense<0.000000e+00> : vector<8x384xf32>
    %116 = tpu.matmul %108, %9, %cst_37 {dimension_numbers = #tpu.dot_dimension_numbers<[1], [0], [0], [1], [0, 0, 1, 1], [], []>} : vector<8x128xf32>, vector<128x384xf32>, vector<8x384xf32> -> vector<8x384xf32>
    %117 = vector.extract_strided_slice %115 {offsets = [0, 0], sizes = [8, 128], strides = [1, 1]} : vector<8x384xf32> to vector<8x128xf32>
    %118 = vector.extract_strided_slice %116 {offsets = [0, 0], sizes = [8, 128], strides = [1, 1]} : vector<8x384xf32> to vector<8x128xf32>
    %119 = arith.addf %117, %118 : vector<8x128xf32>
    %120 = arith.negf %119 : vector<8x128xf32>
    %121 = math.exp %120 : vector<8x128xf32>
    %cst_38 = arith.constant 1.000000e+00 : f32
    %122 = vector.broadcast %cst_38 : f32 to vector<8x128xf32>
    %123 = arith.addf %122, %121 : vector<8x128xf32>
    %124 = arith.divf %122, %123 : vector<8x128xf32>
    %125 = vector.extract_strided_slice %115 {offsets = [0, 128], sizes = [8, 128], strides = [1, 1]} : vector<8x384xf32> to vector<8x128xf32>
    %126 = vector.extract_strided_slice %116 {offsets = [0, 128], sizes = [8, 128], strides = [1, 1]} : vector<8x384xf32> to vector<8x128xf32>
    %127 = arith.addf %125, %126 : vector<8x128xf32>
    %128 = arith.negf %127 : vector<8x128xf32>
    %129 = math.exp %128 : vector<8x128xf32>
    %cst_39 = arith.constant 1.000000e+00 : f32
    %130 = vector.broadcast %cst_39 : f32 to vector<8x128xf32>
    %131 = arith.addf %130, %129 : vector<8x128xf32>
    %132 = arith.divf %130, %131 : vector<8x128xf32>
    %133 = vector.extract_strided_slice %115 {offsets = [0, 256], sizes = [8, 128], strides = [1, 1]} : vector<8x384xf32> to vector<8x128xf32>
    %134 = vector.extract_strided_slice %116 {offsets = [0, 256], sizes = [8, 128], strides = [1, 1]} : vector<8x384xf32> to vector<8x128xf32>
    %135 = arith.addf %134, %12 : vector<8x128xf32>
    %136 = arith.mulf %124, %135 : vector<8x128xf32>
    %137 = arith.addf %133, %136 : vector<8x128xf32>
    %138 = math.tanh %137 : vector<8x128xf32>
    %139 = arith.subf %108, %138 : vector<8x128xf32>
    %140 = arith.mulf %132, %139 : vector<8x128xf32>
    %141 = arith.addf %138, %140 : vector<8x128xf32>
    %142 = arith.index_cast %c3_i32 : i32 to index
    %c0_40 = arith.constant 0 : index
    %c0_41 = arith.constant 0 : index
    %143 = vector.load %arg14[%142, %c0_40, %c0_41] : memref<8x8x128xf32, #tpu.memory_space<vmem>>, vector<1x8x128xf32>
    %144 = vector.shape_cast %143 : vector<1x8x128xf32> to vector<8x128xf32>
    %145 = vector.shape_cast %141 : vector<8x128xf32> to vector<1x8x128xf32>
    tpu.vector_store %arg14[%142, %c0_40, %c0_41], %145 {strides = array<i32>} : memref<8x8x128xf32, #tpu.memory_space<vmem>>, vector<1x8x128xf32>,
    %c4_i32 = arith.constant 4 : i32
    %146 = arith.index_cast %c4_i32 : i32 to index
    %c0_42 = arith.constant 0 : index
    %c0_43 = arith.constant 0 : index
    %147 = vector.load %arg13[%146, %c0_42, %c0_43] : memref<8x8x384xf32, #tpu.memory_space<vmem>>, vector<1x8x384xf32>
    %148 = vector.shape_cast %147 : vector<1x8x384xf32> to vector<8x384xf32>
    %cst_44 = arith.constant dense<0.000000e+00> : vector<8x384xf32>
    %149 = tpu.matmul %141, %9, %cst_44 {dimension_numbers = #tpu.dot_dimension_numbers<[1], [0], [0], [1], [0, 0, 1, 1], [], []>} : vector<8x128xf32>, vector<128x384xf32>, vector<8x384xf32> -> vector<8x384xf32>
    %150 = vector.extract_strided_slice %148 {offsets = [0, 0], sizes = [8, 128], strides = [1, 1]} : vector<8x384xf32> to vector<8x128xf32>
    %151 = vector.extract_strided_slice %149 {offsets = [0, 0], sizes = [8, 128], strides = [1, 1]} : vector<8x384xf32> to vector<8x128xf32>
    %152 = arith.addf %150, %151 : vector<8x128xf32>
    %153 = arith.negf %152 : vector<8x128xf32>
    %154 = math.exp %153 : vector<8x128xf32>
    %cst_45 = arith.constant 1.000000e+00 : f32
    %155 = vector.broadcast %cst_45 : f32 to vector<8x128xf32>
    %156 = arith.addf %155, %154 : vector<8x128xf32>
    %157 = arith.divf %155, %156 : vector<8x128xf32>
    %158 = vector.extract_strided_slice %148 {offsets = [0, 128], sizes = [8, 128], strides = [1, 1]} : vector<8x384xf32> to vector<8x128xf32>
    %159 = vector.extract_strided_slice %149 {offsets = [0, 128], sizes = [8, 128], strides = [1, 1]} : vector<8x384xf32> to vector<8x128xf32>
    %160 = arith.addf %158, %159 : vector<8x128xf32>
    %161 = arith.negf %160 : vector<8x128xf32>
    %162 = math.exp %161 : vector<8x128xf32>
    %cst_46 = arith.constant 1.000000e+00 : f32
    %163 = vector.broadcast %cst_46 : f32 to vector<8x128xf32>
    %164 = arith.addf %163, %162 : vector<8x128xf32>
    %165 = arith.divf %163, %164 : vector<8x128xf32>
    %166 = vector.extract_strided_slice %148 {offsets = [0, 256], sizes = [8, 128], strides = [1, 1]} : vector<8x384xf32> to vector<8x128xf32>
    %167 = vector.extract_strided_slice %149 {offsets = [0, 256], sizes = [8, 128], strides = [1, 1]} : vector<8x384xf32> to vector<8x128xf32>
    %168 = arith.addf %167, %12 : vector<8x128xf32>
    %169 = arith.mulf %157, %168 : vector<8x128xf32>
    %170 = arith.addf %166, %169 : vector<8x128xf32>
    %171 = math.tanh %170 : vector<8x128xf32>
    %172 = arith.subf %141, %171 : vector<8x128xf32>
    %173 = arith.mulf %165, %172 : vector<8x128xf32>
    %174 = arith.addf %171, %173 : vector<8x128xf32>
    %175 = arith.index_cast %c4_i32 : i32 to index
    %c0_47 = arith.constant 0 : index
    %c0_48 = arith.constant 0 : index
    %176 = vector.load %arg14[%175, %c0_47, %c0_48] : memref<8x8x128xf32, #tpu.memory_space<vmem>>, vector<1x8x128xf32>
    %177 = vector.shape_cast %176 : vector<1x8x128xf32> to vector<8x128xf32>
    %178 = vector.shape_cast %174 : vector<8x128xf32> to vector<1x8x128xf32>
    tpu.vector_store %arg14[%175, %c0_47, %c0_48], %178 {strides = array<i32>} : memref<8x8x128xf32, #tpu.memory_space<vmem>>, vector<1x8x128xf32>,
    %c5_i32 = arith.constant 5 : i32
    %179 = arith.index_cast %c5_i32 : i32 to index
    %c0_49 = arith.constant 0 : index
    %c0_50 = arith.constant 0 : index
    %180 = vector.load %arg13[%179, %c0_49, %c0_50] : memref<8x8x384xf32, #tpu.memory_space<vmem>>, vector<1x8x384xf32>
    %181 = vector.shape_cast %180 : vector<1x8x384xf32> to vector<8x384xf32>
    %cst_51 = arith.constant dense<0.000000e+00> : vector<8x384xf32>
    %182 = tpu.matmul %174, %9, %cst_51 {dimension_numbers = #tpu.dot_dimension_numbers<[1], [0], [0], [1], [0, 0, 1, 1], [], []>} : vector<8x128xf32>, vector<128x384xf32>, vector<8x384xf32> -> vector<8x384xf32>
    %183 = vector.extract_strided_slice %181 {offsets = [0, 0], sizes = [8, 128], strides = [1, 1]} : vector<8x384xf32> to vector<8x128xf32>
    %184 = vector.extract_strided_slice %182 {offsets = [0, 0], sizes = [8, 128], strides = [1, 1]} : vector<8x384xf32> to vector<8x128xf32>
    %185 = arith.addf %183, %184 : vector<8x128xf32>
    %186 = arith.negf %185 : vector<8x128xf32>
    %187 = math.exp %186 : vector<8x128xf32>
    %cst_52 = arith.constant 1.000000e+00 : f32
    %188 = vector.broadcast %cst_52 : f32 to vector<8x128xf32>
    %189 = arith.addf %188, %187 : vector<8x128xf32>
    %190 = arith.divf %188, %189 : vector<8x128xf32>
    %191 = vector.extract_strided_slice %181 {offsets = [0, 128], sizes = [8, 128], strides = [1, 1]} : vector<8x384xf32> to vector<8x128xf32>
    %192 = vector.extract_strided_slice %182 {offsets = [0, 128], sizes = [8, 128], strides = [1, 1]} : vector<8x384xf32> to vector<8x128xf32>
    %193 = arith.addf %191, %192 : vector<8x128xf32>
    %194 = arith.negf %193 : vector<8x128xf32>
    %195 = math.exp %194 : vector<8x128xf32>
    %cst_53 = arith.constant 1.000000e+00 : f32
    %196 = vector.broadcast %cst_53 : f32 to vector<8x128xf32>
    %197 = arith.addf %196, %195 : vector<8x128xf32>
    %198 = arith.divf %196, %197 : vector<8x128xf32>
    %199 = vector.extract_strided_slice %181 {offsets = [0, 256], sizes = [8, 128], strides = [1, 1]} : vector<8x384xf32> to vector<8x128xf32>
    %200 = vector.extract_strided_slice %182 {offsets = [0, 256], sizes = [8, 128], strides = [1, 1]} : vector<8x384xf32> to vector<8x128xf32>
    %201 = arith.addf %200, %12 : vector<8x128xf32>
    %202 = arith.mulf %190, %201 : vector<8x128xf32>
    %203 = arith.addf %199, %202 : vector<8x128xf32>
    %204 = math.tanh %203 : vector<8x128xf32>
    %205 = arith.subf %174, %204 : vector<8x128xf32>
    %206 = arith.mulf %198, %205 : vector<8x128xf32>
    %207 = arith.addf %204, %206 : vector<8x128xf32>
    %208 = arith.index_cast %c5_i32 : i32 to index
    %c0_54 = arith.constant 0 : index
    %c0_55 = arith.constant 0 : index
    %209 = vector.load %arg14[%208, %c0_54, %c0_55] : memref<8x8x128xf32, #tpu.memory_space<vmem>>, vector<1x8x128xf32>
    %210 = vector.shape_cast %209 : vector<1x8x128xf32> to vector<8x128xf32>
    %211 = vector.shape_cast %207 : vector<8x128xf32> to vector<1x8x128xf32>
    tpu.vector_store %arg14[%208, %c0_54, %c0_55], %211 {strides = array<i32>} : memref<8x8x128xf32, #tpu.memory_space<vmem>>, vector<1x8x128xf32>,
    %c6_i32 = arith.constant 6 : i32
    %212 = arith.index_cast %c6_i32 : i32 to index
    %c0_56 = arith.constant 0 : index
    %c0_57 = arith.constant 0 : index
    %213 = vector.load %arg13[%212, %c0_56, %c0_57] : memref<8x8x384xf32, #tpu.memory_space<vmem>>, vector<1x8x384xf32>
    %214 = vector.shape_cast %213 : vector<1x8x384xf32> to vector<8x384xf32>
    %cst_58 = arith.constant dense<0.000000e+00> : vector<8x384xf32>
    %215 = tpu.matmul %207, %9, %cst_58 {dimension_numbers = #tpu.dot_dimension_numbers<[1], [0], [0], [1], [0, 0, 1, 1], [], []>} : vector<8x128xf32>, vector<128x384xf32>, vector<8x384xf32> -> vector<8x384xf32>
    %216 = vector.extract_strided_slice %214 {offsets = [0, 0], sizes = [8, 128], strides = [1, 1]} : vector<8x384xf32> to vector<8x128xf32>
    %217 = vector.extract_strided_slice %215 {offsets = [0, 0], sizes = [8, 128], strides = [1, 1]} : vector<8x384xf32> to vector<8x128xf32>
    %218 = arith.addf %216, %217 : vector<8x128xf32>
    %219 = arith.negf %218 : vector<8x128xf32>
    %220 = math.exp %219 : vector<8x128xf32>
    %cst_59 = arith.constant 1.000000e+00 : f32
    %221 = vector.broadcast %cst_59 : f32 to vector<8x128xf32>
    %222 = arith.addf %221, %220 : vector<8x128xf32>
    %223 = arith.divf %221, %222 : vector<8x128xf32>
    %224 = vector.extract_strided_slice %214 {offsets = [0, 128], sizes = [8, 128], strides = [1, 1]} : vector<8x384xf32> to vector<8x128xf32>
    %225 = vector.extract_strided_slice %215 {offsets = [0, 128], sizes = [8, 128], strides = [1, 1]} : vector<8x384xf32> to vector<8x128xf32>
    %226 = arith.addf %224, %225 : vector<8x128xf32>
    %227 = arith.negf %226 : vector<8x128xf32>
    %228 = math.exp %227 : vector<8x128xf32>
    %cst_60 = arith.constant 1.000000e+00 : f32
    %229 = vector.broadcast %cst_60 : f32 to vector<8x128xf32>
    %230 = arith.addf %229, %228 : vector<8x128xf32>
    %231 = arith.divf %229, %230 : vector<8x128xf32>
    %232 = vector.extract_strided_slice %214 {offsets = [0, 256], sizes = [8, 128], strides = [1, 1]} : vector<8x384xf32> to vector<8x128xf32>
    %233 = vector.extract_strided_slice %215 {offsets = [0, 256], sizes = [8, 128], strides = [1, 1]} : vector<8x384xf32> to vector<8x128xf32>
    %234 = arith.addf %233, %12 : vector<8x128xf32>
    %235 = arith.mulf %223, %234 : vector<8x128xf32>
    %236 = arith.addf %232, %235 : vector<8x128xf32>
    %237 = math.tanh %236 : vector<8x128xf32>
    %238 = arith.subf %207, %237 : vector<8x128xf32>
    %239 = arith.mulf %231, %238 : vector<8x128xf32>
    %240 = arith.addf %237, %239 : vector<8x128xf32>
    %241 = arith.index_cast %c6_i32 : i32 to index
    %c0_61 = arith.constant 0 : index
    %c0_62 = arith.constant 0 : index
    %242 = vector.load %arg14[%241, %c0_61, %c0_62] : memref<8x8x128xf32, #tpu.memory_space<vmem>>, vector<1x8x128xf32>
    %243 = vector.shape_cast %242 : vector<1x8x128xf32> to vector<8x128xf32>
    %244 = vector.shape_cast %240 : vector<8x128xf32> to vector<1x8x128xf32>
    tpu.vector_store %arg14[%241, %c0_61, %c0_62], %244 {strides = array<i32>} : memref<8x8x128xf32, #tpu.memory_space<vmem>>, vector<1x8x128xf32>,
    %c7_i32 = arith.constant 7 : i32
    %245 = arith.index_cast %c7_i32 : i32 to index
    %c0_63 = arith.constant 0 : index
    %c0_64 = arith.constant 0 : index
    %246 = vector.load %arg13[%245, %c0_63, %c0_64] : memref<8x8x384xf32, #tpu.memory_space<vmem>>, vector<1x8x384xf32>
    %247 = vector.shape_cast %246 : vector<1x8x384xf32> to vector<8x384xf32>
    %cst_65 = arith.constant dense<0.000000e+00> : vector<8x384xf32>
    %248 = tpu.matmul %240, %9, %cst_65 {dimension_numbers = #tpu.dot_dimension_numbers<[1], [0], [0], [1], [0, 0, 1, 1], [], []>} : vector<8x128xf32>, vector<128x384xf32>, vector<8x384xf32> -> vector<8x384xf32>
    %249 = vector.extract_strided_slice %247 {offsets = [0, 0], sizes = [8, 128], strides = [1, 1]} : vector<8x384xf32> to vector<8x128xf32>
    %250 = vector.extract_strided_slice %248 {offsets = [0, 0], sizes = [8, 128], strides = [1, 1]} : vector<8x384xf32> to vector<8x128xf32>
    %251 = arith.addf %249, %250 : vector<8x128xf32>
    %252 = arith.negf %251 : vector<8x128xf32>
    %253 = math.exp %252 : vector<8x128xf32>
    %cst_66 = arith.constant 1.000000e+00 : f32
    %254 = vector.broadcast %cst_66 : f32 to vector<8x128xf32>
    %255 = arith.addf %254, %253 : vector<8x128xf32>
    %256 = arith.divf %254, %255 : vector<8x128xf32>
    %257 = vector.extract_strided_slice %247 {offsets = [0, 128], sizes = [8, 128], strides = [1, 1]} : vector<8x384xf32> to vector<8x128xf32>
    %258 = vector.extract_strided_slice %248 {offsets = [0, 128], sizes = [8, 128], strides = [1, 1]} : vector<8x384xf32> to vector<8x128xf32>
    %259 = arith.addf %257, %258 : vector<8x128xf32>
    %260 = arith.negf %259 : vector<8x128xf32>
    %261 = math.exp %260 : vector<8x128xf32>
    %cst_67 = arith.constant 1.000000e+00 : f32
    %262 = vector.broadcast %cst_67 : f32 to vector<8x128xf32>
    %263 = arith.addf %262, %261 : vector<8x128xf32>
    %264 = arith.divf %262, %263 : vector<8x128xf32>
    %265 = vector.extract_strided_slice %247 {offsets = [0, 256], sizes = [8, 128], strides = [1, 1]} : vector<8x384xf32> to vector<8x128xf32>
    %266 = vector.extract_strided_slice %248 {offsets = [0, 256], sizes = [8, 128], strides = [1, 1]} : vector<8x384xf32> to vector<8x128xf32>
    %267 = arith.addf %266, %12 : vector<8x128xf32>
    %268 = arith.mulf %256, %267 : vector<8x128xf32>
    %269 = arith.addf %265, %268 : vector<8x128xf32>
    %270 = math.tanh %269 : vector<8x128xf32>
    %271 = arith.subf %240, %270 : vector<8x128xf32>
    %272 = arith.mulf %264, %271 : vector<8x128xf32>
    %273 = arith.addf %270, %272 : vector<8x128xf32>
    %274 = arith.index_cast %c7_i32 : i32 to index
    %c0_68 = arith.constant 0 : index
    %c0_69 = arith.constant 0 : index
    %275 = vector.load %arg14[%274, %c0_68, %c0_69] : memref<8x8x128xf32, #tpu.memory_space<vmem>>, vector<1x8x128xf32>
    %276 = vector.shape_cast %275 : vector<1x8x128xf32> to vector<8x128xf32>
    %277 = vector.shape_cast %273 : vector<8x128xf32> to vector<1x8x128xf32>
    tpu.vector_store %arg14[%274, %c0_68, %c0_69], %277 {strides = array<i32>} : memref<8x8x128xf32, #tpu.memory_space<vmem>>, vector<1x8x128xf32>,
    %c8_i32 = arith.constant 8 : i32
    %c0_70 = arith.constant 0 : index
    %c0_71 = arith.constant 0 : index
    %c0_72 = arith.constant 0 : index
    %278 = vector.load %arg14[%c0_70, %c0_71, %c0_72] : memref<8x8x128xf32, #tpu.memory_space<vmem>>, vector<8x8x128xf32>
    %279 = vector.shape_cast %278 : vector<8x8x128xf32> to vector<64x128xf32>
    %c0_73 = arith.constant 0 : index
    %c0_74 = arith.constant 0 : index
    %280 = vector.load %arg6[%c0_73, %c0_74] : memref<128x384xf32, #tpu.memory_space<vmem>>, vector<128x384xf32>
    %cst_75 = arith.constant dense<0.000000e+00> : vector<64x384xf32>
    %281 = tpu.matmul %279, %280, %cst_75 {dimension_numbers = #tpu.dot_dimension_numbers<[1], [0], [0], [1], [0, 0, 1, 1], [], []>} : vector<64x128xf32>, vector<128x384xf32>, vector<64x384xf32> -> vector<64x384xf32>
    %c0_76 = arith.constant 0 : index
    %c0_77 = arith.constant 0 : index
    %282 = vector.load %arg8[%c0_76, %c0_77] : memref<1x384xf32, #tpu.memory_space<vmem>>, vector<1x384xf32>
    %283 = vector.broadcast %282 : vector<1x384xf32> to vector<64x384xf32>
    %284 = arith.addf %281, %283 : vector<64x384xf32>
    %285 = vector.shape_cast %284 : vector<64x384xf32> to vector<8x8x384xf32>
    %c0_78 = arith.constant 0 : index
    %c0_79 = arith.constant 0 : index
    %c0_80 = arith.constant 0 : index
    %286 = vector.load %arg13[%c0_78, %c0_79, %c0_80] : memref<8x8x384xf32, #tpu.memory_space<vmem>>, vector<8x8x384xf32>
    tpu.vector_store %arg13[%c0_78, %c0_79, %c0_80], %285 {strides = array<i32>} : memref<8x8x384xf32, #tpu.memory_space<vmem>>, vector<8x8x384xf32>,
    %c0_81 = arith.constant 0 : index
    %c0_82 = arith.constant 0 : index
    %287 = vector.load %arg7[%c0_81, %c0_82] : memref<128x384xf32, #tpu.memory_space<vmem>>, vector<128x384xf32>
    %c0_83 = arith.constant 0 : index
    %c0_84 = arith.constant 0 : index
    %288 = vector.load %arg9[%c0_83, %c0_84] : memref<1x128xf32, #tpu.memory_space<vmem>>, vector<1x128xf32>
    %289 = vector.shape_cast %288 : vector<1x128xf32> to vector<1x128xf32>
    %290 = vector.broadcast %289 : vector<1x128xf32> to vector<8x128xf32>
    %cst_85 = arith.constant 0.000000e+00 : f32
    %291 = vector.broadcast %cst_85 : f32 to vector<8x128xf32>
    %c0_i32_86 = arith.constant 0 : i32
    %292 = arith.index_cast %c0_i32_86 : i32 to index
    %c0_87 = arith.constant 0 : index
    %c0_88 = arith.constant 0 : index
    %293 = vector.load %arg13[%292, %c0_87, %c0_88] : memref<8x8x384xf32, #tpu.memory_space<vmem>>, vector<1x8x384xf32>
    %294 = vector.shape_cast %293 : vector<1x8x384xf32> to vector<8x384xf32>
    %cst_89 = arith.constant dense<0.000000e+00> : vector<8x384xf32>
    %295 = tpu.matmul %291, %287, %cst_89 {dimension_numbers = #tpu.dot_dimension_numbers<[1], [0], [0], [1], [0, 0, 1, 1], [], []>} : vector<8x128xf32>, vector<128x384xf32>, vector<8x384xf32> -> vector<8x384xf32>
    %296 = vector.extract_strided_slice %294 {offsets = [0, 0], sizes = [8, 128], strides = [1, 1]} : vector<8x384xf32> to vector<8x128xf32>
    %297 = vector.extract_strided_slice %295 {offsets = [0, 0], sizes = [8, 128], strides = [1, 1]} : vector<8x384xf32> to vector<8x128xf32>
    %298 = arith.addf %296, %297 : vector<8x128xf32>
    %299 = arith.negf %298 : vector<8x128xf32>
    %300 = math.exp %299 : vector<8x128xf32>
    %cst_90 = arith.constant 1.000000e+00 : f32
    %301 = vector.broadcast %cst_90 : f32 to vector<8x128xf32>
    %302 = arith.addf %301, %300 : vector<8x128xf32>
    %303 = arith.divf %301, %302 : vector<8x128xf32>
    %304 = vector.extract_strided_slice %294 {offsets = [0, 128], sizes = [8, 128], strides = [1, 1]} : vector<8x384xf32> to vector<8x128xf32>
    %305 = vector.extract_strided_slice %295 {offsets = [0, 128], sizes = [8, 128], strides = [1, 1]} : vector<8x384xf32> to vector<8x128xf32>
    %306 = arith.addf %304, %305 : vector<8x128xf32>
    %307 = arith.negf %306 : vector<8x128xf32>
    %308 = math.exp %307 : vector<8x128xf32>
    %cst_91 = arith.constant 1.000000e+00 : f32
    %309 = vector.broadcast %cst_91 : f32 to vector<8x128xf32>
    %310 = arith.addf %309, %308 : vector<8x128xf32>
    %311 = arith.divf %309, %310 : vector<8x128xf32>
    %312 = vector.extract_strided_slice %294 {offsets = [0, 256], sizes = [8, 128], strides = [1, 1]} : vector<8x384xf32> to vector<8x128xf32>
    %313 = vector.extract_strided_slice %295 {offsets = [0, 256], sizes = [8, 128], strides = [1, 1]} : vector<8x384xf32> to vector<8x128xf32>
    %314 = arith.addf %313, %290 : vector<8x128xf32>
    %315 = arith.mulf %303, %314 : vector<8x128xf32>
    %316 = arith.addf %312, %315 : vector<8x128xf32>
    %317 = math.tanh %316 : vector<8x128xf32>
    %318 = arith.subf %291, %317 : vector<8x128xf32>
    %319 = arith.mulf %311, %318 : vector<8x128xf32>
    %320 = arith.addf %317, %319 : vector<8x128xf32>
    %c1_i32_92 = arith.constant 1 : i32
    %321 = arith.index_cast %c1_i32_92 : i32 to index
    %c0_93 = arith.constant 0 : index
    %c0_94 = arith.constant 0 : index
    %322 = vector.load %arg13[%321, %c0_93, %c0_94] : memref<8x8x384xf32, #tpu.memory_space<vmem>>, vector<1x8x384xf32>
    %323 = vector.shape_cast %322 : vector<1x8x384xf32> to vector<8x384xf32>
    %cst_95 = arith.constant dense<0.000000e+00> : vector<8x384xf32>
    %324 = tpu.matmul %320, %287, %cst_95 {dimension_numbers = #tpu.dot_dimension_numbers<[1], [0], [0], [1], [0, 0, 1, 1], [], []>} : vector<8x128xf32>, vector<128x384xf32>, vector<8x384xf32> -> vector<8x384xf32>
    %325 = vector.extract_strided_slice %323 {offsets = [0, 0], sizes = [8, 128], strides = [1, 1]} : vector<8x384xf32> to vector<8x128xf32>
    %326 = vector.extract_strided_slice %324 {offsets = [0, 0], sizes = [8, 128], strides = [1, 1]} : vector<8x384xf32> to vector<8x128xf32>
    %327 = arith.addf %325, %326 : vector<8x128xf32>
    %328 = arith.negf %327 : vector<8x128xf32>
    %329 = math.exp %328 : vector<8x128xf32>
    %cst_96 = arith.constant 1.000000e+00 : f32
    %330 = vector.broadcast %cst_96 : f32 to vector<8x128xf32>
    %331 = arith.addf %330, %329 : vector<8x128xf32>
    %332 = arith.divf %330, %331 : vector<8x128xf32>
    %333 = vector.extract_strided_slice %323 {offsets = [0, 128], sizes = [8, 128], strides = [1, 1]} : vector<8x384xf32> to vector<8x128xf32>
    %334 = vector.extract_strided_slice %324 {offsets = [0, 128], sizes = [8, 128], strides = [1, 1]} : vector<8x384xf32> to vector<8x128xf32>
    %335 = arith.addf %333, %334 : vector<8x128xf32>
    %336 = arith.negf %335 : vector<8x128xf32>
    %337 = math.exp %336 : vector<8x128xf32>
    %cst_97 = arith.constant 1.000000e+00 : f32
    %338 = vector.broadcast %cst_97 : f32 to vector<8x128xf32>
    %339 = arith.addf %338, %337 : vector<8x128xf32>
    %340 = arith.divf %338, %339 : vector<8x128xf32>
    %341 = vector.extract_strided_slice %323 {offsets = [0, 256], sizes = [8, 128], strides = [1, 1]} : vector<8x384xf32> to vector<8x128xf32>
    %342 = vector.extract_strided_slice %324 {offsets = [0, 256], sizes = [8, 128], strides = [1, 1]} : vector<8x384xf32> to vector<8x128xf32>
    %343 = arith.addf %342, %290 : vector<8x128xf32>
    %344 = arith.mulf %332, %343 : vector<8x128xf32>
    %345 = arith.addf %341, %344 : vector<8x128xf32>
    %346 = math.tanh %345 : vector<8x128xf32>
    %347 = arith.subf %320, %346 : vector<8x128xf32>
    %348 = arith.mulf %340, %347 : vector<8x128xf32>
    %349 = arith.addf %346, %348 : vector<8x128xf32>
    %c2_i32_98 = arith.constant 2 : i32
    %350 = arith.index_cast %c2_i32_98 : i32 to index
    %c0_99 = arith.constant 0 : index
    %c0_100 = arith.constant 0 : index
    %351 = vector.load %arg13[%350, %c0_99, %c0_100] : memref<8x8x384xf32, #tpu.memory_space<vmem>>, vector<1x8x384xf32>
    %352 = vector.shape_cast %351 : vector<1x8x384xf32> to vector<8x384xf32>
    %cst_101 = arith.constant dense<0.000000e+00> : vector<8x384xf32>
    %353 = tpu.matmul %349, %287, %cst_101 {dimension_numbers = #tpu.dot_dimension_numbers<[1], [0], [0], [1], [0, 0, 1, 1], [], []>} : vector<8x128xf32>, vector<128x384xf32>, vector<8x384xf32> -> vector<8x384xf32>
    %354 = vector.extract_strided_slice %352 {offsets = [0, 0], sizes = [8, 128], strides = [1, 1]} : vector<8x384xf32> to vector<8x128xf32>
    %355 = vector.extract_strided_slice %353 {offsets = [0, 0], sizes = [8, 128], strides = [1, 1]} : vector<8x384xf32> to vector<8x128xf32>
    %356 = arith.addf %354, %355 : vector<8x128xf32>
    %357 = arith.negf %356 : vector<8x128xf32>
    %358 = math.exp %357 : vector<8x128xf32>
    %cst_102 = arith.constant 1.000000e+00 : f32
    %359 = vector.broadcast %cst_102 : f32 to vector<8x128xf32>
    %360 = arith.addf %359, %358 : vector<8x128xf32>
    %361 = arith.divf %359, %360 : vector<8x128xf32>
    %362 = vector.extract_strided_slice %352 {offsets = [0, 128], sizes = [8, 128], strides = [1, 1]} : vector<8x384xf32> to vector<8x128xf32>
    %363 = vector.extract_strided_slice %353 {offsets = [0, 128], sizes = [8, 128], strides = [1, 1]} : vector<8x384xf32> to vector<8x128xf32>
    %364 = arith.addf %362, %363 : vector<8x128xf32>
    %365 = arith.negf %364 : vector<8x128xf32>
    %366 = math.exp %365 : vector<8x128xf32>
    %cst_103 = arith.constant 1.000000e+00 : f32
    %367 = vector.broadcast %cst_103 : f32 to vector<8x128xf32>
    %368 = arith.addf %367, %366 : vector<8x128xf32>
    %369 = arith.divf %367, %368 : vector<8x128xf32>
    %370 = vector.extract_strided_slice %352 {offsets = [0, 256], sizes = [8, 128], strides = [1, 1]} : vector<8x384xf32> to vector<8x128xf32>
    %371 = vector.extract_strided_slice %353 {offsets = [0, 256], sizes = [8, 128], strides = [1, 1]} : vector<8x384xf32> to vector<8x128xf32>
    %372 = arith.addf %371, %290 : vector<8x128xf32>
    %373 = arith.mulf %361, %372 : vector<8x128xf32>
    %374 = arith.addf %370, %373 : vector<8x128xf32>
    %375 = math.tanh %374 : vector<8x128xf32>
    %376 = arith.subf %349, %375 : vector<8x128xf32>
    %377 = arith.mulf %369, %376 : vector<8x128xf32>
    %378 = arith.addf %375, %377 : vector<8x128xf32>
    %c3_i32_104 = arith.constant 3 : i32
    %379 = arith.index_cast %c3_i32_104 : i32 to index
    %c0_105 = arith.constant 0 : index
    %c0_106 = arith.constant 0 : index
    %380 = vector.load %arg13[%379, %c0_105, %c0_106] : memref<8x8x384xf32, #tpu.memory_space<vmem>>, vector<1x8x384xf32>
    %381 = vector.shape_cast %380 : vector<1x8x384xf32> to vector<8x384xf32>
    %cst_107 = arith.constant dense<0.000000e+00> : vector<8x384xf32>
    %382 = tpu.matmul %378, %287, %cst_107 {dimension_numbers = #tpu.dot_dimension_numbers<[1], [0], [0], [1], [0, 0, 1, 1], [], []>} : vector<8x128xf32>, vector<128x384xf32>, vector<8x384xf32> -> vector<8x384xf32>
    %383 = vector.extract_strided_slice %381 {offsets = [0, 0], sizes = [8, 128], strides = [1, 1]} : vector<8x384xf32> to vector<8x128xf32>
    %384 = vector.extract_strided_slice %382 {offsets = [0, 0], sizes = [8, 128], strides = [1, 1]} : vector<8x384xf32> to vector<8x128xf32>
    %385 = arith.addf %383, %384 : vector<8x128xf32>
    %386 = arith.negf %385 : vector<8x128xf32>
    %387 = math.exp %386 : vector<8x128xf32>
    %cst_108 = arith.constant 1.000000e+00 : f32
    %388 = vector.broadcast %cst_108 : f32 to vector<8x128xf32>
    %389 = arith.addf %388, %387 : vector<8x128xf32>
    %390 = arith.divf %388, %389 : vector<8x128xf32>
    %391 = vector.extract_strided_slice %381 {offsets = [0, 128], sizes = [8, 128], strides = [1, 1]} : vector<8x384xf32> to vector<8x128xf32>
    %392 = vector.extract_strided_slice %382 {offsets = [0, 128], sizes = [8, 128], strides = [1, 1]} : vector<8x384xf32> to vector<8x128xf32>
    %393 = arith.addf %391, %392 : vector<8x128xf32>
    %394 = arith.negf %393 : vector<8x128xf32>
    %395 = math.exp %394 : vector<8x128xf32>
    %cst_109 = arith.constant 1.000000e+00 : f32
    %396 = vector.broadcast %cst_109 : f32 to vector<8x128xf32>
    %397 = arith.addf %396, %395 : vector<8x128xf32>
    %398 = arith.divf %396, %397 : vector<8x128xf32>
    %399 = vector.extract_strided_slice %381 {offsets = [0, 256], sizes = [8, 128], strides = [1, 1]} : vector<8x384xf32> to vector<8x128xf32>
    %400 = vector.extract_strided_slice %382 {offsets = [0, 256], sizes = [8, 128], strides = [1, 1]} : vector<8x384xf32> to vector<8x128xf32>
    %401 = arith.addf %400, %290 : vector<8x128xf32>
    %402 = arith.mulf %390, %401 : vector<8x128xf32>
    %403 = arith.addf %399, %402 : vector<8x128xf32>
    %404 = math.tanh %403 : vector<8x128xf32>
    %405 = arith.subf %378, %404 : vector<8x128xf32>
    %406 = arith.mulf %398, %405 : vector<8x128xf32>
    %407 = arith.addf %404, %406 : vector<8x128xf32>
    %c4_i32_110 = arith.constant 4 : i32
    %408 = arith.index_cast %c4_i32_110 : i32 to index
    %c0_111 = arith.constant 0 : index
    %c0_112 = arith.constant 0 : index
    %409 = vector.load %arg13[%408, %c0_111, %c0_112] : memref<8x8x384xf32, #tpu.memory_space<vmem>>, vector<1x8x384xf32>
    %410 = vector.shape_cast %409 : vector<1x8x384xf32> to vector<8x384xf32>
    %cst_113 = arith.constant dense<0.000000e+00> : vector<8x384xf32>
    %411 = tpu.matmul %407, %287, %cst_113 {dimension_numbers = #tpu.dot_dimension_numbers<[1], [0], [0], [1], [0, 0, 1, 1], [], []>} : vector<8x128xf32>, vector<128x384xf32>, vector<8x384xf32> -> vector<8x384xf32>
    %412 = vector.extract_strided_slice %410 {offsets = [0, 0], sizes = [8, 128], strides = [1, 1]} : vector<8x384xf32> to vector<8x128xf32>
    %413 = vector.extract_strided_slice %411 {offsets = [0, 0], sizes = [8, 128], strides = [1, 1]} : vector<8x384xf32> to vector<8x128xf32>
    %414 = arith.addf %412, %413 : vector<8x128xf32>
    %415 = arith.negf %414 : vector<8x128xf32>
    %416 = math.exp %415 : vector<8x128xf32>
    %cst_114 = arith.constant 1.000000e+00 : f32
    %417 = vector.broadcast %cst_114 : f32 to vector<8x128xf32>
    %418 = arith.addf %417, %416 : vector<8x128xf32>
    %419 = arith.divf %417, %418 : vector<8x128xf32>
    %420 = vector.extract_strided_slice %410 {offsets = [0, 128], sizes = [8, 128], strides = [1, 1]} : vector<8x384xf32> to vector<8x128xf32>
    %421 = vector.extract_strided_slice %411 {offsets = [0, 128], sizes = [8, 128], strides = [1, 1]} : vector<8x384xf32> to vector<8x128xf32>
    %422 = arith.addf %420, %421 : vector<8x128xf32>
    %423 = arith.negf %422 : vector<8x128xf32>
    %424 = math.exp %423 : vector<8x128xf32>
    %cst_115 = arith.constant 1.000000e+00 : f32
    %425 = vector.broadcast %cst_115 : f32 to vector<8x128xf32>
    %426 = arith.addf %425, %424 : vector<8x128xf32>
    %427 = arith.divf %425, %426 : vector<8x128xf32>
    %428 = vector.extract_strided_slice %410 {offsets = [0, 256], sizes = [8, 128], strides = [1, 1]} : vector<8x384xf32> to vector<8x128xf32>
    %429 = vector.extract_strided_slice %411 {offsets = [0, 256], sizes = [8, 128], strides = [1, 1]} : vector<8x384xf32> to vector<8x128xf32>
    %430 = arith.addf %429, %290 : vector<8x128xf32>
    %431 = arith.mulf %419, %430 : vector<8x128xf32>
    %432 = arith.addf %428, %431 : vector<8x128xf32>
    %433 = math.tanh %432 : vector<8x128xf32>
    %434 = arith.subf %407, %433 : vector<8x128xf32>
    %435 = arith.mulf %427, %434 : vector<8x128xf32>
    %436 = arith.addf %433, %435 : vector<8x128xf32>
    %c5_i32_116 = arith.constant 5 : i32
    %437 = arith.index_cast %c5_i32_116 : i32 to index
    %c0_117 = arith.constant 0 : index
    %c0_118 = arith.constant 0 : index
    %438 = vector.load %arg13[%437, %c0_117, %c0_118] : memref<8x8x384xf32, #tpu.memory_space<vmem>>, vector<1x8x384xf32>
    %439 = vector.shape_cast %438 : vector<1x8x384xf32> to vector<8x384xf32>
    %cst_119 = arith.constant dense<0.000000e+00> : vector<8x384xf32>
    %440 = tpu.matmul %436, %287, %cst_119 {dimension_numbers = #tpu.dot_dimension_numbers<[1], [0], [0], [1], [0, 0, 1, 1], [], []>} : vector<8x128xf32>, vector<128x384xf32>, vector<8x384xf32> -> vector<8x384xf32>
    %441 = vector.extract_strided_slice %439 {offsets = [0, 0], sizes = [8, 128], strides = [1, 1]} : vector<8x384xf32> to vector<8x128xf32>
    %442 = vector.extract_strided_slice %440 {offsets = [0, 0], sizes = [8, 128], strides = [1, 1]} : vector<8x384xf32> to vector<8x128xf32>
    %443 = arith.addf %441, %442 : vector<8x128xf32>
    %444 = arith.negf %443 : vector<8x128xf32>
    %445 = math.exp %444 : vector<8x128xf32>
    %cst_120 = arith.constant 1.000000e+00 : f32
    %446 = vector.broadcast %cst_120 : f32 to vector<8x128xf32>
    %447 = arith.addf %446, %445 : vector<8x128xf32>
    %448 = arith.divf %446, %447 : vector<8x128xf32>
    %449 = vector.extract_strided_slice %439 {offsets = [0, 128], sizes = [8, 128], strides = [1, 1]} : vector<8x384xf32> to vector<8x128xf32>
    %450 = vector.extract_strided_slice %440 {offsets = [0, 128], sizes = [8, 128], strides = [1, 1]} : vector<8x384xf32> to vector<8x128xf32>
    %451 = arith.addf %449, %450 : vector<8x128xf32>
    %452 = arith.negf %451 : vector<8x128xf32>
    %453 = math.exp %452 : vector<8x128xf32>
    %cst_121 = arith.constant 1.000000e+00 : f32
    %454 = vector.broadcast %cst_121 : f32 to vector<8x128xf32>
    %455 = arith.addf %454, %453 : vector<8x128xf32>
    %456 = arith.divf %454, %455 : vector<8x128xf32>
    %457 = vector.extract_strided_slice %439 {offsets = [0, 256], sizes = [8, 128], strides = [1, 1]} : vector<8x384xf32> to vector<8x128xf32>
    %458 = vector.extract_strided_slice %440 {offsets = [0, 256], sizes = [8, 128], strides = [1, 1]} : vector<8x384xf32> to vector<8x128xf32>
    %459 = arith.addf %458, %290 : vector<8x128xf32>
    %460 = arith.mulf %448, %459 : vector<8x128xf32>
    %461 = arith.addf %457, %460 : vector<8x128xf32>
    %462 = math.tanh %461 : vector<8x128xf32>
    %463 = arith.subf %436, %462 : vector<8x128xf32>
    %464 = arith.mulf %456, %463 : vector<8x128xf32>
    %465 = arith.addf %462, %464 : vector<8x128xf32>
    %c6_i32_122 = arith.constant 6 : i32
    %466 = arith.index_cast %c6_i32_122 : i32 to index
    %c0_123 = arith.constant 0 : index
    %c0_124 = arith.constant 0 : index
    %467 = vector.load %arg13[%466, %c0_123, %c0_124] : memref<8x8x384xf32, #tpu.memory_space<vmem>>, vector<1x8x384xf32>
    %468 = vector.shape_cast %467 : vector<1x8x384xf32> to vector<8x384xf32>
    %cst_125 = arith.constant dense<0.000000e+00> : vector<8x384xf32>
    %469 = tpu.matmul %465, %287, %cst_125 {dimension_numbers = #tpu.dot_dimension_numbers<[1], [0], [0], [1], [0, 0, 1, 1], [], []>} : vector<8x128xf32>, vector<128x384xf32>, vector<8x384xf32> -> vector<8x384xf32>
    %470 = vector.extract_strided_slice %468 {offsets = [0, 0], sizes = [8, 128], strides = [1, 1]} : vector<8x384xf32> to vector<8x128xf32>
    %471 = vector.extract_strided_slice %469 {offsets = [0, 0], sizes = [8, 128], strides = [1, 1]} : vector<8x384xf32> to vector<8x128xf32>
    %472 = arith.addf %470, %471 : vector<8x128xf32>
    %473 = arith.negf %472 : vector<8x128xf32>
    %474 = math.exp %473 : vector<8x128xf32>
    %cst_126 = arith.constant 1.000000e+00 : f32
    %475 = vector.broadcast %cst_126 : f32 to vector<8x128xf32>
    %476 = arith.addf %475, %474 : vector<8x128xf32>
    %477 = arith.divf %475, %476 : vector<8x128xf32>
    %478 = vector.extract_strided_slice %468 {offsets = [0, 128], sizes = [8, 128], strides = [1, 1]} : vector<8x384xf32> to vector<8x128xf32>
    %479 = vector.extract_strided_slice %469 {offsets = [0, 128], sizes = [8, 128], strides = [1, 1]} : vector<8x384xf32> to vector<8x128xf32>
    %480 = arith.addf %478, %479 : vector<8x128xf32>
    %481 = arith.negf %480 : vector<8x128xf32>
    %482 = math.exp %481 : vector<8x128xf32>
    %cst_127 = arith.constant 1.000000e+00 : f32
    %483 = vector.broadcast %cst_127 : f32 to vector<8x128xf32>
    %484 = arith.addf %483, %482 : vector<8x128xf32>
    %485 = arith.divf %483, %484 : vector<8x128xf32>
    %486 = vector.extract_strided_slice %468 {offsets = [0, 256], sizes = [8, 128], strides = [1, 1]} : vector<8x384xf32> to vector<8x128xf32>
    %487 = vector.extract_strided_slice %469 {offsets = [0, 256], sizes = [8, 128], strides = [1, 1]} : vector<8x384xf32> to vector<8x128xf32>
    %488 = arith.addf %487, %290 : vector<8x128xf32>
    %489 = arith.mulf %477, %488 : vector<8x128xf32>
    %490 = arith.addf %486, %489 : vector<8x128xf32>
    %491 = math.tanh %490 : vector<8x128xf32>
    %492 = arith.subf %465, %491 : vector<8x128xf32>
    %493 = arith.mulf %485, %492 : vector<8x128xf32>
    %494 = arith.addf %491, %493 : vector<8x128xf32>
    %c7_i32_128 = arith.constant 7 : i32
    %495 = arith.index_cast %c7_i32_128 : i32 to index
    %c0_129 = arith.constant 0 : index
    %c0_130 = arith.constant 0 : index
    %496 = vector.load %arg13[%495, %c0_129, %c0_130] : memref<8x8x384xf32, #tpu.memory_space<vmem>>, vector<1x8x384xf32>
    %497 = vector.shape_cast %496 : vector<1x8x384xf32> to vector<8x384xf32>
    %cst_131 = arith.constant dense<0.000000e+00> : vector<8x384xf32>
    %498 = tpu.matmul %494, %287, %cst_131 {dimension_numbers = #tpu.dot_dimension_numbers<[1], [0], [0], [1], [0, 0, 1, 1], [], []>} : vector<8x128xf32>, vector<128x384xf32>, vector<8x384xf32> -> vector<8x384xf32>
    %499 = vector.extract_strided_slice %497 {offsets = [0, 0], sizes = [8, 128], strides = [1, 1]} : vector<8x384xf32> to vector<8x128xf32>
    %500 = vector.extract_strided_slice %498 {offsets = [0, 0], sizes = [8, 128], strides = [1, 1]} : vector<8x384xf32> to vector<8x128xf32>
    %501 = arith.addf %499, %500 : vector<8x128xf32>
    %502 = arith.negf %501 : vector<8x128xf32>
    %503 = math.exp %502 : vector<8x128xf32>
    %cst_132 = arith.constant 1.000000e+00 : f32
    %504 = vector.broadcast %cst_132 : f32 to vector<8x128xf32>
    %505 = arith.addf %504, %503 : vector<8x128xf32>
    %506 = arith.divf %504, %505 : vector<8x128xf32>
    %507 = vector.extract_strided_slice %497 {offsets = [0, 128], sizes = [8, 128], strides = [1, 1]} : vector<8x384xf32> to vector<8x128xf32>
    %508 = vector.extract_strided_slice %498 {offsets = [0, 128], sizes = [8, 128], strides = [1, 1]} : vector<8x384xf32> to vector<8x128xf32>
    %509 = arith.addf %507, %508 : vector<8x128xf32>
    %510 = arith.negf %509 : vector<8x128xf32>
    %511 = math.exp %510 : vector<8x128xf32>
    %cst_133 = arith.constant 1.000000e+00 : f32
    %512 = vector.broadcast %cst_133 : f32 to vector<8x128xf32>
    %513 = arith.addf %512, %511 : vector<8x128xf32>
    %514 = arith.divf %512, %513 : vector<8x128xf32>
    %515 = vector.extract_strided_slice %497 {offsets = [0, 256], sizes = [8, 128], strides = [1, 1]} : vector<8x384xf32> to vector<8x128xf32>
    %516 = vector.extract_strided_slice %498 {offsets = [0, 256], sizes = [8, 128], strides = [1, 1]} : vector<8x384xf32> to vector<8x128xf32>
    %517 = arith.addf %516, %290 : vector<8x128xf32>
    %518 = arith.mulf %506, %517 : vector<8x128xf32>
    %519 = arith.addf %515, %518 : vector<8x128xf32>
    %520 = math.tanh %519 : vector<8x128xf32>
    %521 = arith.subf %494, %520 : vector<8x128xf32>
    %522 = arith.mulf %514, %521 : vector<8x128xf32>
    %523 = arith.addf %520, %522 : vector<8x128xf32>
    %c8_i32_134 = arith.constant 8 : i32
    %c0_135 = arith.constant 0 : index
    %c0_136 = arith.constant 0 : index
    %524 = vector.load %arg10[%c0_135, %c0_136] : memref<128x128xf32, #tpu.memory_space<vmem>>, vector<128x128xf32>
    %cst_137 = arith.constant dense<0.000000e+00> : vector<8x128xf32>
    %525 = tpu.matmul %523, %524, %cst_137 {dimension_numbers = #tpu.dot_dimension_numbers<[1], [0], [0], [1], [0, 0, 1, 1], [], []>} : vector<8x128xf32>, vector<128x128xf32>, vector<8x128xf32> -> vector<8x128xf32>
    %c0_138 = arith.constant 0 : index
    %c0_139 = arith.constant 0 : index
    %526 = vector.load %arg11[%c0_138, %c0_139] : memref<1x128xf32, #tpu.memory_space<vmem>>, vector<1x128xf32>
    %527 = vector.broadcast %526 : vector<1x128xf32> to vector<8x128xf32>
    %528 = arith.addf %525, %527 : vector<8x128xf32>
    %c0_140 = arith.constant 0 : index
    %c0_141 = arith.constant 0 : index
    %529 = vector.load %arg12[%c0_140, %c0_141] : memref<8x128xf32, #tpu.memory_space<vmem>>, vector<8x128xf32>
    tpu.vector_store %arg12[%c0_140, %c0_141], %528 {strides = array<i32>} : memref<8x128xf32, #tpu.memory_space<vmem>>, vector<8x128xf32>,
    return
  }
  func.func @transform_0(%arg0: i32) -> (i32, i32, i32) {
    %c0_i32 = arith.constant 0 : i32
    %c0_i32_0 = arith.constant 0 : i32
    %c0_i32_1 = arith.constant 0 : i32
    return %c0_i32, %arg0, %c0_i32_0 : i32, i32, i32
  }
  func.func @transform_1(%arg0: i32) -> (i32, i32) {
    %c0_i32 = arith.constant 0 : i32
    %c0_i32_0 = arith.constant 0 : i32
    %c0_i32_1 = arith.constant 0 : i32
    return %c0_i32, %c0_i32_0 : i32, i32
  }
  func.func @transform_2(%arg0: i32) -> (i32, i32) {
    %c0_i32 = arith.constant 0 : i32
    %c0_i32_0 = arith.constant 0 : i32
    %c0_i32_1 = arith.constant 0 : i32
    return %c0_i32, %c0_i32_0 : i32, i32
  }
  func.func @transform_3(%arg0: i32) -> (i32, i32) {
    %c0_i32 = arith.constant 0 : i32
    %c0_i32_0 = arith.constant 0 : i32
    %c0_i32_1 = arith.constant 0 : i32
    return %c0_i32, %c0_i32_0 : i32, i32
  }
  func.func @transform_4(%arg0: i32) -> (i32, i32) {
    %c0_i32 = arith.constant 0 : i32
    %c0_i32_0 = arith.constant 0 : i32
    %c0_i32_1 = arith.constant 0 : i32
    return %c0_i32, %c0_i32_0 : i32, i32
  }
  func.func @transform_5(%arg0: i32) -> (i32, i32) {
    %c0_i32 = arith.constant 0 : i32
    %c0_i32_0 = arith.constant 0 : i32
    %c0_i32_1 = arith.constant 0 : i32
    return %c0_i32, %c0_i32_0 : i32, i32
  }
  func.func @transform_6(%arg0: i32) -> (i32, i32) {
    %c0_i32 = arith.constant 0 : i32
    %c0_i32_0 = arith.constant 0 : i32
    %c0_i32_1 = arith.constant 0 : i32
    return %c0_i32, %c0_i32_0 : i32, i32
  }
  func.func @transform_7(%arg0: i32) -> (i32, i32) {
    %c0_i32 = arith.constant 0 : i32
    %c0_i32_0 = arith.constant 0 : i32
    %c0_i32_1 = arith.constant 0 : i32
    return %c0_i32, %c0_i32_0 : i32, i32
  }
  func.func @transform_8(%arg0: i32) -> (i32, i32) {
    %c0_i32 = arith.constant 0 : i32
    %c0_i32_0 = arith.constant 0 : i32
    %c0_i32_1 = arith.constant 0 : i32
    return %c0_i32, %c0_i32_0 : i32, i32
  }
  func.func @transform_9(%arg0: i32) -> (i32, i32) {
    %c0_i32 = arith.constant 0 : i32
    %c0_i32_0 = arith.constant 0 : i32
    %c0_i32_1 = arith.constant 0 : i32
    return %c0_i32, %c0_i32_0 : i32, i32
  }
  func.func @transform_10(%arg0: i32) -> (i32, i32) {
    %c0_i32 = arith.constant 0 : i32
    %c0_i32_0 = arith.constant 0 : i32
    %c0_i32_1 = arith.constant 0 : i32
    return %c0_i32, %c0_i32_0 : i32, i32
  }
  func.func @transform_11(%arg0: i32) -> (i32, i32) {
    %c0_i32 = arith.constant 0 : i32
    %c0_i32_0 = arith.constant 0 : i32
    return %arg0, %c0_i32 : i32, i32
  }
}

</mosaic_0001>

<llo_original>
// kernel: gru_model_forward.1
$region0: #{gru_model_forward.1}
  #allocation0 [shape = 'u32[]', space=smem, size = 0x4, offset = 0x4, fixed_abs, tag = 'smem constant byte address 0x4 - core index']
  #allocation1 [shape = 'u32[144,128]{1,0:T(1,128)}', space=vmem, size = 0x12000, scoped, tag = 'internal scratch']
  #allocation2 [shape = 'f32[8,8,384]{2,1,0:T(8,128)}', space=vmem, size = 0x18000, scoped, tag = 'scratch operand']
  #allocation3 [shape = 'f32[8,8,128]{2,1,0:T(8,128)}', space=vmem, size = 0x8000, scoped, tag = 'scratch operand']
  %s0 = inlined_call_operand.vmem [shape: f32[8,8,16], index: 0, kind: input, shape index: {}]
  %s1 = inlined_call_operand.vmem [shape: f32[16,384], index: 1, kind: input, shape index: {}]
  %s2 = inlined_call_operand.vmem [shape: f32[128,384], index: 2, kind: input, shape index: {}]
  %s3 = inlined_call_operand.vmem [shape: f32[1,384], index: 3, kind: input, shape index: {}]
  %s4 = inlined_call_operand.vmem [shape: f32[1,128], index: 4, kind: input, shape index: {}]
  %s5 = inlined_call_operand.vmem [shape: f32[128,384], index: 5, kind: input, shape index: {}]
  %s6 = inlined_call_operand.vmem [shape: f32[128,384], index: 6, kind: input, shape index: {}]
  %s7 = inlined_call_operand.vmem [shape: f32[1,384], index: 7, kind: input, shape index: {}]
  %s8 = inlined_call_operand.vmem [shape: f32[1,128], index: 8, kind: input, shape index: {}]
  %s9 = inlined_call_operand.vmem [shape: f32[128,128], index: 9, kind: input, shape index: {}]
  %s10 = inlined_call_operand.vmem [shape: f32[1,128], index: 10, kind: input, shape index: {}]
  %s11 = inlined_call_operand.vmem [shape: f32[8,128], index: 11, kind: output, shape index: {}]
  %s12 = sld [smem:[#allocation0]]
  $region54: #{gru_model_forward.1} parent=0
    _
  %s14 = ssub.s32 1, %s12
  %s15 = scalar_select 0, %s14, %s12
  // Predicated region
  $region2: #{gru_model_forward.1} parent=0 // pred_check
    _
  $region3: #{gru_model_forward.1} parent=0 // pred_check_branch
    %17 = sbr.rel (0) target = $region5
  $region4: #{gru_model_forward.1} parent=0 // pred_region
    _
  $region5: #{gru_model_forward.1} parent=0 // pred_fallthru
    _
  // Predicated region
  $region6: #{gru_model_forward.1} parent=0 // pred_check
    _
  $region7: #{gru_model_forward.1} parent=0 // pred_check_branch
    %19 = sbr.rel (0) target = $region9
  $region8: #{gru_model_forward.1} parent=0 // pred_region
    _
  $region9: #{gru_model_forward.1} parent=0 // pred_fallthru
    _
  // Predicated region
  $region10: #{gru_model_forward.1} parent=0 // pred_check
    _
  $region11: #{gru_model_forward.1} parent=0 // pred_check_branch
    %21 = sbr.rel (0) target = $region13
  $region12: #{gru_model_forward.1} parent=0 // pred_region
    _
  $region13: #{gru_model_forward.1} parent=0 // pred_fallthru
    _
  // Predicated region
  $region14: #{gru_model_forward.1} parent=0 // pred_check
    _
  $region15: #{gru_model_forward.1} parent=0 // pred_check_branch
    %23 = sbr.rel (0) target = $region17
  $region16: #{gru_model_forward.1} parent=0 // pred_region
    _
  $region17: #{gru_model_forward.1} parent=0 // pred_fallthru
    _
  // Predicated region
  $region18: #{gru_model_forward.1} parent=0 // pred_check
    _
  $region19: #{gru_model_forward.1} parent=0 // pred_check_branch
    %25 = sbr.rel (0) target = $region21
  $region20: #{gru_model_forward.1} parent=0 // pred_region
    _
  $region21: #{gru_model_forward.1} parent=0 // pred_fallthru
    _
  // Predicated region
  $region22: #{gru_model_forward.1} parent=0 // pred_check
    _
  $region23: #{gru_model_forward.1} parent=0 // pred_check_branch
    %27 = sbr.rel (0) target = $region25
  $region24: #{gru_model_forward.1} parent=0 // pred_region
    _
  $region25: #{gru_model_forward.1} parent=0 // pred_fallthru
    _
  // Predicated region
  $region26: #{gru_model_forward.1} parent=0 // pred_check
    _
  $region27: #{gru_model_forward.1} parent=0 // pred_check_branch
    %29 = sbr.rel (0) target = $region29
  $region28: #{gru_model_forward.1} parent=0 // pred_region
    _
  $region29: #{gru_model_forward.1} parent=0 // pred_fallthru
    _
  // Predicated region
  $region30: #{gru_model_forward.1} parent=0 // pred_check
    _
  $region31: #{gru_model_forward.1} parent=0 // pred_check_branch
    %31 = sbr.rel (0) target = $region33
  $region32: #{gru_model_forward.1} parent=0 // pred_region
    _
  $region33: #{gru_model_forward.1} parent=0 // pred_fallthru
    _
  // Predicated region
  $region34: #{gru_model_forward.1} parent=0 // pred_check
    _
  $region35: #{gru_model_forward.1} parent=0 // pred_check_branch
    %33 = sbr.rel (0) target = $region37
  $region36: #{gru_model_forward.1} parent=0 // pred_region
    _
  $region37: #{gru_model_forward.1} parent=0 // pred_fallthru
    _
  // Predicated region
  $region38: #{gru_model_forward.1} parent=0 // pred_check
    _
  $region39: #{gru_model_forward.1} parent=0 // pred_check_branch
    %35 = sbr.rel (0) target = $region41
  $region40: #{gru_model_forward.1} parent=0 // pred_region
    _
  $region41: #{gru_model_forward.1} parent=0 // pred_fallthru
    _
  // Predicated region
  $region42: #{gru_model_forward.1} parent=0 // pred_check
    _
  $region43: #{gru_model_forward.1} parent=0 // pred_check_branch
    %37 = sbr.rel (0) target = $region45
  $region44: #{gru_model_forward.1} parent=0 // pred_region
    _
  $region45: #{gru_model_forward.1} parent=0 // pred_fallthru
    _
  %v38 = vld [vmem:[%s0] sm:$0xff]
  %v39 = vld [vmem:[%s0 + $0x8] sm:$0xff]
  %v40 = vld [vmem:[%s0 + $0x10] sm:$0xff]
  %v41 = vld [vmem:[%s0 + $0x18] sm:$0xff]
  %v42 = vld [vmem:[%s0 + $0x20] sm:$0xff]
  %v43 = vld [vmem:[%s0 + $0x28] sm:$0xff]
  %v44 = vld [vmem:[%s0 + $0x30] sm:$0xff]
  %v45 = vld [vmem:[%s0 + $0x38] sm:$0xff]
  %v46 = vld [vmem:[%s1] sm:$0xff]
  %v47 = vld [vmem:[%s1 + $0x8] sm:$0xff]
  %v48 = vld [vmem:[%s1 + $0x10] sm:$0xff]
  %v49 = vld [vmem:[%s1 + $0x18] sm:$0xff]
  %v50 = vld [vmem:[%s1 + $0x20] sm:$0xff]
  %v51 = vld [vmem:[%s1 + $0x28] sm:$0xff]
  %v52 = vld [vmem:[%s3] sm:$0x7]
  %v54 = vlaneseq
  %v55 = vshrl.u32 %v54, 7
  %v56 = vsub.s32 0, %v55
  %v57 = vrot.slane %v52, %v56
  %v58 = vlaneseq
  %v59 = vshrl.u32 %v58, 7
  %v60 = vsub.s32 1, %v59
  %v61 = vrot.slane %v52, %v60
  %v62 = vlaneseq
  %v63 = vshrl.u32 %v62, 7
  %v64 = vsub.s32 2, %v63
  %v65 = vrot.slane %v52, %v64
  %vm69 = vcmask 130048
  %v71 = vsel %vm69, %v38, 0
  %v74 = vsel %vm69, %v39, 0
  %v77 = vsel %vm69, %v40, 0
  %v80 = vsel %vm69, %v41, 0
  %v83 = vsel %vm69, %v42, 0
  %v86 = vsel %vm69, %v43, 0
  %v89 = vsel %vm69, %v44, 0
  %v92 = vsel %vm69, %v45, 0
  %94 = vmatprep.subr.mxu0 %v47
  %95 = vmatpush1.msra.mxu0 %v46
  %96 = vmatprep.subr.mxu0 %v50
  %97 = vmatpush1.msra.mxu0 %v49
  %98 = vmatprep.subr.mxu0 0.0
  %99 = vmatpush1.msra.mxu0 0.0
  %100 = vmatprep.subr.mxu0 0.0
  %101 = vmatpush1.msra.mxu0 0.0
  %102 = vmatprep.subr.mxu0 0.0
  %103 = vmatpush1.msra.mxu0 0.0
  %104 = vmatprep.subr.mxu0 0.0
  %105 = vmatpush1.msra.mxu0 0.0
  %106 = vmatprep.subr.mxu0 0.0
  %107 = vmatpush1.msra.mxu0 0.0
  %108 = vmatprep.subr.mxu0 0.0
  %109 = vmatpush1.msra.mxu0 0.0
  %110 = vmatprep.subr.mxu0 0.0
  %111 = vmatpush1.msra.mxu0 0.0
  %112 = vmatprep.subr.mxu0 0.0
  %113 = vmatpush1.msra.mxu0 0.0
  %114 = vmatprep.subr.mxu0 0.0
  %115 = vmatpush1.msra.mxu0 0.0
  %116 = vmatprep.subr.mxu0 0.0
  %117 = vmatpush1.msra.mxu0 0.0
  %118 = vmatprep.subr.mxu0 0.0
  %119 = vmatpush1.msra.mxu0 0.0
  %120 = vmatprep.subr.mxu0 0.0
  %121 = vmatpush1.msra.mxu0 0.0
  %122 = vmatprep.subr.mxu0 0.0
  %123 = vmatpush1.msra.mxu0 0.0
  %124 = vmatprep.subr.mxu0 0.0
  %125 = vmatpush1.msra.mxu0 0.0
  %126 = vmatprep.subr.mxu0 0.0
  %127 = vmatpush1.msra.mxu0 0.0
  %128 = vmatprep.subr.mxu0 0.0
  %129 = vmatpush1.msra.mxu0 0.0
  %130 = vmatprep.subr.mxu0 0.0
  %131 = vmatpush1.msra.mxu0 0.0
  %132 = vmatprep.subr.mxu0 0.0
  %133 = vmatpush1.msra.mxu0 0.0
  %134 = vmatprep.subr.mxu0 0.0
  %135 = vmatpush1.msra.mxu0 0.0
  %136 = vmatprep.subr.mxu0 0.0
  %137 = vmatpush1.msra.mxu0 0.0
  %138 = vmatprep.subr.mxu0 0.0
  %139 = vmatpush1.msra.mxu0 0.0
  %140 = vmatprep.subr.mxu0 0.0
  %141 = vmatpush1.msra.mxu0 0.0
  %142 = vmatprep.subr.mxu0 0.0
  %143 = vmatpush1.msra.mxu0 0.0
  %144 = vmatprep.subr.mxu0 0.0
  %145 = vmatpush1.msra.mxu0 0.0
  %146 = vmatprep.subr.mxu0 0.0
  %147 = vmatpush1.msra.mxu0 0.0
  %148 = vmatprep.subr.mxu0 0.0
  %149 = vmatpush1.msra.mxu0 0.0
  %150 = vmatprep.subr.mxu0 0.0
  %151 = vmatpush1.msra.mxu0 0.0
  %152 = vmatprep.subr.mxu0 0.0
  %153 = vmatpush1.msra.mxu0 0.0
  %154 = vmatprep.subr.mxu0 0.0
  %155 = vmatpush1.msra.mxu0 0.0
  %156 = vmatprep.subr.mxu0 0.0
  %157 = vmatpush1.msra.mxu0 0.0
  %158 = vmatprep.mubr.f32.mxu0 0.0
  %159 = vmatmul.mubr.f32.gmra.mrb[0].mxu0 %v71
  %v160 = vpop.f32.mrb[0].mxu0
  %v161 = vadd.f32 %v57, %v160
  %v162 = vpop.f32.mrb[0].mxu0
  %v163 = vadd.f32 %v61, %v162
  %164 = vmatprep.mubr.f32.mxu0 0.0
  %165 = vmatmul.mubr.f32.gmra.mrb[0].mxu0 %v74
  %v166 = vpop.f32.mrb[0].mxu0
  %v167 = vadd.f32 %v57, %v166
  %v168 = vpop.f32.mrb[0].mxu0
  %v169 = vadd.f32 %v61, %v168
  %170 = vmatprep.mubr.f32.mxu0 0.0
  %171 = vmatmul.mubr.f32.gmra.mrb[0].mxu0 %v77
  %v172 = vpop.f32.mrb[0].mxu0
  %v173 = vadd.f32 %v57, %v172
  %v174 = vpop.f32.mrb[0].mxu0
  %v175 = vadd.f32 %v61, %v174
  %176 = vmatprep.mubr.f32.mxu0 0.0
  %177 = vmatmul.mubr.f32.gmra.mrb[0].mxu0 %v80
  %v178 = vpop.f32.mrb[0].mxu0
  %v179 = vadd.f32 %v57, %v178
  %v180 = vpop.f32.mrb[0].mxu0
  %v181 = vadd.f32 %v61, %v180
  %182 = vmatprep.mubr.f32.mxu0 0.0
  %183 = vmatmul.mubr.f32.gmra.mrb[0].mxu0 %v83
  %v184 = vpop.f32.mrb[0].mxu0
  %v185 = vadd.f32 %v57, %v184
  %v186 = vpop.f32.mrb[0].mxu0
  %v187 = vadd.f32 %v61, %v186
  %188 = vmatprep.mubr.f32.mxu0 0.0
  %189 = vmatmul.mubr.f32.gmra.mrb[0].mxu0 %v86
  %v190 = vpop.f32.mrb[0].mxu0
  %v191 = vadd.f32 %v57, %v190
  %v192 = vpop.f32.mrb[0].mxu0
  %v193 = vadd.f32 %v61, %v192
  %194 = vmatprep.mubr.f32.mxu0 0.0
  %195 = vmatmul.mubr.f32.gmra.mrb[0].mxu0 %v89
  %v196 = vpop.f32.mrb[0].mxu0
  %v197 = vadd.f32 %v57, %v196
  %v198 = vpop.f32.mrb[0].mxu0
  %v199 = vadd.f32 %v61, %v198
  %200 = vmatprep.mubr.f32.mxu0 0.0
  %201 = vmatmul.mubr.f32.gmra.mrb[0].mxu0 %v92
  %v202 = vpop.f32.mrb[0].mxu0
  %v203 = vadd.f32 %v57, %v202
  %v204 = vpop.f32.mrb[0].mxu0
  %v205 = vadd.f32 %v61, %v204
  %206 = vdwg.mxu0
  %207 = vmatprep.subr.mxu0 0.0
  %208 = vmatpush1.msra.mxu0 %v48
  %209 = vmatprep.subr.mxu0 0.0
  %210 = vmatpush1.msra.mxu0 %v51
  %211 = vmatprep.subr.mxu0 0.0
  %212 = vmatpush1.msra.mxu0 0.0
  %213 = vmatprep.subr.mxu0 0.0
  %214 = vmatpush1.msra.mxu0 0.0
  %215 = vmatprep.subr.mxu0 0.0
  %216 = vmatpush1.msra.mxu0 0.0
  %217 = vmatprep.subr.mxu0 0.0
  %218 = vmatpush1.msra.mxu0 0.0
  %219 = vmatprep.subr.mxu0 0.0
  %220 = vmatpush1.msra.mxu0 0.0
  %221 = vmatprep.subr.mxu0 0.0
  %222 = vmatpush1.msra.mxu0 0.0
  %223 = vmatprep.subr.mxu0 0.0
  %224 = vmatpush1.msra.mxu0 0.0
  %225 = vmatprep.subr.mxu0 0.0
  %226 = vmatpush1.msra.mxu0 0.0
  %227 = vmatprep.subr.mxu0 0.0
  %228 = vmatpush1.msra.mxu0 0.0
  %229 = vmatprep.subr.mxu0 0.0
  %230 = vmatpush1.msra.mxu0 0.0
  %231 = vmatprep.subr.mxu0 0.0
  %232 = vmatpush1.msra.mxu0 0.0
  %233 = vmatprep.subr.mxu0 0.0
  %234 = vmatpush1.msra.mxu0 0.0
  %235 = vmatprep.subr.mxu0 0.0
  %236 = vmatpush1.msra.mxu0 0.0
  %237 = vmatprep.subr.mxu0 0.0
  %238 = vmatpush1.msra.mxu0 0.0
  %239 = vmatprep.subr.mxu0 0.0
  %240 = vmatpush1.msra.mxu0 0.0
  %241 = vmatprep.subr.mxu0 0.0
  %242 = vmatpush1.msra.mxu0 0.0
  %243 = vmatprep.subr.mxu0 0.0
  %244 = vmatpush1.msra.mxu0 0.0
  %245 = vmatprep.subr.mxu0 0.0
  %246 = vmatpush1.msra.mxu0 0.0
  %247 = vmatprep.subr.mxu0 0.0
  %248 = vmatpush1.msra.mxu0 0.0
  %249 = vmatprep.subr.mxu0 0.0
  %250 = vmatpush1.msra.mxu0 0.0
  %251 = vmatprep.subr.mxu0 0.0
  %252 = vmatpush1.msra.mxu0 0.0
  %253 = vmatprep.subr.mxu0 0.0
  %254 = vmatpush1.msra.mxu0 0.0
  %255 = vmatprep.subr.mxu0 0.0
  %256 = vmatpush1.msra.mxu0 0.0
  %257 = vmatprep.subr.mxu0 0.0
  %258 = vmatpush1.msra.mxu0 0.0
  %259 = vmatprep.subr.mxu0 0.0
  %260 = vmatpush1.msra.mxu0 0.0
  %261 = vmatprep.subr.mxu0 0.0
  %262 = vmatpush1.msra.mxu0 0.0
  %263 = vmatprep.subr.mxu0 0.0
  %264 = vmatpush1.msra.mxu0 0.0
  %265 = vmatprep.subr.mxu0 0.0
  %266 = vmatpush1.msra.mxu0 0.0
  %267 = vmatprep.subr.mxu0 0.0
  %268 = vmatpush1.msra.mxu0 0.0
  %269 = vmatprep.subr.mxu0 0.0
  %270 = vmatpush1.msra.mxu0 0.0
  %271 = vmatprep.mubr.f32.mxu0 0.0
  %272 = vmatmul.mubr.f32.gmra.mrb[0].mxu0 %v71
  %v273 = vpop.f32.mrb[0].mxu0
  %v274 = vadd.f32 %v65, %v273
  %v275 = vpop.f32.mrb[0].mxu0
  %276 = vmatprep.mubr.f32.mxu0 0.0
  %277 = vmatmul.mubr.f32.gmra.mrb[0].mxu0 %v74
  %v278 = vpop.f32.mrb[0].mxu0
  %v279 = vadd.f32 %v65, %v278
  %v280 = vpop.f32.mrb[0].mxu0
  %281 = vmatprep.mubr.f32.mxu0 0.0
  %282 = vmatmul.mubr.f32.gmra.mrb[0].mxu0 %v77
  %v283 = vpop.f32.mrb[0].mxu0
  %v284 = vadd.f32 %v65, %v283
  %v285 = vpop.f32.mrb[0].mxu0
  %286 = vmatprep.mubr.f32.mxu0 0.0
  %287 = vmatmul.mubr.f32.gmra.mrb[0].mxu0 %v80
  %v288 = vpop.f32.mrb[0].mxu0
  %v289 = vadd.f32 %v65, %v288
  %v290 = vpop.f32.mrb[0].mxu0
  %291 = vmatprep.mubr.f32.mxu0 0.0
  %292 = vmatmul.mubr.f32.gmra.mrb[0].mxu0 %v83
  %v293 = vpop.f32.mrb[0].mxu0
  %v294 = vadd.f32 %v65, %v293
  %v295 = vpop.f32.mrb[0].mxu0
  %296 = vmatprep.mubr.f32.mxu0 0.0
  %297 = vmatmul.mubr.f32.gmra.mrb[0].mxu0 %v86
  %v298 = vpop.f32.mrb[0].mxu0
  %v299 = vadd.f32 %v65, %v298
  %v300 = vpop.f32.mrb[0].mxu0
  %301 = vmatprep.mubr.f32.mxu0 0.0
  %302 = vmatmul.mubr.f32.gmra.mrb[0].mxu0 %v89
  %v303 = vpop.f32.mrb[0].mxu0
  %v304 = vadd.f32 %v65, %v303
  %v305 = vpop.f32.mrb[0].mxu0
  %306 = vmatprep.mubr.f32.mxu0 0.0
  %307 = vmatmul.mubr.f32.gmra.mrb[0].mxu0 %v92
  %v308 = vpop.f32.mrb[0].mxu0
  %v309 = vadd.f32 %v65, %v308
  %v310 = vpop.f32.mrb[0].mxu0
  %311 = vdwg.mxu0
  %312 = vst [vmem:[#allocation2] sm:$0xff] %v161
  %313 = vst [vmem:[#allocation2 + $0x8] sm:$0xff] %v163
  %314 = vst [vmem:[#allocation2 + $0x10] sm:$0xff] %v274
  %315 = vst [vmem:[#allocation2 + $0x18] sm:$0xff] %v167
  %316 = vst [vmem:[#allocation2 + $0x20] sm:$0xff] %v169
  %317 = vst [vmem:[#allocation2 + $0x28] sm:$0xff] %v279
  %318 = vst [vmem:[#allocation2 + $0x30] sm:$0xff] %v173
  %319 = vst [vmem:[#allocation2 + $0x38] sm:$0xff] %v175
  %320 = vst [vmem:[#allocation2 + $0x40] sm:$0xff] %v284
  %321 = vst [vmem:[#allocation2 + $0x48] sm:$0xff] %v179
  %322 = vst [vmem:[#allocation2 + $0x50] sm:$0xff] %v181
  %323 = vst [vmem:[#allocation2 + $0x58] sm:$0xff] %v289
  %324 = vst [vmem:[#allocation2 + $0x60] sm:$0xff] %v185
  %325 = vst [vmem:[#allocation2 + $0x68] sm:$0xff] %v187
  %326 = vst [vmem:[#allocation2 + $0x70] sm:$0xff] %v294
  %327 = vst [vmem:[#allocation2 + $0x78] sm:$0xff] %v191
  %328 = vst [vmem:[#allocation2 + $0x80] sm:$0xff] %v193
  %329 = vst [vmem:[#allocation2 + $0x88] sm:$0xff] %v299
  %330 = vst [vmem:[#allocation2 + $0x90] sm:$0xff] %v197
  %331 = vst [vmem:[#allocation2 + $0x98] sm:$0xff] %v199
  %332 = vst [vmem:[#allocation2 + $0xa0] sm:$0xff] %v304
  %333 = vst [vmem:[#allocation2 + $0xa8] sm:$0xff] %v203
  %334 = vst [vmem:[#allocation2 + $0xb0] sm:$0xff] %v205
  %335 = vst [vmem:[#allocation2 + $0xb8] sm:$0xff] %v309
  %v336 = vld [vmem:[%s2] sm:$0xff]
  %v337 = vld [vmem:[%s2 + $0x8] sm:$0xff]
  %v338 = vld [vmem:[%s2 + $0x10] sm:$0xff]
  %v339 = vld [vmem:[%s2 + $0x18] sm:$0xff]
  %v340 = vld [vmem:[%s2 + $0x20] sm:$0xff]
  %v341 = vld [vmem:[%s2 + $0x28] sm:$0xff]
  %v342 = vld [vmem:[%s2 + $0x30] sm:$0xff]
  %v343 = vld [vmem:[%s2 + $0x38] sm:$0xff]
  %v344 = vld [vmem:[%s2 + $0x40] sm:$0xff]
  %v345 = vld [vmem:[%s2 + $0x48] sm:$0xff]
  %v346 = vld [vmem:[%s2 + $0x50] sm:$0xff]
  %v347 = vld [vmem:[%s2 + $0x58] sm:$0xff]
  %v348 = vld [vmem:[%s2 + $0x60] sm:$0xff]
  %v349 = vld [vmem:[%s2 + $0x68] sm:$0xff]
  %v350 = vld [vmem:[%s2 + $0x70] sm:$0xff]
  %v351 = vld [vmem:[%s2 + $0x78] sm:$0xff]
  %v352 = vld [vmem:[%s2 + $0x80] sm:$0xff]
  %v353 = vld [vmem:[%s2 + $0x88] sm:$0xff]
  %v354 = vld [vmem:[%s2 + $0x90] sm:$0xff]
  %v355 = vld [vmem:[%s2 + $0x98] sm:$0xff]
  %v356 = vld [vmem:[%s2 + $0xa0] sm:$0xff]
  %v357 = vld [vmem:[%s2 + $0xa8] sm:$0xff]
  %v358 = vld [vmem:[%s2 + $0xb0] sm:$0xff]
  %v359 = vld [vmem:[%s2 + $0xb8] sm:$0xff]
  %v360 = vld [vmem:[%s2 + $0xc0] sm:$0xff]
  %v361 = vld [vmem:[%s2 + $0xc8] sm:$0xff]
  %v362 = vld [vmem:[%s2 + $0xd0] sm:$0xff]
  %v363 = vld [vmem:[%s2 + $0xd8] sm:$0xff]
  %v364 = vld [vmem:[%s2 + $0xe0] sm:$0xff]
  %v365 = vld [vmem:[%s2 + $0xe8] sm:$0xff]
  %v366 = vld [vmem:[%s2 + $0xf0] sm:$0xff]
  %v367 = vld [vmem:[%s2 + $0xf8] sm:$0xff]
  %v368 = vld [vmem:[%s2 + $0x100] sm:$0xff]
  %v369 = vld [vmem:[%s2 + $0x108] sm:$0xff]
  %v370 = vld [vmem:[%s2 + $0x110] sm:$0xff]
  %v371 = vld [vmem:[%s2 + $0x118] sm:$0xff]
  %v372 = vld [vmem:[%s2 + $0x120] sm:$0xff]
  %v373 = vld [vmem:[%s2 + $0x128] sm:$0xff]
  %v374 = vld [vmem:[%s2 + $0x130] sm:$0xff]
  %v375 = vld [vmem:[%s2 + $0x138] sm:$0xff]
  %v376 = vld [vmem:[%s2 + $0x140] sm:$0xff]
  %v377 = vld [vmem:[%s2 + $0x148] sm:$0xff]
  %v378 = vld [vmem:[%s2 + $0x150] sm:$0xff]
  %v379 = vld [vmem:[%s2 + $0x158] sm:$0xff]
  %v380 = vld [vmem:[%s2 + $0x160] sm:$0xff]
  %v381 = vld [vmem:[%s2 + $0x168] sm:$0xff]
  %v382 = vld [vmem:[%s2 + $0x170] sm:$0xff]
  %v383 = vld [vmem:[%s2 + $0x178] sm:$0xff]
  %v384 = vld [vmem:[%s4] sm:$0x1]
  %v386 = vlaneseq
  %v387 = vshrl.u32 %v386, 7
  %v388 = vsub.s32 0, %v387
  %v389 = vrot.slane %v384, %v388
  %v391 = vld [vmem:[#allocation2] sm:$0xff]
  %v392 = vld [vmem:[#allocation2 + $0x8] sm:$0xff]
  %v393 = vld [vmem:[#allocation2 + $0x10] sm:$0xff]
  %394 = vmatprep.subr.mxu0 %v337
  %395 = vmatpush1.msra.mxu0 %v336
  %396 = vmatprep.subr.mxu0 %v340
  %397 = vmatpush1.msra.mxu0 %v339
  %398 = vmatprep.subr.mxu0 %v343
  %399 = vmatpush1.msra.mxu0 %v342
  %400 = vmatprep.subr.mxu0 %v346
  %401 = vmatpush1.msra.mxu0 %v345
  %402 = vmatprep.subr.mxu0 %v349
  %403 = vmatpush1.msra.mxu0 %v348
  %404 = vmatprep.subr.mxu0 %v352
  %405 = vmatpush1.msra.mxu0 %v351
  %406 = vmatprep.subr.mxu0 %v355
  %407 = vmatpush1.msra.mxu0 %v354
  %408 = vmatprep.subr.mxu0 %v358
  %409 = vmatpush1.msra.mxu0 %v357
  %410 = vmatprep.subr.mxu0 %v361
  %411 = vmatpush1.msra.mxu0 %v360
  %412 = vmatprep.subr.mxu0 %v364
  %413 = vmatpush1.msra.mxu0 %v363
  %414 = vmatprep.subr.mxu0 %v367
  %415 = vmatpush1.msra.mxu0 %v366
  %416 = vmatprep.subr.mxu0 %v370
  %417 = vmatpush1.msra.mxu0 %v369
  %418 = vmatprep.subr.mxu0 %v373
  %419 = vmatpush1.msra.mxu0 %v372
  %420 = vmatprep.subr.mxu0 %v376
  %421 = vmatpush1.msra.mxu0 %v375
  %422 = vmatprep.subr.mxu0 %v379
  %423 = vmatpush1.msra.mxu0 %v378
  %424 = vmatprep.subr.mxu0 %v382
  %425 = vmatpush1.msra.mxu0 %v381
  %426 = vmatprep.subr.mxu0 0.0
  %427 = vmatpush1.msra.mxu0 0.0
  %428 = vmatprep.subr.mxu0 0.0
  %429 = vmatpush1.msra.mxu0 0.0
  %430 = vmatprep.subr.mxu0 0.0
  %431 = vmatpush1.msra.mxu0 0.0
  %432 = vmatprep.subr.mxu0 0.0
  %433 = vmatpush1.msra.mxu0 0.0
  %434 = vmatprep.subr.mxu0 0.0
  %435 = vmatpush1.msra.mxu0 0.0
  %436 = vmatprep.subr.mxu0 0.0
  %437 = vmatpush1.msra.mxu0 0.0
  %438 = vmatprep.subr.mxu0 0.0
  %439 = vmatpush1.msra.mxu0 0.0
  %440 = vmatprep.subr.mxu0 0.0
  %441 = vmatpush1.msra.mxu0 0.0
  %442 = vmatprep.subr.mxu0 0.0
  %443 = vmatpush1.msra.mxu0 0.0
  %444 = vmatprep.subr.mxu0 0.0
  %445 = vmatpush1.msra.mxu0 0.0
  %446 = vmatprep.subr.mxu0 0.0
  %447 = vmatpush1.msra.mxu0 0.0
  %448 = vmatprep.subr.mxu0 0.0
  %449 = vmatpush1.msra.mxu0 0.0
  %450 = vmatprep.subr.mxu0 0.0
  %451 = vmatpush1.msra.mxu0 0.0
  %452 = vmatprep.subr.mxu0 0.0
  %453 = vmatpush1.msra.mxu0 0.0
  %454 = vmatprep.subr.mxu0 0.0
  %455 = vmatpush1.msra.mxu0 0.0
  %456 = vmatprep.subr.mxu0 0.0
  %457 = vmatpush1.msra.mxu0 0.0
  %458 = vmatprep.mubr.f32.mxu0 0.0
  %459 = vmatmul.mubr.f32.gmra.mrb[0].mxu0 0.0
  %v460 = vpop.f32.mrb[0].mxu0
  %v461 = vadd.f32 0.0, %v460
  %v462 = vpop.f32.mrb[0].mxu0
  %v463 = vadd.f32 0.0, %v462
  %464 = vdwg.mxu0
  %465 = vmatprep.subr.mxu0 0.0
  %466 = vmatpush1.msra.mxu0 %v338
  %467 = vmatprep.subr.mxu0 0.0
  %468 = vmatpush1.msra.mxu0 %v341
  %469 = vmatprep.subr.mxu0 0.0
  %470 = vmatpush1.msra.mxu0 %v344
  %471 = vmatprep.subr.mxu0 0.0
  %472 = vmatpush1.msra.mxu0 %v347
  %473 = vmatprep.subr.mxu0 0.0
  %474 = vmatpush1.msra.mxu0 %v350
  %475 = vmatprep.subr.mxu0 0.0
  %476 = vmatpush1.msra.mxu0 %v353
  %477 = vmatprep.subr.mxu0 0.0
  %478 = vmatpush1.msra.mxu0 %v356
  %479 = vmatprep.subr.mxu0 0.0
  %480 = vmatpush1.msra.mxu0 %v359
  %481 = vmatprep.subr.mxu0 0.0
  %482 = vmatpush1.msra.mxu0 %v362
  %483 = vmatprep.subr.mxu0 0.0
  %484 = vmatpush1.msra.mxu0 %v365
  %485 = vmatprep.subr.mxu0 0.0
  %486 = vmatpush1.msra.mxu0 %v368
  %487 = vmatprep.subr.mxu0 0.0
  %488 = vmatpush1.msra.mxu0 %v371
  %489 = vmatprep.subr.mxu0 0.0
  %490 = vmatpush1.msra.mxu0 %v374
  %491 = vmatprep.subr.mxu0 0.0
  %492 = vmatpush1.msra.mxu0 %v377
  %493 = vmatprep.subr.mxu0 0.0
  %494 = vmatpush1.msra.mxu0 %v380
  %495 = vmatprep.subr.mxu0 0.0
  %496 = vmatpush1.msra.mxu0 %v383
  %497 = vmatprep.subr.mxu0 0.0
  %498 = vmatpush1.msra.mxu0 0.0
  %499 = vmatprep.subr.mxu0 0.0
  %500 = vmatpush1.msra.mxu0 0.0
  %501 = vmatprep.subr.mxu0 0.0
  %502 = vmatpush1.msra.mxu0 0.0
  %503 = vmatprep.subr.mxu0 0.0
  %504 = vmatpush1.msra.mxu0 0.0
  %505 = vmatprep.subr.mxu0 0.0
  %506 = vmatpush1.msra.mxu0 0.0
  %507 = vmatprep.subr.mxu0 0.0
  %508 = vmatpush1.msra.mxu0 0.0
  %509 = vmatprep.subr.mxu0 0.0
  %510 = vmatpush1.msra.mxu0 0.0
  %511 = vmatprep.subr.mxu0 0.0
  %512 = vmatpush1.msra.mxu0 0.0
  %513 = vmatprep.subr.mxu0 0.0
  %514 = vmatpush1.msra.mxu0 0.0
  %515 = vmatprep.subr.mxu0 0.0
  %516 = vmatpush1.msra.mxu0 0.0
  %517 = vmatprep.subr.mxu0 0.0
  %518 = vmatpush1.msra.mxu0 0.0
  %519 = vmatprep.subr.mxu0 0.0
  %520 = vmatpush1.msra.mxu0 0.0
  %521 = vmatprep.subr.mxu0 0.0
  %522 = vmatpush1.msra.mxu0 0.0
  %523 = vmatprep.subr.mxu0 0.0
  %524 = vmatpush1.msra.mxu0 0.0
  %525 = vmatprep.subr.mxu0 0.0
  %526 = vmatpush1.msra.mxu0 0.0
  %527 = vmatprep.subr.mxu0 0.0
  %528 = vmatpush1.msra.mxu0 0.0
  %529 = vmatprep.mubr.f32.mxu0 0.0
  %530 = vmatmul.mubr.f32.gmra.mrb[0].mxu0 0.0
  %v531 = vpop.f32.mrb[0].mxu0
  %v532 = vadd.f32 0.0, %v531
  %v533 = vpop.f32.mrb[0].mxu0
  %534 = vdwg.mxu0
  %v535 = vadd.f32 %v391, %v461
  %v536 = vxor.u32 %v535, 2147483648
  %v537 = vmul.f32 %v536, 1.442695
  %v538 = vpow.pop %v537
  %v539 = vadd.f32 %v538, 1.0
  %v540 = vrcp.pop %v539
  %v541 = vmul.f32 1.0, %v540
  %v542 = vadd.f32 %v392, %v463
  %v543 = vxor.u32 %v542, 2147483648
  %v544 = vmul.f32 %v543, 1.442695
  %v545 = vpow.pop %v544
  %v546 = vadd.f32 %v545, 1.0
  %v547 = vrcp.pop %v546
  %v548 = vmul.f32 1.0, %v547
  %v549 = vadd.f32 %v532, %v389
  %v550 = vmul.f32 %v541, %v549
  %v551 = vadd.f32 %v393, %v550
  %v552 = vtanh.pop %v551
  %v553 = vsub.f32 0.0, %v552
  %v554 = vmul.f32 %v548, %v553
  %v555 = vadd.f32 %v552, %v554
  %556 = vst [vmem:[#allocation3] sm:$0xff] %v555
  %s557 = scalar_lea.vmem [#allocation2], 24
  %v558 = vld [vmem:[%s557] sm:$0xff]
  %v559 = vld [vmem:[%s557 + $0x8] sm:$0xff]
  %v560 = vld [vmem:[%s557 + $0x10] sm:$0xff]
  %561 = vmatprep.subr.mxu0 %v337
  %562 = vmatpush1.msra.mxu0 %v336
  %563 = vmatprep.subr.mxu0 %v340
  %564 = vmatpush1.msra.mxu0 %v339
  %565 = vmatprep.subr.mxu0 %v343
  %566 = vmatpush1.msra.mxu0 %v342
  %567 = vmatprep.subr.mxu0 %v346
  %568 = vmatpush1.msra.mxu0 %v345
  %569 = vmatprep.subr.mxu0 %v349
  %570 = vmatpush1.msra.mxu0 %v348
  %571 = vmatprep.subr.mxu0 %v352
  %572 = vmatpush1.msra.mxu0 %v351
  %573 = vmatprep.subr.mxu0 %v355
  %574 = vmatpush1.msra.mxu0 %v354
  %575 = vmatprep.subr.mxu0 %v358
  %576 = vmatpush1.msra.mxu0 %v357
  %577 = vmatprep.subr.mxu0 %v361
  %578 = vmatpush1.msra.mxu0 %v360
  %579 = vmatprep.subr.mxu0 %v364
  %580 = vmatpush1.msra.mxu0 %v363
  %581 = vmatprep.subr.mxu0 %v367
  %582 = vmatpush1.msra.mxu0 %v366
  %583 = vmatprep.subr.mxu0 %v370
  %584 = vmatpush1.msra.mxu0 %v369
  %585 = vmatprep.subr.mxu0 %v373
  %586 = vmatpush1.msra.mxu0 %v372
  %587 = vmatprep.subr.mxu0 %v376
  %588 = vmatpush1.msra.mxu0 %v375
  %589 = vmatprep.subr.mxu0 %v379
  %590 = vmatpush1.msra.mxu0 %v378
  %591 = vmatprep.subr.mxu0 %v382
  %592 = vmatpush1.msra.mxu0 %v381
  %593 = vmatprep.subr.mxu0 0.0
  %594 = vmatpush1.msra.mxu0 0.0
  %595 = vmatprep.subr.mxu0 0.0
  %596 = vmatpush1.msra.mxu0 0.0
  %597 = vmatprep.subr.mxu0 0.0
  %598 = vmatpush1.msra.mxu0 0.0
  %599 = vmatprep.subr.mxu0 0.0
  %600 = vmatpush1.msra.mxu0 0.0
  %601 = vmatprep.subr.mxu0 0.0
  %602 = vmatpush1.msra.mxu0 0.0
  %603 = vmatprep.subr.mxu0 0.0
  %604 = vmatpush1.msra.mxu0 0.0
  %605 = vmatprep.subr.mxu0 0.0
  %606 = vmatpush1.msra.mxu0 0.0
  %607 = vmatprep.subr.mxu0 0.0
  %608 = vmatpush1.msra.mxu0 0.0
  %609 = vmatprep.subr.mxu0 0.0
  %610 = vmatpush1.msra.mxu0 0.0
  %611 = vmatprep.subr.mxu0 0.0
  %612 = vmatpush1.msra.mxu0 0.0
  %613 = vmatprep.subr.mxu0 0.0
  %614 = vmatpush1.msra.mxu0 0.0
  %615 = vmatprep.subr.mxu0 0.0
  %616 = vmatpush1.msra.mxu0 0.0
  %617 = vmatprep.subr.mxu0 0.0
  %618 = vmatpush1.msra.mxu0 0.0
  %619 = vmatprep.subr.mxu0 0.0
  %620 = vmatpush1.msra.mxu0 0.0
  %621 = vmatprep.subr.mxu0 0.0
  %622 = vmatpush1.msra.mxu0 0.0
  %623 = vmatprep.subr.mxu0 0.0
  %624 = vmatpush1.msra.mxu0 0.0
  %625 = vmatprep.mubr.f32.mxu0 0.0
  %626 = vmatmul.mubr.f32.gmra.mrb[0].mxu0 %v555
  %v627 = vpop.f32.mrb[0].mxu0
  %v628 = vadd.f32 0.0, %v627
  %v629 = vpop.f32.mrb[0].mxu0
  %v630 = vadd.f32 0.0, %v629
  %631 = vdwg.mxu0
  %632 = vmatprep.subr.mxu0 0.0
  %633 = vmatpush1.msra.mxu0 %v338
  %634 = vmatprep.subr.mxu0 0.0
  %635 = vmatpush1.msra.mxu0 %v341
  %636 = vmatprep.subr.mxu0 0.0
  %637 = vmatpush1.msra.mxu0 %v344
  %638 = vmatprep.subr.mxu0 0.0
  %639 = vmatpush1.msra.mxu0 %v347
  %640 = vmatprep.subr.mxu0 0.0
  %641 = vmatpush1.msra.mxu0 %v350
  %642 = vmatprep.subr.mxu0 0.0
  %643 = vmatpush1.msra.mxu0 %v353
  %644 = vmatprep.subr.mxu0 0.0
  %645 = vmatpush1.msra.mxu0 %v356
  %646 = vmatprep.subr.mxu0 0.0
  %647 = vmatpush1.msra.mxu0 %v359
  %648 = vmatprep.subr.mxu0 0.0
  %649 = vmatpush1.msra.mxu0 %v362
  %650 = vmatprep.subr.mxu0 0.0
  %651 = vmatpush1.msra.mxu0 %v365
  %652 = vmatprep.subr.mxu0 0.0
  %653 = vmatpush1.msra.mxu0 %v368
  %654 = vmatprep.subr.mxu0 0.0
  %655 = vmatpush1.msra.mxu0 %v371
  %656 = vmatprep.subr.mxu0 0.0
  %657 = vmatpush1.msra.mxu0 %v374
  %658 = vmatprep.subr.mxu0 0.0
  %659 = vmatpush1.msra.mxu0 %v377
  %660 = vmatprep.subr.mxu0 0.0
  %661 = vmatpush1.msra.mxu0 %v380
  %662 = vmatprep.subr.mxu0 0.0
  %663 = vmatpush1.msra.mxu0 %v383
  %664 = vmatprep.subr.mxu0 0.0
  %665 = vmatpush1.msra.mxu0 0.0
  %666 = vmatprep.subr.mxu0 0.0
  %667 = vmatpush1.msra.mxu0 0.0
  %668 = vmatprep.subr.mxu0 0.0
  %669 = vmatpush1.msra.mxu0 0.0
  %670 = vmatprep.subr.mxu0 0.0
  %671 = vmatpush1.msra.mxu0 0.0
  %672 = vmatprep.subr.mxu0 0.0
  %673 = vmatpush1.msra.mxu0 0.0
  %674 = vmatprep.subr.mxu0 0.0
  %675 = vmatpush1.msra.mxu0 0.0
  %676 = vmatprep.subr.mxu0 0.0
  %677 = vmatpush1.msra.mxu0 0.0
  %678 = vmatprep.subr.mxu0 0.0
  %679 = vmatpush1.msra.mxu0 0.0
  %680 = vmatprep.subr.mxu0 0.0
  %681 = vmatpush1.msra.mxu0 0.0
  %682 = vmatprep.subr.mxu0 0.0
  %683 = vmatpush1.msra.mxu0 0.0
  %684 = vmatprep.subr.mxu0 0.0
  %685 = vmatpush1.msra.mxu0 0.0
  %686 = vmatprep.subr.mxu0 0.0
  %687 = vmatpush1.msra.mxu0 0.0
  %688 = vmatprep.subr.mxu0 0.0
  %689 = vmatpush1.msra.mxu0 0.0
  %690 = vmatprep.subr.mxu0 0.0
  %691 = vmatpush1.msra.mxu0 0.0
  %692 = vmatprep.subr.mxu0 0.0
  %693 = vmatpush1.msra.mxu0 0.0
  %694 = vmatprep.subr.mxu0 0.0
  %695 = vmatpush1.msra.mxu0 0.0
  %696 = vmatprep.mubr.f32.mxu0 0.0
  %697 = vmatmul.mubr.f32.gmra.mrb[0].mxu0 %v555
  %v698 = vpop.f32.mrb[0].mxu0
  %v699 = vadd.f32 0.0, %v698
  %v700 = vpop.f32.mrb[0].mxu0
  %701 = vdwg.mxu0
  %v702 = vadd.f32 %v558, %v628
  %v703 = vxor.u32 %v702, 2147483648
  %v704 = vmul.f32 %v703, 1.442695
  %v705 = vpow.pop %v704
  %v706 = vadd.f32 %v705, 1.0
  %v707 = vrcp.pop %v706
  %v708 = vmul.f32 1.0, %v707
  %v709 = vadd.f32 %v559, %v630
  %v710 = vxor.u32 %v709, 2147483648
  %v711 = vmul.f32 %v710, 1.442695
  %v712 = vpow.pop %v711
  %v713 = vadd.f32 %v712, 1.0
  %v714 = vrcp.pop %v713
  %v715 = vmul.f32 1.0, %v714
  %v716 = vadd.f32 %v699, %v389
  %v717 = vmul.f32 %v708, %v716
  %v718 = vadd.f32 %v560, %v717
  %v719 = vtanh.pop %v718
  %v720 = vsub.f32 %v555, %v719
  %v721 = vmul.f32 %v715, %v720
  %v722 = vadd.f32 %v719, %v721
  %s723 = scalar_lea.vmem [#allocation3], 8
  %724 = vst [vmem:[%s723] sm:$0xff] %v722
  %s725 = scalar_lea.vmem [#allocation2], 48
  %v726 = vld [vmem:[%s725] sm:$0xff]
  %v727 = vld [vmem:[%s725 + $0x8] sm:$0xff]
  %v728 = vld [vmem:[%s725 + $0x10] sm:$0xff]
  %729 = vmatprep.subr.mxu0 %v337
  %730 = vmatpush1.msra.mxu0 %v336
  %731 = vmatprep.subr.mxu0 %v340
  %732 = vmatpush1.msra.mxu0 %v339
  %733 = vmatprep.subr.mxu0 %v343
  %734 = vmatpush1.msra.mxu0 %v342
  %735 = vmatprep.subr.mxu0 %v346
  %736 = vmatpush1.msra.mxu0 %v345
  %737 = vmatprep.subr.mxu0 %v349
  %738 = vmatpush1.msra.mxu0 %v348
  %739 = vmatprep.subr.mxu0 %v352
  %740 = vmatpush1.msra.mxu0 %v351
  %741 = vmatprep.subr.mxu0 %v355
  %742 = vmatpush1.msra.mxu0 %v354
  %743 = vmatprep.subr.mxu0 %v358
  %744 = vmatpush1.msra.mxu0 %v357
  %745 = vmatprep.subr.mxu0 %v361
  %746 = vmatpush1.msra.mxu0 %v360
  %747 = vmatprep.subr.mxu0 %v364
  %748 = vmatpush1.msra.mxu0 %v363
  %749 = vmatprep.subr.mxu0 %v367
  %750 = vmatpush1.msra.mxu0 %v366
  %751 = vmatprep.subr.mxu0 %v370
  %752 = vmatpush1.msra.mxu0 %v369
  %753 = vmatprep.subr.mxu0 %v373
  %754 = vmatpush1.msra.mxu0 %v372
  %755 = vmatprep.subr.mxu0 %v376
  %756 = vmatpush1.msra.mxu0 %v375
  %757 = vmatprep.subr.mxu0 %v379
  %758 = vmatpush1.msra.mxu0 %v378
  %759 = vmatprep.subr.mxu0 %v382
  %760 = vmatpush1.msra.mxu0 %v381
  %761 = vmatprep.subr.mxu0 0.0
  %762 = vmatpush1.msra.mxu0 0.0
  %763 = vmatprep.subr.mxu0 0.0
  %764 = vmatpush1.msra.mxu0 0.0
  %765 = vmatprep.subr.mxu0 0.0
  %766 = vmatpush1.msra.mxu0 0.0
  %767 = vmatprep.subr.mxu0 0.0
  %768 = vmatpush1.msra.mxu0 0.0
  %769 = vmatprep.subr.mxu0 0.0
  %770 = vmatpush1.msra.mxu0 0.0
  %771 = vmatprep.subr.mxu0 0.0
  %772 = vmatpush1.msra.mxu0 0.0
  %773 = vmatprep.subr.mxu0 0.0
  %774 = vmatpush1.msra.mxu0 0.0
  %775 = vmatprep.subr.mxu0 0.0
  %776 = vmatpush1.msra.mxu0 0.0
  %777 = vmatprep.subr.mxu0 0.0
  %778 = vmatpush1.msra.mxu0 0.0
  %779 = vmatprep.subr.mxu0 0.0
  %780 = vmatpush1.msra.mxu0 0.0
  %781 = vmatprep.subr.mxu0 0.0
  %782 = vmatpush1.msra.mxu0 0.0
  %783 = vmatprep.subr.mxu0 0.0
  %784 = vmatpush1.msra.mxu0 0.0
  %785 = vmatprep.subr.mxu0 0.0
  %786 = vmatpush1.msra.mxu0 0.0
  %787 = vmatprep.subr.mxu0 0.0
  %788 = vmatpush1.msra.mxu0 0.0
  %789 = vmatprep.subr.mxu0 0.0
  %790 = vmatpush1.msra.mxu0 0.0
  %791 = vmatprep.subr.mxu0 0.0
  %792 = vmatpush1.msra.mxu0 0.0
  %793 = vmatprep.mubr.f32.mxu0 0.0
  %794 = vmatmul.mubr.f32.gmra.mrb[0].mxu0 %v722
  %v795 = vpop.f32.mrb[0].mxu0
  %v796 = vadd.f32 0.0, %v795
  %v797 = vpop.f32.mrb[0].mxu0
  %v798 = vadd.f32 0.0, %v797
  %799 = vdwg.mxu0
  %800 = vmatprep.subr.mxu0 0.0
  %801 = vmatpush1.msra.mxu0 %v338
  %802 = vmatprep.subr.mxu0 0.0
  %803 = vmatpush1.msra.mxu0 %v341
  %804 = vmatprep.subr.mxu0 0.0
  %805 = vmatpush1.msra.mxu0 %v344
  %806 = vmatprep.subr.mxu0 0.0
  %807 = vmatpush1.msra.mxu0 %v347
  %808 = vmatprep.subr.mxu0 0.0
  %809 = vmatpush1.msra.mxu0 %v350
  %810 = vmatprep.subr.mxu0 0.0
  %811 = vmatpush1.msra.mxu0 %v353
  %812 = vmatprep.subr.mxu0 0.0
  %813 = vmatpush1.msra.mxu0 %v356
  %814 = vmatprep.subr.mxu0 0.0
  %815 = vmatpush1.msra.mxu0 %v359
  %816 = vmatprep.subr.mxu0 0.0
  %817 = vmatpush1.msra.mxu0 %v362
  %818 = vmatprep.subr.mxu0 0.0
  %819 = vmatpush1.msra.mxu0 %v365
  %820 = vmatprep.subr.mxu0 0.0
  %821 = vmatpush1.msra.mxu0 %v368
  %822 = vmatprep.subr.mxu0 0.0
  %823 = vmatpush1.msra.mxu0 %v371
  %824 = vmatprep.subr.mxu0 0.0
  %825 = vmatpush1.msra.mxu0 %v374
  %826 = vmatprep.subr.mxu0 0.0
  %827 = vmatpush1.msra.mxu0 %v377
  %828 = vmatprep.subr.mxu0 0.0
  %829 = vmatpush1.msra.mxu0 %v380
  %830 = vmatprep.subr.mxu0 0.0
  %831 = vmatpush1.msra.mxu0 %v383
  %832 = vmatprep.subr.mxu0 0.0
  %833 = vmatpush1.msra.mxu0 0.0
  %834 = vmatprep.subr.mxu0 0.0
  %835 = vmatpush1.msra.mxu0 0.0
  %836 = vmatprep.subr.mxu0 0.0
  %837 = vmatpush1.msra.mxu0 0.0
  %838 = vmatprep.subr.mxu0 0.0
  %839 = vmatpush1.msra.mxu0 0.0
  %840 = vmatprep.subr.mxu0 0.0
  %841 = vmatpush1.msra.mxu0 0.0
  %842 = vmatprep.subr.mxu0 0.0
  %843 = vmatpush1.msra.mxu0 0.0
  %844 = vmatprep.subr.mxu0 0.0
  %845 = vmatpush1.msra.mxu0 0.0
  %846 = vmatprep.subr.mxu0 0.0
  %847 = vmatpush1.msra.mxu0 0.0
  %848 = vmatprep.subr.mxu0 0.0
  %849 = vmatpush1.msra.mxu0 0.0
  %850 = vmatprep.subr.mxu0 0.0
  %851 = vmatpush1.msra.mxu0 0.0
  %852 = vmatprep.subr.mxu0 0.0
  %853 = vmatpush1.msra.mxu0 0.0
  %854 = vmatprep.subr.mxu0 0.0
  %855 = vmatpush1.msra.mxu0 0.0
  %856 = vmatprep.subr.mxu0 0.0
  %857 = vmatpush1.msra.mxu0 0.0
  %858 = vmatprep.subr.mxu0 0.0
  %859 = vmatpush1.msra.mxu0 0.0
  %860 = vmatprep.subr.mxu0 0.0
  %861 = vmatpush1.msra.mxu0 0.0
  %862 = vmatprep.subr.mxu0 0.0
  %863 = vmatpush1.msra.mxu0 0.0
  %864 = vmatprep.mubr.f32.mxu0 0.0
  %865 = vmatmul.mubr.f32.gmra.mrb[0].mxu0 %v722
  %v866 = vpop.f32.mrb[0].mxu0
  %v867 = vadd.f32 0.0, %v866
  %v868 = vpop.f32.mrb[0].mxu0
  %869 = vdwg.mxu0
  %v870 = vadd.f32 %v726, %v796
  %v871 = vxor.u32 %v870, 2147483648
  %v872 = vmul.f32 %v871, 1.442695
  %v873 = vpow.pop %v872
  %v874 = vadd.f32 %v873, 1.0
  %v875 = vrcp.pop %v874
  %v876 = vmul.f32 1.0, %v875
  %v877 = vadd.f32 %v727, %v798
  %v878 = vxor.u32 %v877, 2147483648
  %v879 = vmul.f32 %v878, 1.442695
  %v880 = vpow.pop %v879
  %v881 = vadd.f32 %v880, 1.0
  %v882 = vrcp.pop %v881
  %v883 = vmul.f32 1.0, %v882
  %v884 = vadd.f32 %v867, %v389
  %v885 = vmul.f32 %v876, %v884
  %v886 = vadd.f32 %v728, %v885
  %v887 = vtanh.pop %v886
  %v888 = vsub.f32 %v722, %v887
  %v889 = vmul.f32 %v883, %v888
  %v890 = vadd.f32 %v887, %v889
  %s891 = scalar_lea.vmem [#allocation3], 16
  %892 = vst [vmem:[%s891] sm:$0xff] %v890
  %s893 = scalar_lea.vmem [#allocation2], 72
  %v894 = vld [vmem:[%s893] sm:$0xff]
  %v895 = vld [vmem:[%s893 + $0x8] sm:$0xff]
  %v896 = vld [vmem:[%s893 + $0x10] sm:$0xff]
  %897 = vmatprep.subr.mxu0 %v337
  %898 = vmatpush1.msra.mxu0 %v336
  %899 = vmatprep.subr.mxu0 %v340
  %900 = vmatpush1.msra.mxu0 %v339
  %901 = vmatprep.subr.mxu0 %v343
  %902 = vmatpush1.msra.mxu0 %v342
  %903 = vmatprep.subr.mxu0 %v346
  %904 = vmatpush1.msra.mxu0 %v345
  %905 = vmatprep.subr.mxu0 %v349
  %906 = vmatpush1.msra.mxu0 %v348
  %907 = vmatprep.subr.mxu0 %v352
  %908 = vmatpush1.msra.mxu0 %v351
  %909 = vmatprep.subr.mxu0 %v355
  %910 = vmatpush1.msra.mxu0 %v354
  %911 = vmatprep.subr.mxu0 %v358
  %912 = vmatpush1.msra.mxu0 %v357
  %913 = vmatprep.subr.mxu0 %v361
  %914 = vmatpush1.msra.mxu0 %v360
  %915 = vmatprep.subr.mxu0 %v364
  %916 = vmatpush1.msra.mxu0 %v363
  %917 = vmatprep.subr.mxu0 %v367
  %918 = vmatpush1.msra.mxu0 %v366
  %919 = vmatprep.subr.mxu0 %v370
  %920 = vmatpush1.msra.mxu0 %v369
  %921 = vmatprep.subr.mxu0 %v373
  %922 = vmatpush1.msra.mxu0 %v372
  %923 = vmatprep.subr.mxu0 %v376
  %924 = vmatpush1.msra.mxu0 %v375
  %925 = vmatprep.subr.mxu0 %v379
  %926 = vmatpush1.msra.mxu0 %v378
  %927 = vmatprep.subr.mxu0 %v382
  %928 = vmatpush1.msra.mxu0 %v381
  %929 = vmatprep.subr.mxu0 0.0
  %930 = vmatpush1.msra.mxu0 0.0
  %931 = vmatprep.subr.mxu0 0.0
  %932 = vmatpush1.msra.mxu0 0.0
  %933 = vmatprep.subr.mxu0 0.0
  %934 = vmatpush1.msra.mxu0 0.0
  %935 = vmatprep.subr.mxu0 0.0
  %936 = vmatpush1.msra.mxu0 0.0
  %937 = vmatprep.subr.mxu0 0.0
  %938 = vmatpush1.msra.mxu0 0.0
  %939 = vmatprep.subr.mxu0 0.0
  %940 = vmatpush1.msra.mxu0 0.0
  %941 = vmatprep.subr.mxu0 0.0
  %942 = vmatpush1.msra.mxu0 0.0
  %943 = vmatprep.subr.mxu0 0.0
  %944 = vmatpush1.msra.mxu0 0.0
  %945 = vmatprep.subr.mxu0 0.0
  %946 = vmatpush1.msra.mxu0 0.0
  %947 = vmatprep.subr.mxu0 0.0
  %948 = vmatpush1.msra.mxu0 0.0
  %949 = vmatprep.subr.mxu0 0.0
  %950 = vmatpush1.msra.mxu0 0.0
  %951 = vmatprep.subr.mxu0 0.0
  %952 = vmatpush1.msra.mxu0 0.0
  %953 = vmatprep.subr.mxu0 0.0
  %954 = vmatpush1.msra.mxu0 0.0
  %955 = vmatprep.subr.mxu0 0.0
  %956 = vmatpush1.msra.mxu0 0.0
  %957 = vmatprep.subr.mxu0 0.0
  %958 = vmatpush1.msra.mxu0 0.0
  %959 = vmatprep.subr.mxu0 0.0
  %960 = vmatpush1.msra.mxu0 0.0
  %961 = vmatprep.mubr.f32.mxu0 0.0
  %962 = vmatmul.mubr.f32.gmra.mrb[0].mxu0 %v890
  %v963 = vpop.f32.mrb[0].mxu0
  %v964 = vadd.f32 0.0, %v963
  %v965 = vpop.f32.mrb[0].mxu0
  %v966 = vadd.f32 0.0, %v965
  %967 = vdwg.mxu0
  %968 = vmatprep.subr.mxu0 0.0
  %969 = vmatpush1.msra.mxu0 %v338
  %970 = vmatprep.subr.mxu0 0.0
  %971 = vmatpush1.msra.mxu0 %v341
  %972 = vmatprep.subr.mxu0 0.0
  %973 = vmatpush1.msra.mxu0 %v344
  %974 = vmatprep.subr.mxu0 0.0
  %975 = vmatpush1.msra.mxu0 %v347
  %976 = vmatprep.subr.mxu0 0.0
  %977 = vmatpush1.msra.mxu0 %v350
  %978 = vmatprep.subr.mxu0 0.0
  %979 = vmatpush1.msra.mxu0 %v353
  %980 = vmatprep.subr.mxu0 0.0
  %981 = vmatpush1.msra.mxu0 %v356
  %982 = vmatprep.subr.mxu0 0.0
  %983 = vmatpush1.msra.mxu0 %v359
  %984 = vmatprep.subr.mxu0 0.0
  %985 = vmatpush1.msra.mxu0 %v362
  %986 = vmatprep.subr.mxu0 0.0
  %987 = vmatpush1.msra.mxu0 %v365
  %988 = vmatprep.subr.mxu0 0.0
  %989 = vmatpush1.msra.mxu0 %v368
  %990 = vmatprep.subr.mxu0 0.0
  %991 = vmatpush1.msra.mxu0 %v371
  %992 = vmatprep.subr.mxu0 0.0
  %993 = vmatpush1.msra.mxu0 %v374
  %994 = vmatprep.subr.mxu0 0.0
  %995 = vmatpush1.msra.mxu0 %v377
  %996 = vmatprep.subr.mxu0 0.0
  %997 = vmatpush1.msra.mxu0 %v380
  %998 = vmatprep.subr.mxu0 0.0
  %999 = vmatpush1.msra.mxu0 %v383
  %1000 = vmatprep.subr.mxu0 0.0
  %1001 = vmatpush1.msra.mxu0 0.0
  %1002 = vmatprep.subr.mxu0 0.0
  %1003 = vmatpush1.msra.mxu0 0.0
  %1004 = vmatprep.subr.mxu0 0.0
  %1005 = vmatpush1.msra.mxu0 0.0
  %1006 = vmatprep.subr.mxu0 0.0
  %1007 = vmatpush1.msra.mxu0 0.0
  %1008 = vmatprep.subr.mxu0 0.0
  %1009 = vmatpush1.msra.mxu0 0.0
  %1010 = vmatprep.subr.mxu0 0.0
  %1011 = vmatpush1.msra.mxu0 0.0
  %1012 = vmatprep.subr.mxu0 0.0
  %1013 = vmatpush1.msra.mxu0 0.0
  %1014 = vmatprep.subr.mxu0 0.0
  %1015 = vmatpush1.msra.mxu0 0.0
  %1016 = vmatprep.subr.mxu0 0.0
  %1017 = vmatpush1.msra.mxu0 0.0
  %1018 = vmatprep.subr.mxu0 0.0
  %1019 = vmatpush1.msra.mxu0 0.0
  %1020 = vmatprep.subr.mxu0 0.0
  %1021 = vmatpush1.msra.mxu0 0.0
  %1022 = vmatprep.subr.mxu0 0.0
  %1023 = vmatpush1.msra.mxu0 0.0
  %1024 = vmatprep.subr.mxu0 0.0
  %1025 = vmatpush1.msra.mxu0 0.0
  %1026 = vmatprep.subr.mxu0 0.0
  %1027 = vmatpush1.msra.mxu0 0.0
  %1028 = vmatprep.subr.mxu0 0.0
  %1029 = vmatpush1.msra.mxu0 0.0
  %1030 = vmatprep.subr.mxu0 0.0
  %1031 = vmatpush1.msra.mxu0 0.0
  %1032 = vmatprep.mubr.f32.mxu0 0.0
  %1033 = vmatmul.mubr.f32.gmra.mrb[0].mxu0 %v890
  %v1034 = vpop.f32.mrb[0].mxu0
  %v1035 = vadd.f32 0.0, %v1034
  %v1036 = vpop.f32.mrb[0].mxu0
  %1037 = vdwg.mxu0
  %v1038 = vadd.f32 %v894, %v964
  %v1039 = vxor.u32 %v1038, 2147483648
  %v1040 = vmul.f32 %v1039, 1.442695
  %v1041 = vpow.pop %v1040
  %v1042 = vadd.f32 %v1041, 1.0
  %v1043 = vrcp.pop %v1042
  %v1044 = vmul.f32 1.0, %v1043
  %v1045 = vadd.f32 %v895, %v966
  %v1046 = vxor.u32 %v1045, 2147483648
  %v1047 = vmul.f32 %v1046, 1.442695
  %v1048 = vpow.pop %v1047
  %v1049 = vadd.f32 %v1048, 1.0
  %v1050 = vrcp.pop %v1049
  %v1051 = vmul.f32 1.0, %v1050
  %v1052 = vadd.f32 %v1035, %v389
  %v1053 = vmul.f32 %v1044, %v1052
  %v1054 = vadd.f32 %v896, %v1053
  %v1055 = vtanh.pop %v1054
  %v1056 = vsub.f32 %v890, %v1055
  %v1057 = vmul.f32 %v1051, %v1056
  %v1058 = vadd.f32 %v1055, %v1057
  %s1059 = scalar_lea.vmem [#allocation3], 24
  %1060 = vst [vmem:[%s1059] sm:$0xff] %v1058
  %s1061 = scalar_lea.vmem [#allocation2], 96
  %v1062 = vld [vmem:[%s1061] sm:$0xff]
  %v1063 = vld [vmem:[%s1061 + $0x8] sm:$0xff]
  %v1064 = vld [vmem:[%s1061 + $0x10] sm:$0xff]
  %1065 = vmatprep.subr.mxu0 %v337
  %1066 = vmatpush1.msra.mxu0 %v336
  %1067 = vmatprep.subr.mxu0 %v340
  %1068 = vmatpush1.msra.mxu0 %v339
  %1069 = vmatprep.subr.mxu0 %v343
  %1070 = vmatpush1.msra.mxu0 %v342
  %1071 = vmatprep.subr.mxu0 %v346
  %1072 = vmatpush1.msra.mxu0 %v345
  %1073 = vmatprep.subr.mxu0 %v349
  %1074 = vmatpush1.msra.mxu0 %v348
  %1075 = vmatprep.subr.mxu0 %v352
  %1076 = vmatpush1.msra.mxu0 %v351
  %1077 = vmatprep.subr.mxu0 %v355
  %1078 = vmatpush1.msra.mxu0 %v354
  %1079 = vmatprep.subr.mxu0 %v358
  %1080 = vmatpush1.msra.mxu0 %v357
  %1081 = vmatprep.subr.mxu0 %v361
  %1082 = vmatpush1.msra.mxu0 %v360
  %1083 = vmatprep.subr.mxu0 %v364
  %1084 = vmatpush1.msra.mxu0 %v363
  %1085 = vmatprep.subr.mxu0 %v367
  %1086 = vmatpush1.msra.mxu0 %v366
  %1087 = vmatprep.subr.mxu0 %v370
  %1088 = vmatpush1.msra.mxu0 %v369
  %1089 = vmatprep.subr.mxu0 %v373
  %1090 = vmatpush1.msra.mxu0 %v372
  %1091 = vmatprep.subr.mxu0 %v376
  %1092 = vmatpush1.msra.mxu0 %v375
  %1093 = vmatprep.subr.mxu0 %v379
  %1094 = vmatpush1.msra.mxu0 %v378
  %1095 = vmatprep.subr.mxu0 %v382
  %1096 = vmatpush1.msra.mxu0 %v381
  %1097 = vmatprep.subr.mxu0 0.0
  %1098 = vmatpush1.msra.mxu0 0.0
  %1099 = vmatprep.subr.mxu0 0.0
  %1100 = vmatpush1.msra.mxu0 0.0
  %1101 = vmatprep.subr.mxu0 0.0
  %1102 = vmatpush1.msra.mxu0 0.0
  %1103 = vmatprep.subr.mxu0 0.0
  %1104 = vmatpush1.msra.mxu0 0.0
  %1105 = vmatprep.subr.mxu0 0.0
  %1106 = vmatpush1.msra.mxu0 0.0
  %1107 = vmatprep.subr.mxu0 0.0
  %1108 = vmatpush1.msra.mxu0 0.0
  %1109 = vmatprep.subr.mxu0 0.0
  %1110 = vmatpush1.msra.mxu0 0.0
  %1111 = vmatprep.subr.mxu0 0.0
  %1112 = vmatpush1.msra.mxu0 0.0
  %1113 = vmatprep.subr.mxu0 0.0
  %1114 = vmatpush1.msra.mxu0 0.0
  %1115 = vmatprep.subr.mxu0 0.0
  %1116 = vmatpush1.msra.mxu0 0.0
  %1117 = vmatprep.subr.mxu0 0.0
  %1118 = vmatpush1.msra.mxu0 0.0
  %1119 = vmatprep.subr.mxu0 0.0
  %1120 = vmatpush1.msra.mxu0 0.0
  %1121 = vmatprep.subr.mxu0 0.0
  %1122 = vmatpush1.msra.mxu0 0.0
  %1123 = vmatprep.subr.mxu0 0.0
  %1124 = vmatpush1.msra.mxu0 0.0
  %1125 = vmatprep.subr.mxu0 0.0
  %1126 = vmatpush1.msra.mxu0 0.0
  %1127 = vmatprep.subr.mxu0 0.0
  %1128 = vmatpush1.msra.mxu0 0.0
  %1129 = vmatprep.mubr.f32.mxu0 0.0
  %1130 = vmatmul.mubr.f32.gmra.mrb[0].mxu0 %v1058
  %v1131 = vpop.f32.mrb[0].mxu0
  %v1132 = vadd.f32 0.0, %v1131
  %v1133 = vpop.f32.mrb[0].mxu0
  %v1134 = vadd.f32 0.0, %v1133
  %1135 = vdwg.mxu0
  %1136 = vmatprep.subr.mxu0 0.0
  %1137 = vmatpush1.msra.mxu0 %v338
  %1138 = vmatprep.subr.mxu0 0.0
  %1139 = vmatpush1.msra.mxu0 %v341
  %1140 = vmatprep.subr.mxu0 0.0
  %1141 = vmatpush1.msra.mxu0 %v344
  %1142 = vmatprep.subr.mxu0 0.0
  %1143 = vmatpush1.msra.mxu0 %v347
  %1144 = vmatprep.subr.mxu0 0.0
  %1145 = vmatpush1.msra.mxu0 %v350
  %1146 = vmatprep.subr.mxu0 0.0
  %1147 = vmatpush1.msra.mxu0 %v353
  %1148 = vmatprep.subr.mxu0 0.0
  %1149 = vmatpush1.msra.mxu0 %v356
  %1150 = vmatprep.subr.mxu0 0.0
  %1151 = vmatpush1.msra.mxu0 %v359
  %1152 = vmatprep.subr.mxu0 0.0
  %1153 = vmatpush1.msra.mxu0 %v362
  %1154 = vmatprep.subr.mxu0 0.0
  %1155 = vmatpush1.msra.mxu0 %v365
  %1156 = vmatprep.subr.mxu0 0.0
  %1157 = vmatpush1.msra.mxu0 %v368
  %1158 = vmatprep.subr.mxu0 0.0
  %1159 = vmatpush1.msra.mxu0 %v371
  %1160 = vmatprep.subr.mxu0 0.0
  %1161 = vmatpush1.msra.mxu0 %v374
  %1162 = vmatprep.subr.mxu0 0.0
  %1163 = vmatpush1.msra.mxu0 %v377
  %1164 = vmatprep.subr.mxu0 0.0
  %1165 = vmatpush1.msra.mxu0 %v380
  %1166 = vmatprep.subr.mxu0 0.0
  %1167 = vmatpush1.msra.mxu0 %v383
  %1168 = vmatprep.subr.mxu0 0.0
  %1169 = vmatpush1.msra.mxu0 0.0
  %1170 = vmatprep.subr.mxu0 0.0
  %1171 = vmatpush1.msra.mxu0 0.0
  %1172 = vmatprep.subr.mxu0 0.0
  %1173 = vmatpush1.msra.mxu0 0.0
  %1174 = vmatprep.subr.mxu0 0.0
  %1175 = vmatpush1.msra.mxu0 0.0
  %1176 = vmatprep.subr.mxu0 0.0
  %1177 = vmatpush1.msra.mxu0 0.0
  %1178 = vmatprep.subr.mxu0 0.0
  %1179 = vmatpush1.msra.mxu0 0.0
  %1180 = vmatprep.subr.mxu0 0.0
  %1181 = vmatpush1.msra.mxu0 0.0
  %1182 = vmatprep.subr.mxu0 0.0
  %1183 = vmatpush1.msra.mxu0 0.0
  %1184 = vmatprep.subr.mxu0 0.0
  %1185 = vmatpush1.msra.mxu0 0.0
  %1186 = vmatprep.subr.mxu0 0.0
  %1187 = vmatpush1.msra.mxu0 0.0
  %1188 = vmatprep.subr.mxu0 0.0
  %1189 = vmatpush1.msra.mxu0 0.0
  %1190 = vmatprep.subr.mxu0 0.0
  %1191 = vmatpush1.msra.mxu0 0.0
  %1192 = vmatprep.subr.mxu0 0.0
  %1193 = vmatpush1.msra.mxu0 0.0
  %1194 = vmatprep.subr.mxu0 0.0
  %1195 = vmatpush1.msra.mxu0 0.0
  %1196 = vmatprep.subr.mxu0 0.0
  %1197 = vmatpush1.msra.mxu0 0.0
  %1198 = vmatprep.subr.mxu0 0.0
  %1199 = vmatpush1.msra.mxu0 0.0
  %1200 = vmatprep.mubr.f32.mxu0 0.0
  %1201 = vmatmul.mubr.f32.gmra.mrb[0].mxu0 %v1058
  %v1202 = vpop.f32.mrb[0].mxu0
  %v1203 = vadd.f32 0.0, %v1202
  %v1204 = vpop.f32.mrb[0].mxu0
  %1205 = vdwg.mxu0
  %v1206 = vadd.f32 %v1062, %v1132
  %v1207 = vxor.u32 %v1206, 2147483648
  %v1208 = vmul.f32 %v1207, 1.442695
  %v1209 = vpow.pop %v1208
  %v1210 = vadd.f32 %v1209, 1.0
  %v1211 = vrcp.pop %v1210
  %v1212 = vmul.f32 1.0, %v1211
  %v1213 = vadd.f32 %v1063, %v1134
  %v1214 = vxor.u32 %v1213, 2147483648
  %v1215 = vmul.f32 %v1214, 1.442695
  %v1216 = vpow.pop %v1215
  %v1217 = vadd.f32 %v1216, 1.0
  %v1218 = vrcp.pop %v1217
  %v1219 = vmul.f32 1.0, %v1218
  %v1220 = vadd.f32 %v1203, %v389
  %v1221 = vmul.f32 %v1212, %v1220
  %v1222 = vadd.f32 %v1064, %v1221
  %v1223 = vtanh.pop %v1222
  %v1224 = vsub.f32 %v1058, %v1223
  %v1225 = vmul.f32 %v1219, %v1224
  %v1226 = vadd.f32 %v1223, %v1225
  %s1227 = scalar_lea.vmem [#allocation3], 32
  %1228 = vst [vmem:[%s1227] sm:$0xff] %v1226
  %s1229 = scalar_lea.vmem [#allocation2], 120
  %v1230 = vld [vmem:[%s1229] sm:$0xff]
  %v1231 = vld [vmem:[%s1229 + $0x8] sm:$0xff]
  %v1232 = vld [vmem:[%s1229 + $0x10] sm:$0xff]
  %1233 = vmatprep.subr.mxu0 %v337
  %1234 = vmatpush1.msra.mxu0 %v336
  %1235 = vmatprep.subr.mxu0 %v340
  %1236 = vmatpush1.msra.mxu0 %v339
  %1237 = vmatprep.subr.mxu0 %v343
  %1238 = vmatpush1.msra.mxu0 %v342
  %1239 = vmatprep.subr.mxu0 %v346
  %1240 = vmatpush1.msra.mxu0 %v345
  %1241 = vmatprep.subr.mxu0 %v349
  %1242 = vmatpush1.msra.mxu0 %v348
  %1243 = vmatprep.subr.mxu0 %v352
  %1244 = vmatpush1.msra.mxu0 %v351
  %1245 = vmatprep.subr.mxu0 %v355
  %1246 = vmatpush1.msra.mxu0 %v354
  %1247 = vmatprep.subr.mxu0 %v358
  %1248 = vmatpush1.msra.mxu0 %v357
  %1249 = vmatprep.subr.mxu0 %v361
  %1250 = vmatpush1.msra.mxu0 %v360
  %1251 = vmatprep.subr.mxu0 %v364
  %1252 = vmatpush1.msra.mxu0 %v363
  %1253 = vmatprep.subr.mxu0 %v367
  %1254 = vmatpush1.msra.mxu0 %v366
  %1255 = vmatprep.subr.mxu0 %v370
  %1256 = vmatpush1.msra.mxu0 %v369
  %1257 = vmatprep.subr.mxu0 %v373
  %1258 = vmatpush1.msra.mxu0 %v372
  %1259 = vmatprep.subr.mxu0 %v376
  %1260 = vmatpush1.msra.mxu0 %v375
  %1261 = vmatprep.subr.mxu0 %v379
  %1262 = vmatpush1.msra.mxu0 %v378
  %1263 = vmatprep.subr.mxu0 %v382
  %1264 = vmatpush1.msra.mxu0 %v381
  %1265 = vmatprep.subr.mxu0 0.0
  %1266 = vmatpush1.msra.mxu0 0.0
  %1267 = vmatprep.subr.mxu0 0.0
  %1268 = vmatpush1.msra.mxu0 0.0
  %1269 = vmatprep.subr.mxu0 0.0
  %1270 = vmatpush1.msra.mxu0 0.0
  %1271 = vmatprep.subr.mxu0 0.0
  %1272 = vmatpush1.msra.mxu0 0.0
  %1273 = vmatprep.subr.mxu0 0.0
  %1274 = vmatpush1.msra.mxu0 0.0
  %1275 = vmatprep.subr.mxu0 0.0
  %1276 = vmatpush1.msra.mxu0 0.0
  %1277 = vmatprep.subr.mxu0 0.0
  %1278 = vmatpush1.msra.mxu0 0.0
  %1279 = vmatprep.subr.mxu0 0.0
  %1280 = vmatpush1.msra.mxu0 0.0
  %1281 = vmatprep.subr.mxu0 0.0
  %1282 = vmatpush1.msra.mxu0 0.0
  %1283 = vmatprep.subr.mxu0 0.0
  %1284 = vmatpush1.msra.mxu0 0.0
  %1285 = vmatprep.subr.mxu0 0.0
  %1286 = vmatpush1.msra.mxu0 0.0
  %1287 = vmatprep.subr.mxu0 0.0
  %1288 = vmatpush1.msra.mxu0 0.0
  %1289 = vmatprep.subr.mxu0 0.0
  %1290 = vmatpush1.msra.mxu0 0.0
  %1291 = vmatprep.subr.mxu0 0.0
  %1292 = vmatpush1.msra.mxu0 0.0
  %1293 = vmatprep.subr.mxu0 0.0
  %1294 = vmatpush1.msra.mxu0 0.0
  %1295 = vmatprep.subr.mxu0 0.0
  %1296 = vmatpush1.msra.mxu0 0.0
  %1297 = vmatprep.mubr.f32.mxu0 0.0
  %1298 = vmatmul.mubr.f32.gmra.mrb[0].mxu0 %v1226
  %v1299 = vpop.f32.mrb[0].mxu0
  %v1300 = vadd.f32 0.0, %v1299
  %v1301 = vpop.f32.mrb[0].mxu0
  %v1302 = vadd.f32 0.0, %v1301
  %1303 = vdwg.mxu0
  %1304 = vmatprep.subr.mxu0 0.0
  %1305 = vmatpush1.msra.mxu0 %v338
  %1306 = vmatprep.subr.mxu0 0.0
  %1307 = vmatpush1.msra.mxu0 %v341
  %1308 = vmatprep.subr.mxu0 0.0
  %1309 = vmatpush1.msra.mxu0 %v344
  %1310 = vmatprep.subr.mxu0 0.0
  %1311 = vmatpush1.msra.mxu0 %v347
  %1312 = vmatprep.subr.mxu0 0.0
  %1313 = vmatpush1.msra.mxu0 %v350
  %1314 = vmatprep.subr.mxu0 0.0
  %1315 = vmatpush1.msra.mxu0 %v353
  %1316 = vmatprep.subr.mxu0 0.0
  %1317 = vmatpush1.msra.mxu0 %v356
  %1318 = vmatprep.subr.mxu0 0.0
  %1319 = vmatpush1.msra.mxu0 %v359
  %1320 = vmatprep.subr.mxu0 0.0
  %1321 = vmatpush1.msra.mxu0 %v362
  %1322 = vmatprep.subr.mxu0 0.0
  %1323 = vmatpush1.msra.mxu0 %v365
  %1324 = vmatprep.subr.mxu0 0.0
  %1325 = vmatpush1.msra.mxu0 %v368
  %1326 = vmatprep.subr.mxu0 0.0
  %1327 = vmatpush1.msra.mxu0 %v371
  %1328 = vmatprep.subr.mxu0 0.0
  %1329 = vmatpush1.msra.mxu0 %v374
  %1330 = vmatprep.subr.mxu0 0.0
  %1331 = vmatpush1.msra.mxu0 %v377
  %1332 = vmatprep.subr.mxu0 0.0
  %1333 = vmatpush1.msra.mxu0 %v380
  %1334 = vmatprep.subr.mxu0 0.0
  %1335 = vmatpush1.msra.mxu0 %v383
  %1336 = vmatprep.subr.mxu0 0.0
  %1337 = vmatpush1.msra.mxu0 0.0
  %1338 = vmatprep.subr.mxu0 0.0
  %1339 = vmatpush1.msra.mxu0 0.0
  %1340 = vmatprep.subr.mxu0 0.0
  %1341 = vmatpush1.msra.mxu0 0.0
  %1342 = vmatprep.subr.mxu0 0.0
  %1343 = vmatpush1.msra.mxu0 0.0
  %1344 = vmatprep.subr.mxu0 0.0
  %1345 = vmatpush1.msra.mxu0 0.0
  %1346 = vmatprep.subr.mxu0 0.0
  %1347 = vmatpush1.msra.mxu0 0.0
  %1348 = vmatprep.subr.mxu0 0.0
  %1349 = vmatpush1.msra.mxu0 0.0
  %1350 = vmatprep.subr.mxu0 0.0
  %1351 = vmatpush1.msra.mxu0 0.0
  %1352 = vmatprep.subr.mxu0 0.0
  %1353 = vmatpush1.msra.mxu0 0.0
  %1354 = vmatprep.subr.mxu0 0.0
  %1355 = vmatpush1.msra.mxu0 0.0
  %1356 = vmatprep.subr.mxu0 0.0
  %1357 = vmatpush1.msra.mxu0 0.0
  %1358 = vmatprep.subr.mxu0 0.0
  %1359 = vmatpush1.msra.mxu0 0.0
  %1360 = vmatprep.subr.mxu0 0.0
  %1361 = vmatpush1.msra.mxu0 0.0
  %1362 = vmatprep.subr.mxu0 0.0
  %1363 = vmatpush1.msra.mxu0 0.0
  %1364 = vmatprep.subr.mxu0 0.0
  %1365 = vmatpush1.msra.mxu0 0.0
  %1366 = vmatprep.subr.mxu0 0.0
  %1367 = vmatpush1.msra.mxu0 0.0
  %1368 = vmatprep.mubr.f32.mxu0 0.0
  %1369 = vmatmul.mubr.f32.gmra.mrb[0].mxu0 %v1226
  %v1370 = vpop.f32.mrb[0].mxu0
  %v1371 = vadd.f32 0.0, %v1370
  %v1372 = vpop.f32.mrb[0].mxu0
  %1373 = vdwg.mxu0
  %v1374 = vadd.f32 %v1230, %v1300
  %v1375 = vxor.u32 %v1374, 2147483648
  %v1376 = vmul.f32 %v1375, 1.442695
  %v1377 = vpow.pop %v1376
  %v1378 = vadd.f32 %v1377, 1.0
  %v1379 = vrcp.pop %v1378
  %v1380 = vmul.f32 1.0, %v1379
  %v1381 = vadd.f32 %v1231, %v1302
  %v1382 = vxor.u32 %v1381, 2147483648
  %v1383 = vmul.f32 %v1382, 1.442695
  %v1384 = vpow.pop %v1383
  %v1385 = vadd.f32 %v1384, 1.0
  %v1386 = vrcp.pop %v1385
  %v1387 = vmul.f32 1.0, %v1386
  %v1388 = vadd.f32 %v1371, %v389
  %v1389 = vmul.f32 %v1380, %v1388
  %v1390 = vadd.f32 %v1232, %v1389
  %v1391 = vtanh.pop %v1390
  %v1392 = vsub.f32 %v1226, %v1391
  %v1393 = vmul.f32 %v1387, %v1392
  %v1394 = vadd.f32 %v1391, %v1393
  %s1395 = scalar_lea.vmem [#allocation3], 40
  %1396 = vst [vmem:[%s1395] sm:$0xff] %v1394
  %s1397 = scalar_lea.vmem [#allocation2], 144
  %v1398 = vld [vmem:[%s1397] sm:$0xff]
  %v1399 = vld [vmem:[%s1397 + $0x8] sm:$0xff]
  %v1400 = vld [vmem:[%s1397 + $0x10] sm:$0xff]
  %1401 = vmatprep.subr.mxu0 %v337
  %1402 = vmatpush1.msra.mxu0 %v336
  %1403 = vmatprep.subr.mxu0 %v340
  %1404 = vmatpush1.msra.mxu0 %v339
  %1405 = vmatprep.subr.mxu0 %v343
  %1406 = vmatpush1.msra.mxu0 %v342
  %1407 = vmatprep.subr.mxu0 %v346
  %1408 = vmatpush1.msra.mxu0 %v345
  %1409 = vmatprep.subr.mxu0 %v349
  %1410 = vmatpush1.msra.mxu0 %v348
  %1411 = vmatprep.subr.mxu0 %v352
  %1412 = vmatpush1.msra.mxu0 %v351
  %1413 = vmatprep.subr.mxu0 %v355
  %1414 = vmatpush1.msra.mxu0 %v354
  %1415 = vmatprep.subr.mxu0 %v358
  %1416 = vmatpush1.msra.mxu0 %v357
  %1417 = vmatprep.subr.mxu0 %v361
  %1418 = vmatpush1.msra.mxu0 %v360
  %1419 = vmatprep.subr.mxu0 %v364
  %1420 = vmatpush1.msra.mxu0 %v363
  %1421 = vmatprep.subr.mxu0 %v367
  %1422 = vmatpush1.msra.mxu0 %v366
  %1423 = vmatprep.subr.mxu0 %v370
  %1424 = vmatpush1.msra.mxu0 %v369
  %1425 = vmatprep.subr.mxu0 %v373
  %1426 = vmatpush1.msra.mxu0 %v372
  %1427 = vmatprep.subr.mxu0 %v376
  %1428 = vmatpush1.msra.mxu0 %v375
  %1429 = vmatprep.subr.mxu0 %v379
  %1430 = vmatpush1.msra.mxu0 %v378
  %1431 = vmatprep.subr.mxu0 %v382
  %1432 = vmatpush1.msra.mxu0 %v381
  %1433 = vmatprep.subr.mxu0 0.0
  %1434 = vmatpush1.msra.mxu0 0.0
  %1435 = vmatprep.subr.mxu0 0.0
  %1436 = vmatpush1.msra.mxu0 0.0
  %1437 = vmatprep.subr.mxu0 0.0
  %1438 = vmatpush1.msra.mxu0 0.0
  %1439 = vmatprep.subr.mxu0 0.0
  %1440 = vmatpush1.msra.mxu0 0.0
  %1441 = vmatprep.subr.mxu0 0.0
  %1442 = vmatpush1.msra.mxu0 0.0
  %1443 = vmatprep.subr.mxu0 0.0
  %1444 = vmatpush1.msra.mxu0 0.0
  %1445 = vmatprep.subr.mxu0 0.0
  %1446 = vmatpush1.msra.mxu0 0.0
  %1447 = vmatprep.subr.mxu0 0.0
  %1448 = vmatpush1.msra.mxu0 0.0
  %1449 = vmatprep.subr.mxu0 0.0
  %1450 = vmatpush1.msra.mxu0 0.0
  %1451 = vmatprep.subr.mxu0 0.0
  %1452 = vmatpush1.msra.mxu0 0.0
  %1453 = vmatprep.subr.mxu0 0.0
  %1454 = vmatpush1.msra.mxu0 0.0
  %1455 = vmatprep.subr.mxu0 0.0
  %1456 = vmatpush1.msra.mxu0 0.0
  %1457 = vmatprep.subr.mxu0 0.0
  %1458 = vmatpush1.msra.mxu0 0.0
  %1459 = vmatprep.subr.mxu0 0.0
  %1460 = vmatpush1.msra.mxu0 0.0
  %1461 = vmatprep.subr.mxu0 0.0
  %1462 = vmatpush1.msra.mxu0 0.0
  %1463 = vmatprep.subr.mxu0 0.0
  %1464 = vmatpush1.msra.mxu0 0.0
  %1465 = vmatprep.mubr.f32.mxu0 0.0
  %1466 = vmatmul.mubr.f32.gmra.mrb[0].mxu0 %v1394
  %v1467 = vpop.f32.mrb[0].mxu0
  %v1468 = vadd.f32 0.0, %v1467
  %v1469 = vpop.f32.mrb[0].mxu0
  %v1470 = vadd.f32 0.0, %v1469
  %1471 = vdwg.mxu0
  %1472 = vmatprep.subr.mxu0 0.0
  %1473 = vmatpush1.msra.mxu0 %v338
  %1474 = vmatprep.subr.mxu0 0.0
  %1475 = vmatpush1.msra.mxu0 %v341
  %1476 = vmatprep.subr.mxu0 0.0
  %1477 = vmatpush1.msra.mxu0 %v344
  %1478 = vmatprep.subr.mxu0 0.0
  %1479 = vmatpush1.msra.mxu0 %v347
  %1480 = vmatprep.subr.mxu0 0.0
  %1481 = vmatpush1.msra.mxu0 %v350
  %1482 = vmatprep.subr.mxu0 0.0
  %1483 = vmatpush1.msra.mxu0 %v353
  %1484 = vmatprep.subr.mxu0 0.0
  %1485 = vmatpush1.msra.mxu0 %v356
  %1486 = vmatprep.subr.mxu0 0.0
  %1487 = vmatpush1.msra.mxu0 %v359
  %1488 = vmatprep.subr.mxu0 0.0
  %1489 = vmatpush1.msra.mxu0 %v362
  %1490 = vmatprep.subr.mxu0 0.0
  %1491 = vmatpush1.msra.mxu0 %v365
  %1492 = vmatprep.subr.mxu0 0.0
  %1493 = vmatpush1.msra.mxu0 %v368
  %1494 = vmatprep.subr.mxu0 0.0
  %1495 = vmatpush1.msra.mxu0 %v371
  %1496 = vmatprep.subr.mxu0 0.0
  %1497 = vmatpush1.msra.mxu0 %v374
  %1498 = vmatprep.subr.mxu0 0.0
  %1499 = vmatpush1.msra.mxu0 %v377
  %1500 = vmatprep.subr.mxu0 0.0
  %1501 = vmatpush1.msra.mxu0 %v380
  %1502 = vmatprep.subr.mxu0 0.0
  %1503 = vmatpush1.msra.mxu0 %v383
  %1504 = vmatprep.subr.mxu0 0.0
  %1505 = vmatpush1.msra.mxu0 0.0
  %1506 = vmatprep.subr.mxu0 0.0
  %1507 = vmatpush1.msra.mxu0 0.0
  %1508 = vmatprep.subr.mxu0 0.0
  %1509 = vmatpush1.msra.mxu0 0.0
  %1510 = vmatprep.subr.mxu0 0.0
  %1511 = vmatpush1.msra.mxu0 0.0
  %1512 = vmatprep.subr.mxu0 0.0
  %1513 = vmatpush1.msra.mxu0 0.0
  %1514 = vmatprep.subr.mxu0 0.0
  %1515 = vmatpush1.msra.mxu0 0.0
  %1516 = vmatprep.subr.mxu0 0.0
  %1517 = vmatpush1.msra.mxu0 0.0
  %1518 = vmatprep.subr.mxu0 0.0
  %1519 = vmatpush1.msra.mxu0 0.0
  %1520 = vmatprep.subr.mxu0 0.0
  %1521 = vmatpush1.msra.mxu0 0.0
  %1522 = vmatprep.subr.mxu0 0.0
  %1523 = vmatpush1.msra.mxu0 0.0
  %1524 = vmatprep.subr.mxu0 0.0
  %1525 = vmatpush1.msra.mxu0 0.0
  %1526 = vmatprep.subr.mxu0 0.0
  %1527 = vmatpush1.msra.mxu0 0.0
  %1528 = vmatprep.subr.mxu0 0.0
  %1529 = vmatpush1.msra.mxu0 0.0
  %1530 = vmatprep.subr.mxu0 0.0
  %1531 = vmatpush1.msra.mxu0 0.0
  %1532 = vmatprep.subr.mxu0 0.0
  %1533 = vmatpush1.msra.mxu0 0.0
  %1534 = vmatprep.subr.mxu0 0.0
  %1535 = vmatpush1.msra.mxu0 0.0
  %1536 = vmatprep.mubr.f32.mxu0 0.0
  %1537 = vmatmul.mubr.f32.gmra.mrb[0].mxu0 %v1394
  %v1538 = vpop.f32.mrb[0].mxu0
  %v1539 = vadd.f32 0.0, %v1538
  %v1540 = vpop.f32.mrb[0].mxu0
  %1541 = vdwg.mxu0
  %v1542 = vadd.f32 %v1398, %v1468
  %v1543 = vxor.u32 %v1542, 2147483648
  %v1544 = vmul.f32 %v1543, 1.442695
  %v1545 = vpow.pop %v1544
  %v1546 = vadd.f32 %v1545, 1.0
  %v1547 = vrcp.pop %v1546
  %v1548 = vmul.f32 1.0, %v1547
  %v1549 = vadd.f32 %v1399, %v1470
  %v1550 = vxor.u32 %v1549, 2147483648
  %v1551 = vmul.f32 %v1550, 1.442695
  %v1552 = vpow.pop %v1551
  %v1553 = vadd.f32 %v1552, 1.0
  %v1554 = vrcp.pop %v1553
  %v1555 = vmul.f32 1.0, %v1554
  %v1556 = vadd.f32 %v1539, %v389
  %v1557 = vmul.f32 %v1548, %v1556
  %v1558 = vadd.f32 %v1400, %v1557
  %v1559 = vtanh.pop %v1558
  %v1560 = vsub.f32 %v1394, %v1559
  %v1561 = vmul.f32 %v1555, %v1560
  %v1562 = vadd.f32 %v1559, %v1561
  %s1563 = scalar_lea.vmem [#allocation3], 48
  %1564 = vst [vmem:[%s1563] sm:$0xff] %v1562
  %s1565 = scalar_lea.vmem [#allocation2], 168
  %v1566 = vld [vmem:[%s1565] sm:$0xff]
  %v1567 = vld [vmem:[%s1565 + $0x8] sm:$0xff]
  %v1568 = vld [vmem:[%s1565 + $0x10] sm:$0xff]
  %1569 = vmatprep.subr.mxu0 %v337
  %1570 = vmatpush1.msra.mxu0 %v336
  %1571 = vmatprep.subr.mxu0 %v340
  %1572 = vmatpush1.msra.mxu0 %v339
  %1573 = vmatprep.subr.mxu0 %v343
  %1574 = vmatpush1.msra.mxu0 %v342
  %1575 = vmatprep.subr.mxu0 %v346
  %1576 = vmatpush1.msra.mxu0 %v345
  %1577 = vmatprep.subr.mxu0 %v349
  %1578 = vmatpush1.msra.mxu0 %v348
  %1579 = vmatprep.subr.mxu0 %v352
  %1580 = vmatpush1.msra.mxu0 %v351
  %1581 = vmatprep.subr.mxu0 %v355
  %1582 = vmatpush1.msra.mxu0 %v354
  %1583 = vmatprep.subr.mxu0 %v358
  %1584 = vmatpush1.msra.mxu0 %v357
  %1585 = vmatprep.subr.mxu0 %v361
  %1586 = vmatpush1.msra.mxu0 %v360
  %1587 = vmatprep.subr.mxu0 %v364
  %1588 = vmatpush1.msra.mxu0 %v363
  %1589 = vmatprep.subr.mxu0 %v367
  %1590 = vmatpush1.msra.mxu0 %v366
  %1591 = vmatprep.subr.mxu0 %v370
  %1592 = vmatpush1.msra.mxu0 %v369
  %1593 = vmatprep.subr.mxu0 %v373
  %1594 = vmatpush1.msra.mxu0 %v372
  %1595 = vmatprep.subr.mxu0 %v376
  %1596 = vmatpush1.msra.mxu0 %v375
  %1597 = vmatprep.subr.mxu0 %v379
  %1598 = vmatpush1.msra.mxu0 %v378
  %1599 = vmatprep.subr.mxu0 %v382
  %1600 = vmatpush1.msra.mxu0 %v381
  %1601 = vmatprep.subr.mxu0 0.0
  %1602 = vmatpush1.msra.mxu0 0.0
  %1603 = vmatprep.subr.mxu0 0.0
  %1604 = vmatpush1.msra.mxu0 0.0
  %1605 = vmatprep.subr.mxu0 0.0
  %1606 = vmatpush1.msra.mxu0 0.0
  %1607 = vmatprep.subr.mxu0 0.0
  %1608 = vmatpush1.msra.mxu0 0.0
  %1609 = vmatprep.subr.mxu0 0.0
  %1610 = vmatpush1.msra.mxu0 0.0
  %1611 = vmatprep.subr.mxu0 0.0
  %1612 = vmatpush1.msra.mxu0 0.0
  %1613 = vmatprep.subr.mxu0 0.0
  %1614 = vmatpush1.msra.mxu0 0.0
  %1615 = vmatprep.subr.mxu0 0.0
  %1616 = vmatpush1.msra.mxu0 0.0
  %1617 = vmatprep.subr.mxu0 0.0
  %1618 = vmatpush1.msra.mxu0 0.0
  %1619 = vmatprep.subr.mxu0 0.0
  %1620 = vmatpush1.msra.mxu0 0.0
  %1621 = vmatprep.subr.mxu0 0.0
  %1622 = vmatpush1.msra.mxu0 0.0
  %1623 = vmatprep.subr.mxu0 0.0
  %1624 = vmatpush1.msra.mxu0 0.0
  %1625 = vmatprep.subr.mxu0 0.0
  %1626 = vmatpush1.msra.mxu0 0.0
  %1627 = vmatprep.subr.mxu0 0.0
  %1628 = vmatpush1.msra.mxu0 0.0
  %1629 = vmatprep.subr.mxu0 0.0
  %1630 = vmatpush1.msra.mxu0 0.0
  %1631 = vmatprep.subr.mxu0 0.0
  %1632 = vmatpush1.msra.mxu0 0.0
  %1633 = vmatprep.mubr.f32.mxu0 0.0
  %1634 = vmatmul.mubr.f32.gmra.mrb[0].mxu0 %v1562
  %v1635 = vpop.f32.mrb[0].mxu0
  %v1636 = vadd.f32 0.0, %v1635
  %v1637 = vpop.f32.mrb[0].mxu0
  %v1638 = vadd.f32 0.0, %v1637
  %1639 = vdwg.mxu0
  %1640 = vmatprep.subr.mxu0 0.0
  %1641 = vmatpush1.msra.mxu0 %v338
  %1642 = vmatprep.subr.mxu0 0.0
  %1643 = vmatpush1.msra.mxu0 %v341
  %1644 = vmatprep.subr.mxu0 0.0
  %1645 = vmatpush1.msra.mxu0 %v344
  %1646 = vmatprep.subr.mxu0 0.0
  %1647 = vmatpush1.msra.mxu0 %v347
  %1648 = vmatprep.subr.mxu0 0.0
  %1649 = vmatpush1.msra.mxu0 %v350
  %1650 = vmatprep.subr.mxu0 0.0
  %1651 = vmatpush1.msra.mxu0 %v353
  %1652 = vmatprep.subr.mxu0 0.0
  %1653 = vmatpush1.msra.mxu0 %v356
  %1654 = vmatprep.subr.mxu0 0.0
  %1655 = vmatpush1.msra.mxu0 %v359
  %1656 = vmatprep.subr.mxu0 0.0
  %1657 = vmatpush1.msra.mxu0 %v362
  %1658 = vmatprep.subr.mxu0 0.0
  %1659 = vmatpush1.msra.mxu0 %v365
  %1660 = vmatprep.subr.mxu0 0.0
  %1661 = vmatpush1.msra.mxu0 %v368
  %1662 = vmatprep.subr.mxu0 0.0
  %1663 = vmatpush1.msra.mxu0 %v371
  %1664 = vmatprep.subr.mxu0 0.0
  %1665 = vmatpush1.msra.mxu0 %v374
  %1666 = vmatprep.subr.mxu0 0.0
  %1667 = vmatpush1.msra.mxu0 %v377
  %1668 = vmatprep.subr.mxu0 0.0
  %1669 = vmatpush1.msra.mxu0 %v380
  %1670 = vmatprep.subr.mxu0 0.0
  %1671 = vmatpush1.msra.mxu0 %v383
  %1672 = vmatprep.subr.mxu0 0.0
  %1673 = vmatpush1.msra.mxu0 0.0
  %1674 = vmatprep.subr.mxu0 0.0
  %1675 = vmatpush1.msra.mxu0 0.0
  %1676 = vmatprep.subr.mxu0 0.0
  %1677 = vmatpush1.msra.mxu0 0.0
  %1678 = vmatprep.subr.mxu0 0.0
  %1679 = vmatpush1.msra.mxu0 0.0
  %1680 = vmatprep.subr.mxu0 0.0
  %1681 = vmatpush1.msra.mxu0 0.0
  %1682 = vmatprep.subr.mxu0 0.0
  %1683 = vmatpush1.msra.mxu0 0.0
  %1684 = vmatprep.subr.mxu0 0.0
  %1685 = vmatpush1.msra.mxu0 0.0
  %1686 = vmatprep.subr.mxu0 0.0
  %1687 = vmatpush1.msra.mxu0 0.0
  %1688 = vmatprep.subr.mxu0 0.0
  %1689 = vmatpush1.msra.mxu0 0.0
  %1690 = vmatprep.subr.mxu0 0.0
  %1691 = vmatpush1.msra.mxu0 0.0
  %1692 = vmatprep.subr.mxu0 0.0
  %1693 = vmatpush1.msra.mxu0 0.0
  %1694 = vmatprep.subr.mxu0 0.0
  %1695 = vmatpush1.msra.mxu0 0.0
  %1696 = vmatprep.subr.mxu0 0.0
  %1697 = vmatpush1.msra.mxu0 0.0
  %1698 = vmatprep.subr.mxu0 0.0
  %1699 = vmatpush1.msra.mxu0 0.0
  %1700 = vmatprep.subr.mxu0 0.0
  %1701 = vmatpush1.msra.mxu0 0.0
  %1702 = vmatprep.subr.mxu0 0.0
  %1703 = vmatpush1.msra.mxu0 0.0
  %1704 = vmatprep.mubr.f32.mxu0 0.0
  %1705 = vmatmul.mubr.f32.gmra.mrb[0].mxu0 %v1562
  %v1706 = vpop.f32.mrb[0].mxu0
  %v1707 = vadd.f32 0.0, %v1706
  %v1708 = vpop.f32.mrb[0].mxu0
  %1709 = vdwg.mxu0
  %v1710 = vadd.f32 %v1566, %v1636
  %v1711 = vxor.u32 %v1710, 2147483648
  %v1712 = vmul.f32 %v1711, 1.442695
  %v1713 = vpow.pop %v1712
  %v1714 = vadd.f32 %v1713, 1.0
  %v1715 = vrcp.pop %v1714
  %v1716 = vmul.f32 1.0, %v1715
  %v1717 = vadd.f32 %v1567, %v1638
  %v1718 = vxor.u32 %v1717, 2147483648
  %v1719 = vmul.f32 %v1718, 1.442695
  %v1720 = vpow.pop %v1719
  %v1721 = vadd.f32 %v1720, 1.0
  %v1722 = vrcp.pop %v1721
  %v1723 = vmul.f32 1.0, %v1722
  %v1724 = vadd.f32 %v1707, %v389
  %v1725 = vmul.f32 %v1716, %v1724
  %v1726 = vadd.f32 %v1568, %v1725
  %v1727 = vtanh.pop %v1726
  %v1728 = vsub.f32 %v1562, %v1727
  %v1729 = vmul.f32 %v1723, %v1728
  %v1730 = vadd.f32 %v1727, %v1729
  %s1731 = scalar_lea.vmem [#allocation3], 56
  %1732 = vst [vmem:[%s1731] sm:$0xff] %v1730
  %v1733 = vld [vmem:[#allocation3] sm:$0xff]
  %v1734 = vld [vmem:[#allocation3 + $0x8] sm:$0xff]
  %v1735 = vld [vmem:[#allocation3 + $0x10] sm:$0xff]
  %v1736 = vld [vmem:[#allocation3 + $0x18] sm:$0xff]
  %v1737 = vld [vmem:[#allocation3 + $0x20] sm:$0xff]
  %v1738 = vld [vmem:[#allocation3 + $0x28] sm:$0xff]
  %v1739 = vld [vmem:[#allocation3 + $0x30] sm:$0xff]
  %v1740 = vld [vmem:[#allocation3 + $0x38] sm:$0xff]
  %v1741 = vld [vmem:[%s5] sm:$0xff]
  %v1742 = vld [vmem:[%s5 + $0x8] sm:$0xff]
  %v1743 = vld [vmem:[%s5 + $0x10] sm:$0xff]
  %v1744 = vld [vmem:[%s5 + $0x18] sm:$0xff]
  %v1745 = vld [vmem:[%s5 + $0x20] sm:$0xff]
  %v1746 = vld [vmem:[%s5 + $0x28] sm:$0xff]
  %v1747 = vld [vmem:[%s5 + $0x30] sm:$0xff]
  %v1748 = vld [vmem:[%s5 + $0x38] sm:$0xff]
  %v1749 = vld [vmem:[%s5 + $0x40] sm:$0xff]
  %v1750 = vld [vmem:[%s5 + $0x48] sm:$0xff]
  %v1751 = vld [vmem:[%s5 + $0x50] sm:$0xff]
  %v1752 = vld [vmem:[%s5 + $0x58] sm:$0xff]
  %v1753 = vld [vmem:[%s5 + $0x60] sm:$0xff]
  %v1754 = vld [vmem:[%s5 + $0x68] sm:$0xff]
  %v1755 = vld [vmem:[%s5 + $0x70] sm:$0xff]
  %v1756 = vld [vmem:[%s5 + $0x78] sm:$0xff]
  %v1757 = vld [vmem:[%s5 + $0x80] sm:$0xff]
  %v1758 = vld [vmem:[%s5 + $0x88] sm:$0xff]
  %v1759 = vld [vmem:[%s5 + $0x90] sm:$0xff]
  %v1760 = vld [vmem:[%s5 + $0x98] sm:$0xff]
  %v1761 = vld [vmem:[%s5 + $0xa0] sm:$0xff]
  %v1762 = vld [vmem:[%s5 + $0xa8] sm:$0xff]
  %v1763 = vld [vmem:[%s5 + $0xb0] sm:$0xff]
  %v1764 = vld [vmem:[%s5 + $0xb8] sm:$0xff]
  %v1765 = vld [vmem:[%s5 + $0xc0] sm:$0xff]
  %v1766 = vld [vmem:[%s5 + $0xc8] sm:$0xff]
  %v1767 = vld [vmem:[%s5 + $0xd0] sm:$0xff]
  %v1768 = vld [vmem:[%s5 + $0xd8] sm:$0xff]
  %v1769 = vld [vmem:[%s5 + $0xe0] sm:$0xff]
  %v1770 = vld [vmem:[%s5 + $0xe8] sm:$0xff]
  %v1771 = vld [vmem:[%s5 + $0xf0] sm:$0xff]
  %v1772 = vld [vmem:[%s5 + $0xf8] sm:$0xff]
  %v1773 = vld [vmem:[%s5 + $0x100] sm:$0xff]
  %v1774 = vld [vmem:[%s5 + $0x108] sm:$0xff]
  %v1775 = vld [vmem:[%s5 + $0x110] sm:$0xff]
  %v1776 = vld [vmem:[%s5 + $0x118] sm:$0xff]
  %v1777 = vld [vmem:[%s5 + $0x120] sm:$0xff]
  %v1778 = vld [vmem:[%s5 + $0x128] sm:$0xff]
  %v1779 = vld [vmem:[%s5 + $0x130] sm:$0xff]
  %v1780 = vld [vmem:[%s5 + $0x138] sm:$0xff]
  %v1781 = vld [vmem:[%s5 + $0x140] sm:$0xff]
  %v1782 = vld [vmem:[%s5 + $0x148] sm:$0xff]
  %v1783 = vld [vmem:[%s5 + $0x150] sm:$0xff]
  %v1784 = vld [vmem:[%s5 + $0x158] sm:$0xff]
  %v1785 = vld [vmem:[%s5 + $0x160] sm:$0xff]
  %v1786 = vld [vmem:[%s5 + $0x168] sm:$0xff]
  %v1787 = vld [vmem:[%s5 + $0x170] sm:$0xff]
  %v1788 = vld [vmem:[%s5 + $0x178] sm:$0xff]
  %v1789 = vld [vmem:[%s7] sm:$0x7]
  %v1791 = vlaneseq
  %v1792 = vshrl.u32 %v1791, 7
  %v1793 = vsub.s32 0, %v1792
  %v1794 = vrot.slane %v1789, %v1793
  %v1795 = vlaneseq
  %v1796 = vshrl.u32 %v1795, 7
  %v1797 = vsub.s32 1, %v1796
  %v1798 = vrot.slane %v1789, %v1797
  %v1799 = vlaneseq
  %v1800 = vshrl.u32 %v1799, 7
  %v1801 = vsub.s32 2, %v1800
  %v1802 = vrot.slane %v1789, %v1801
  %1806 = vmatprep.subr.mxu0 %v1742
  %1807 = vmatpush1.msra.mxu0 %v1741
  %1808 = vmatprep.subr.mxu0 %v1745
  %1809 = vmatpush1.msra.mxu0 %v1744
  %1810 = vmatprep.subr.mxu0 %v1748
  %1811 = vmatpush1.msra.mxu0 %v1747
  %1812 = vmatprep.subr.mxu0 %v1751
  %1813 = vmatpush1.msra.mxu0 %v1750
  %1814 = vmatprep.subr.mxu0 %v1754
  %1815 = vmatpush1.msra.mxu0 %v1753
  %1816 = vmatprep.subr.mxu0 %v1757
  %1817 = vmatpush1.msra.mxu0 %v1756
  %1818 = vmatprep.subr.mxu0 %v1760
  %1819 = vmatpush1.msra.mxu0 %v1759
  %1820 = vmatprep.subr.mxu0 %v1763
  %1821 = vmatpush1.msra.mxu0 %v1762
  %1822 = vmatprep.subr.mxu0 %v1766
  %1823 = vmatpush1.msra.mxu0 %v1765
  %1824 = vmatprep.subr.mxu0 %v1769
  %1825 = vmatpush1.msra.mxu0 %v1768
  %1826 = vmatprep.subr.mxu0 %v1772
  %1827 = vmatpush1.msra.mxu0 %v1771
  %1828 = vmatprep.subr.mxu0 %v1775
  %1829 = vmatpush1.msra.mxu0 %v1774
  %1830 = vmatprep.subr.mxu0 %v1778
  %1831 = vmatpush1.msra.mxu0 %v1777
  %1832 = vmatprep.subr.mxu0 %v1781
  %1833 = vmatpush1.msra.mxu0 %v1780
  %1834 = vmatprep.subr.mxu0 %v1784
  %1835 = vmatpush1.msra.mxu0 %v1783
  %1836 = vmatprep.subr.mxu0 %v1787
  %1837 = vmatpush1.msra.mxu0 %v1786
  %1838 = vmatprep.subr.mxu0 0.0
  %1839 = vmatpush1.msra.mxu0 0.0
  %1840 = vmatprep.subr.mxu0 0.0
  %1841 = vmatpush1.msra.mxu0 0.0
  %1842 = vmatprep.subr.mxu0 0.0
  %1843 = vmatpush1.msra.mxu0 0.0
  %1844 = vmatprep.subr.mxu0 0.0
  %1845 = vmatpush1.msra.mxu0 0.0
  %1846 = vmatprep.subr.mxu0 0.0
  %1847 = vmatpush1.msra.mxu0 0.0
  %1848 = vmatprep.subr.mxu0 0.0
  %1849 = vmatpush1.msra.mxu0 0.0
  %1850 = vmatprep.subr.mxu0 0.0
  %1851 = vmatpush1.msra.mxu0 0.0
  %1852 = vmatprep.subr.mxu0 0.0
  %1853 = vmatpush1.msra.mxu0 0.0
  %1854 = vmatprep.subr.mxu0 0.0
  %1855 = vmatpush1.msra.mxu0 0.0
  %1856 = vmatprep.subr.mxu0 0.0
  %1857 = vmatpush1.msra.mxu0 0.0
  %1858 = vmatprep.subr.mxu0 0.0
  %1859 = vmatpush1.msra.mxu0 0.0
  %1860 = vmatprep.subr.mxu0 0.0
  %1861 = vmatpush1.msra.mxu0 0.0
  %1862 = vmatprep.subr.mxu0 0.0
  %1863 = vmatpush1.msra.mxu0 0.0
  %1864 = vmatprep.subr.mxu0 0.0
  %1865 = vmatpush1.msra.mxu0 0.0
  %1866 = vmatprep.subr.mxu0 0.0
  %1867 = vmatpush1.msra.mxu0 0.0
  %1868 = vmatprep.subr.mxu0 0.0
  %1869 = vmatpush1.msra.mxu0 0.0
  %1870 = vmatprep.mubr.f32.mxu0 0.0
  %1871 = vmatmul.mubr.f32.gmra.mrb[0].mxu0 %v1733
  %v1872 = vpop.f32.mrb[0].mxu0
  %v1873 = vadd.f32 %v1794, %v1872
  %v1874 = vpop.f32.mrb[0].mxu0
  %v1875 = vadd.f32 %v1798, %v1874
  %1876 = vmatprep.mubr.f32.mxu0 0.0
  %1877 = vmatmul.mubr.f32.gmra.mrb[0].mxu0 %v1734
  %v1878 = vpop.f32.mrb[0].mxu0
  %v1879 = vadd.f32 %v1794, %v1878
  %v1880 = vpop.f32.mrb[0].mxu0
  %v1881 = vadd.f32 %v1798, %v1880
  %1882 = vmatprep.mubr.f32.mxu0 0.0
  %1883 = vmatmul.mubr.f32.gmra.mrb[0].mxu0 %v1735
  %v1884 = vpop.f32.mrb[0].mxu0
  %v1885 = vadd.f32 %v1794, %v1884
  %v1886 = vpop.f32.mrb[0].mxu0
  %v1887 = vadd.f32 %v1798, %v1886
  %1888 = vmatprep.mubr.f32.mxu0 0.0
  %1889 = vmatmul.mubr.f32.gmra.mrb[0].mxu0 %v1736
  %v1890 = vpop.f32.mrb[0].mxu0
  %v1891 = vadd.f32 %v1794, %v1890
  %v1892 = vpop.f32.mrb[0].mxu0
  %v1893 = vadd.f32 %v1798, %v1892
  %1894 = vmatprep.mubr.f32.mxu0 0.0
  %1895 = vmatmul.mubr.f32.gmra.mrb[0].mxu0 %v1737
  %v1896 = vpop.f32.mrb[0].mxu0
  %v1897 = vadd.f32 %v1794, %v1896
  %v1898 = vpop.f32.mrb[0].mxu0
  %v1899 = vadd.f32 %v1798, %v1898
  %1900 = vmatprep.mubr.f32.mxu0 0.0
  %1901 = vmatmul.mubr.f32.gmra.mrb[0].mxu0 %v1738
  %v1902 = vpop.f32.mrb[0].mxu0
  %v1903 = vadd.f32 %v1794, %v1902
  %v1904 = vpop.f32.mrb[0].mxu0
  %v1905 = vadd.f32 %v1798, %v1904
  %1906 = vmatprep.mubr.f32.mxu0 0.0
  %1907 = vmatmul.mubr.f32.gmra.mrb[0].mxu0 %v1739
  %v1908 = vpop.f32.mrb[0].mxu0
  %v1909 = vadd.f32 %v1794, %v1908
  %v1910 = vpop.f32.mrb[0].mxu0
  %v1911 = vadd.f32 %v1798, %v1910
  %1912 = vmatprep.mubr.f32.mxu0 0.0
  %1913 = vmatmul.mubr.f32.gmra.mrb[0].mxu0 %v1740
  %v1914 = vpop.f32.mrb[0].mxu0
  %v1915 = vadd.f32 %v1794, %v1914
  %v1916 = vpop.f32.mrb[0].mxu0
  %v1917 = vadd.f32 %v1798, %v1916
  %1918 = vdwg.mxu0
  %1919 = vmatprep.subr.mxu0 0.0
  %1920 = vmatpush1.msra.mxu0 %v1743
  %1921 = vmatprep.subr.mxu0 0.0
  %1922 = vmatpush1.msra.mxu0 %v1746
  %1923 = vmatprep.subr.mxu0 0.0
  %1924 = vmatpush1.msra.mxu0 %v1749
  %1925 = vmatprep.subr.mxu0 0.0
  %1926 = vmatpush1.msra.mxu0 %v1752
  %1927 = vmatprep.subr.mxu0 0.0
  %1928 = vmatpush1.msra.mxu0 %v1755
  %1929 = vmatprep.subr.mxu0 0.0
  %1930 = vmatpush1.msra.mxu0 %v1758
  %1931 = vmatprep.subr.mxu0 0.0
  %1932 = vmatpush1.msra.mxu0 %v1761
  %1933 = vmatprep.subr.mxu0 0.0
  %1934 = vmatpush1.msra.mxu0 %v1764
  %1935 = vmatprep.subr.mxu0 0.0
  %1936 = vmatpush1.msra.mxu0 %v1767
  %1937 = vmatprep.subr.mxu0 0.0
  %1938 = vmatpush1.msra.mxu0 %v1770
  %1939 = vmatprep.subr.mxu0 0.0
  %1940 = vmatpush1.msra.mxu0 %v1773
  %1941 = vmatprep.subr.mxu0 0.0
  %1942 = vmatpush1.msra.mxu0 %v1776
  %1943 = vmatprep.subr.mxu0 0.0
  %1944 = vmatpush1.msra.mxu0 %v1779
  %1945 = vmatprep.subr.mxu0 0.0
  %1946 = vmatpush1.msra.mxu0 %v1782
  %1947 = vmatprep.subr.mxu0 0.0
  %1948 = vmatpush1.msra.mxu0 %v1785
  %1949 = vmatprep.subr.mxu0 0.0
  %1950 = vmatpush1.msra.mxu0 %v1788
  %1951 = vmatprep.subr.mxu0 0.0
  %1952 = vmatpush1.msra.mxu0 0.0
  %1953 = vmatprep.subr.mxu0 0.0
  %1954 = vmatpush1.msra.mxu0 0.0
  %1955 = vmatprep.subr.mxu0 0.0
  %1956 = vmatpush1.msra.mxu0 0.0
  %1957 = vmatprep.subr.mxu0 0.0
  %1958 = vmatpush1.msra.mxu0 0.0
  %1959 = vmatprep.subr.mxu0 0.0
  %1960 = vmatpush1.msra.mxu0 0.0
  %1961 = vmatprep.subr.mxu0 0.0
  %1962 = vmatpush1.msra.mxu0 0.0
  %1963 = vmatprep.subr.mxu0 0.0
  %1964 = vmatpush1.msra.mxu0 0.0
  %1965 = vmatprep.subr.mxu0 0.0
  %1966 = vmatpush1.msra.mxu0 0.0
  %1967 = vmatprep.subr.mxu0 0.0
  %1968 = vmatpush1.msra.mxu0 0.0
  %1969 = vmatprep.subr.mxu0 0.0
  %1970 = vmatpush1.msra.mxu0 0.0
  %1971 = vmatprep.subr.mxu0 0.0
  %1972 = vmatpush1.msra.mxu0 0.0
  %1973 = vmatprep.subr.mxu0 0.0
  %1974 = vmatpush1.msra.mxu0 0.0
  %1975 = vmatprep.subr.mxu0 0.0
  %1976 = vmatpush1.msra.mxu0 0.0
  %1977 = vmatprep.subr.mxu0 0.0
  %1978 = vmatpush1.msra.mxu0 0.0
  %1979 = vmatprep.subr.mxu0 0.0
  %1980 = vmatpush1.msra.mxu0 0.0
  %1981 = vmatprep.subr.mxu0 0.0
  %1982 = vmatpush1.msra.mxu0 0.0
  %1983 = vmatprep.mubr.f32.mxu0 0.0
  %1984 = vmatmul.mubr.f32.gmra.mrb[0].mxu0 %v1733
  %v1985 = vpop.f32.mrb[0].mxu0
  %v1986 = vadd.f32 %v1802, %v1985
  %v1987 = vpop.f32.mrb[0].mxu0
  %1988 = vmatprep.mubr.f32.mxu0 0.0
  %1989 = vmatmul.mubr.f32.gmra.mrb[0].mxu0 %v1734
  %v1990 = vpop.f32.mrb[0].mxu0
  %v1991 = vadd.f32 %v1802, %v1990
  %v1992 = vpop.f32.mrb[0].mxu0
  %1993 = vmatprep.mubr.f32.mxu0 0.0
  %1994 = vmatmul.mubr.f32.gmra.mrb[0].mxu0 %v1735
  %v1995 = vpop.f32.mrb[0].mxu0
  %v1996 = vadd.f32 %v1802, %v1995
  %v1997 = vpop.f32.mrb[0].mxu0
  %1998 = vmatprep.mubr.f32.mxu0 0.0
  %1999 = vmatmul.mubr.f32.gmra.mrb[0].mxu0 %v1736
  %v2000 = vpop.f32.mrb[0].mxu0
  %v2001 = vadd.f32 %v1802, %v2000
  %v2002 = vpop.f32.mrb[0].mxu0
  %2003 = vmatprep.mubr.f32.mxu0 0.0
  %2004 = vmatmul.mubr.f32.gmra.mrb[0].mxu0 %v1737
  %v2005 = vpop.f32.mrb[0].mxu0
  %v2006 = vadd.f32 %v1802, %v2005
  %v2007 = vpop.f32.mrb[0].mxu0
  %2008 = vmatprep.mubr.f32.mxu0 0.0
  %2009 = vmatmul.mubr.f32.gmra.mrb[0].mxu0 %v1738
  %v2010 = vpop.f32.mrb[0].mxu0
  %v2011 = vadd.f32 %v1802, %v2010
  %v2012 = vpop.f32.mrb[0].mxu0
  %2013 = vmatprep.mubr.f32.mxu0 0.0
  %2014 = vmatmul.mubr.f32.gmra.mrb[0].mxu0 %v1739
  %v2015 = vpop.f32.mrb[0].mxu0
  %v2016 = vadd.f32 %v1802, %v2015
  %v2017 = vpop.f32.mrb[0].mxu0
  %2018 = vmatprep.mubr.f32.mxu0 0.0
  %2019 = vmatmul.mubr.f32.gmra.mrb[0].mxu0 %v1740
  %v2020 = vpop.f32.mrb[0].mxu0
  %v2021 = vadd.f32 %v1802, %v2020
  %v2022 = vpop.f32.mrb[0].mxu0
  %2023 = vdwg.mxu0
  %2024 = vst [vmem:[#allocation2] sm:$0xff] %v1873
  %2025 = vst [vmem:[#allocation2 + $0x8] sm:$0xff] %v1875
  %2026 = vst [vmem:[#allocation2 + $0x10] sm:$0xff] %v1986
  %2027 = vst [vmem:[#allocation2 + $0x18] sm:$0xff] %v1879
  %2028 = vst [vmem:[#allocation2 + $0x20] sm:$0xff] %v1881
  %2029 = vst [vmem:[#allocation2 + $0x28] sm:$0xff] %v1991
  %2030 = vst [vmem:[#allocation2 + $0x30] sm:$0xff] %v1885
  %2031 = vst [vmem:[#allocation2 + $0x38] sm:$0xff] %v1887
  %2032 = vst [vmem:[#allocation2 + $0x40] sm:$0xff] %v1996
  %2033 = vst [vmem:[#allocation2 + $0x48] sm:$0xff] %v1891
  %2034 = vst [vmem:[#allocation2 + $0x50] sm:$0xff] %v1893
  %2035 = vst [vmem:[#allocation2 + $0x58] sm:$0xff] %v2001
  %2036 = vst [vmem:[#allocation2 + $0x60] sm:$0xff] %v1897
  %2037 = vst [vmem:[#allocation2 + $0x68] sm:$0xff] %v1899
  %2038 = vst [vmem:[#allocation2 + $0x70] sm:$0xff] %v2006
  %2039 = vst [vmem:[#allocation2 + $0x78] sm:$0xff] %v1903
  %2040 = vst [vmem:[#allocation2 + $0x80] sm:$0xff] %v1905
  %2041 = vst [vmem:[#allocation2 + $0x88] sm:$0xff] %v2011
  %2042 = vst [vmem:[#allocation2 + $0x90] sm:$0xff] %v1909
  %2043 = vst [vmem:[#allocation2 + $0x98] sm:$0xff] %v1911
  %2044 = vst [vmem:[#allocation2 + $0xa0] sm:$0xff] %v2016
  %2045 = vst [vmem:[#allocation2 + $0xa8] sm:$0xff] %v1915
  %2046 = vst [vmem:[#allocation2 + $0xb0] sm:$0xff] %v1917
  %2047 = vst [vmem:[#allocation2 + $0xb8] sm:$0xff] %v2021
  %v2048 = vld [vmem:[%s6] sm:$0xff]
  %v2049 = vld [vmem:[%s6 + $0x8] sm:$0xff]
  %v2050 = vld [vmem:[%s6 + $0x10] sm:$0xff]
  %v2051 = vld [vmem:[%s6 + $0x18] sm:$0xff]
  %v2052 = vld [vmem:[%s6 + $0x20] sm:$0xff]
  %v2053 = vld [vmem:[%s6 + $0x28] sm:$0xff]
  %v2054 = vld [vmem:[%s6 + $0x30] sm:$0xff]
  %v2055 = vld [vmem:[%s6 + $0x38] sm:$0xff]
  %v2056 = vld [vmem:[%s6 + $0x40] sm:$0xff]
  %v2057 = vld [vmem:[%s6 + $0x48] sm:$0xff]
  %v2058 = vld [vmem:[%s6 + $0x50] sm:$0xff]
  %v2059 = vld [vmem:[%s6 + $0x58] sm:$0xff]
  %v2060 = vld [vmem:[%s6 + $0x60] sm:$0xff]
  %v2061 = vld [vmem:[%s6 + $0x68] sm:$0xff]
  %v2062 = vld [vmem:[%s6 + $0x70] sm:$0xff]
  %v2063 = vld [vmem:[%s6 + $0x78] sm:$0xff]
  %v2064 = vld [vmem:[%s6 + $0x80] sm:$0xff]
  %v2065 = vld [vmem:[%s6 + $0x88] sm:$0xff]
  %v2066 = vld [vmem:[%s6 + $0x90] sm:$0xff]
  %v2067 = vld [vmem:[%s6 + $0x98] sm:$0xff]
  %v2068 = vld [vmem:[%s6 + $0xa0] sm:$0xff]
  %v2069 = vld [vmem:[%s6 + $0xa8] sm:$0xff]
  %v2070 = vld [vmem:[%s6 + $0xb0] sm:$0xff]
  %v2071 = vld [vmem:[%s6 + $0xb8] sm:$0xff]
  %v2072 = vld [vmem:[%s6 + $0xc0] sm:$0xff]
  %v2073 = vld [vmem:[%s6 + $0xc8] sm:$0xff]
  %v2074 = vld [vmem:[%s6 + $0xd0] sm:$0xff]
  %v2075 = vld [vmem:[%s6 + $0xd8] sm:$0xff]
  %v2076 = vld [vmem:[%s6 + $0xe0] sm:$0xff]
  %v2077 = vld [vmem:[%s6 + $0xe8] sm:$0xff]
  %v2078 = vld [vmem:[%s6 + $0xf0] sm:$0xff]
  %v2079 = vld [vmem:[%s6 + $0xf8] sm:$0xff]
  %v2080 = vld [vmem:[%s6 + $0x100] sm:$0xff]
  %v2081 = vld [vmem:[%s6 + $0x108] sm:$0xff]
  %v2082 = vld [vmem:[%s6 + $0x110] sm:$0xff]
  %v2083 = vld [vmem:[%s6 + $0x118] sm:$0xff]
  %v2084 = vld [vmem:[%s6 + $0x120] sm:$0xff]
  %v2085 = vld [vmem:[%s6 + $0x128] sm:$0xff]
  %v2086 = vld [vmem:[%s6 + $0x130] sm:$0xff]
  %v2087 = vld [vmem:[%s6 + $0x138] sm:$0xff]
  %v2088 = vld [vmem:[%s6 + $0x140] sm:$0xff]
  %v2089 = vld [vmem:[%s6 + $0x148] sm:$0xff]
  %v2090 = vld [vmem:[%s6 + $0x150] sm:$0xff]
  %v2091 = vld [vmem:[%s6 + $0x158] sm:$0xff]
  %v2092 = vld [vmem:[%s6 + $0x160] sm:$0xff]
  %v2093 = vld [vmem:[%s6 + $0x168] sm:$0xff]
  %v2094 = vld [vmem:[%s6 + $0x170] sm:$0xff]
  %v2095 = vld [vmem:[%s6 + $0x178] sm:$0xff]
  %v2096 = vld [vmem:[%s8] sm:$0x1]
  %v2098 = vlaneseq
  %v2099 = vshrl.u32 %v2098, 7
  %v2100 = vsub.s32 0, %v2099
  %v2101 = vrot.slane %v2096, %v2100
  %v2103 = vld [vmem:[#allocation2] sm:$0xff]
  %v2104 = vld [vmem:[#allocation2 + $0x8] sm:$0xff]
  %v2105 = vld [vmem:[#allocation2 + $0x10] sm:$0xff]
  %2106 = vmatprep.subr.mxu0 %v2049
  %2107 = vmatpush1.msra.mxu0 %v2048
  %2108 = vmatprep.subr.mxu0 %v2052
  %2109 = vmatpush1.msra.mxu0 %v2051
  %2110 = vmatprep.subr.mxu0 %v2055
  %2111 = vmatpush1.msra.mxu0 %v2054
  %2112 = vmatprep.subr.mxu0 %v2058
  %2113 = vmatpush1.msra.mxu0 %v2057
  %2114 = vmatprep.subr.mxu0 %v2061
  %2115 = vmatpush1.msra.mxu0 %v2060
  %2116 = vmatprep.subr.mxu0 %v2064
  %2117 = vmatpush1.msra.mxu0 %v2063
  %2118 = vmatprep.subr.mxu0 %v2067
  %2119 = vmatpush1.msra.mxu0 %v2066
  %2120 = vmatprep.subr.mxu0 %v2070
  %2121 = vmatpush1.msra.mxu0 %v2069
  %2122 = vmatprep.subr.mxu0 %v2073
  %2123 = vmatpush1.msra.mxu0 %v2072
  %2124 = vmatprep.subr.mxu0 %v2076
  %2125 = vmatpush1.msra.mxu0 %v2075
  %2126 = vmatprep.subr.mxu0 %v2079
  %2127 = vmatpush1.msra.mxu0 %v2078
  %2128 = vmatprep.subr.mxu0 %v2082
  %2129 = vmatpush1.msra.mxu0 %v2081
  %2130 = vmatprep.subr.mxu0 %v2085
  %2131 = vmatpush1.msra.mxu0 %v2084
  %2132 = vmatprep.subr.mxu0 %v2088
  %2133 = vmatpush1.msra.mxu0 %v2087
  %2134 = vmatprep.subr.mxu0 %v2091
  %2135 = vmatpush1.msra.mxu0 %v2090
  %2136 = vmatprep.subr.mxu0 %v2094
  %2137 = vmatpush1.msra.mxu0 %v2093
  %2138 = vmatprep.subr.mxu0 0.0
  %2139 = vmatpush1.msra.mxu0 0.0
  %2140 = vmatprep.subr.mxu0 0.0
  %2141 = vmatpush1.msra.mxu0 0.0
  %2142 = vmatprep.subr.mxu0 0.0
  %2143 = vmatpush1.msra.mxu0 0.0
  %2144 = vmatprep.subr.mxu0 0.0
  %2145 = vmatpush1.msra.mxu0 0.0
  %2146 = vmatprep.subr.mxu0 0.0
  %2147 = vmatpush1.msra.mxu0 0.0
  %2148 = vmatprep.subr.mxu0 0.0
  %2149 = vmatpush1.msra.mxu0 0.0
  %2150 = vmatprep.subr.mxu0 0.0
  %2151 = vmatpush1.msra.mxu0 0.0
  %2152 = vmatprep.subr.mxu0 0.0
  %2153 = vmatpush1.msra.mxu0 0.0
  %2154 = vmatprep.subr.mxu0 0.0
  %2155 = vmatpush1.msra.mxu0 0.0
  %2156 = vmatprep.subr.mxu0 0.0
  %2157 = vmatpush1.msra.mxu0 0.0
  %2158 = vmatprep.subr.mxu0 0.0
  %2159 = vmatpush1.msra.mxu0 0.0
  %2160 = vmatprep.subr.mxu0 0.0
  %2161 = vmatpush1.msra.mxu0 0.0
  %2162 = vmatprep.subr.mxu0 0.0
  %2163 = vmatpush1.msra.mxu0 0.0
  %2164 = vmatprep.subr.mxu0 0.0
  %2165 = vmatpush1.msra.mxu0 0.0
  %2166 = vmatprep.subr.mxu0 0.0
  %2167 = vmatpush1.msra.mxu0 0.0
  %2168 = vmatprep.subr.mxu0 0.0
  %2169 = vmatpush1.msra.mxu0 0.0
  %2170 = vmatprep.mubr.f32.mxu0 0.0
  %2171 = vmatmul.mubr.f32.gmra.mrb[0].mxu0 0.0
  %v2172 = vpop.f32.mrb[0].mxu0
  %v2173 = vadd.f32 0.0, %v2172
  %v2174 = vpop.f32.mrb[0].mxu0
  %v2175 = vadd.f32 0.0, %v2174
  %2176 = vdwg.mxu0
  %2177 = vmatprep.subr.mxu0 0.0
  %2178 = vmatpush1.msra.mxu0 %v2050
  %2179 = vmatprep.subr.mxu0 0.0
  %2180 = vmatpush1.msra.mxu0 %v2053
  %2181 = vmatprep.subr.mxu0 0.0
  %2182 = vmatpush1.msra.mxu0 %v2056
  %2183 = vmatprep.subr.mxu0 0.0
  %2184 = vmatpush1.msra.mxu0 %v2059
  %2185 = vmatprep.subr.mxu0 0.0
  %2186 = vmatpush1.msra.mxu0 %v2062
  %2187 = vmatprep.subr.mxu0 0.0
  %2188 = vmatpush1.msra.mxu0 %v2065
  %2189 = vmatprep.subr.mxu0 0.0
  %2190 = vmatpush1.msra.mxu0 %v2068
  %2191 = vmatprep.subr.mxu0 0.0
  %2192 = vmatpush1.msra.mxu0 %v2071
  %2193 = vmatprep.subr.mxu0 0.0
  %2194 = vmatpush1.msra.mxu0 %v2074
  %2195 = vmatprep.subr.mxu0 0.0
  %2196 = vmatpush1.msra.mxu0 %v2077
  %2197 = vmatprep.subr.mxu0 0.0
  %2198 = vmatpush1.msra.mxu0 %v2080
  %2199 = vmatprep.subr.mxu0 0.0
  %2200 = vmatpush1.msra.mxu0 %v2083
  %2201 = vmatprep.subr.mxu0 0.0
  %2202 = vmatpush1.msra.mxu0 %v2086
  %2203 = vmatprep.subr.mxu0 0.0
  %2204 = vmatpush1.msra.mxu0 %v2089
  %2205 = vmatprep.subr.mxu0 0.0
  %2206 = vmatpush1.msra.mxu0 %v2092
  %2207 = vmatprep.subr.mxu0 0.0
  %2208 = vmatpush1.msra.mxu0 %v2095
  %2209 = vmatprep.subr.mxu0 0.0
  %2210 = vmatpush1.msra.mxu0 0.0
  %2211 = vmatprep.subr.mxu0 0.0
  %2212 = vmatpush1.msra.mxu0 0.0
  %2213 = vmatprep.subr.mxu0 0.0
  %2214 = vmatpush1.msra.mxu0 0.0
  %2215 = vmatprep.subr.mxu0 0.0
  %2216 = vmatpush1.msra.mxu0 0.0
  %2217 = vmatprep.subr.mxu0 0.0
  %2218 = vmatpush1.msra.mxu0 0.0
  %2219 = vmatprep.subr.mxu0 0.0
  %2220 = vmatpush1.msra.mxu0 0.0
  %2221 = vmatprep.subr.mxu0 0.0
  %2222 = vmatpush1.msra.mxu0 0.0
  %2223 = vmatprep.subr.mxu0 0.0
  %2224 = vmatpush1.msra.mxu0 0.0
  %2225 = vmatprep.subr.mxu0 0.0
  %2226 = vmatpush1.msra.mxu0 0.0
  %2227 = vmatprep.subr.mxu0 0.0
  %2228 = vmatpush1.msra.mxu0 0.0
  %2229 = vmatprep.subr.mxu0 0.0
  %2230 = vmatpush1.msra.mxu0 0.0
  %2231 = vmatprep.subr.mxu0 0.0
  %2232 = vmatpush1.msra.mxu0 0.0
  %2233 = vmatprep.subr.mxu0 0.0
  %2234 = vmatpush1.msra.mxu0 0.0
  %2235 = vmatprep.subr.mxu0 0.0
  %2236 = vmatpush1.msra.mxu0 0.0
  %2237 = vmatprep.subr.mxu0 0.0
  %2238 = vmatpush1.msra.mxu0 0.0
  %2239 = vmatprep.subr.mxu0 0.0
  %2240 = vmatpush1.msra.mxu0 0.0
  %2241 = vmatprep.mubr.f32.mxu0 0.0
  %2242 = vmatmul.mubr.f32.gmra.mrb[0].mxu0 0.0
  %v2243 = vpop.f32.mrb[0].mxu0
  %v2244 = vadd.f32 0.0, %v2243
  %v2245 = vpop.f32.mrb[0].mxu0
  %2246 = vdwg.mxu0
  %v2247 = vadd.f32 %v2103, %v2173
  %v2248 = vxor.u32 %v2247, 2147483648
  %v2249 = vmul.f32 %v2248, 1.442695
  %v2250 = vpow.pop %v2249
  %v2251 = vadd.f32 %v2250, 1.0
  %v2252 = vrcp.pop %v2251
  %v2253 = vmul.f32 1.0, %v2252
  %v2254 = vadd.f32 %v2104, %v2175
  %v2255 = vxor.u32 %v2254, 2147483648
  %v2256 = vmul.f32 %v2255, 1.442695
  %v2257 = vpow.pop %v2256
  %v2258 = vadd.f32 %v2257, 1.0
  %v2259 = vrcp.pop %v2258
  %v2260 = vmul.f32 1.0, %v2259
  %v2261 = vadd.f32 %v2244, %v2101
  %v2262 = vmul.f32 %v2253, %v2261
  %v2263 = vadd.f32 %v2105, %v2262
  %v2264 = vtanh.pop %v2263
  %v2265 = vsub.f32 0.0, %v2264
  %v2266 = vmul.f32 %v2260, %v2265
  %v2267 = vadd.f32 %v2264, %v2266
  %v2268 = vld [vmem:[%s557] sm:$0xff]
  %v2269 = vld [vmem:[%s557 + $0x8] sm:$0xff]
  %v2270 = vld [vmem:[%s557 + $0x10] sm:$0xff]
  %2271 = vmatprep.subr.mxu0 %v2049
  %2272 = vmatpush1.msra.mxu0 %v2048
  %2273 = vmatprep.subr.mxu0 %v2052
  %2274 = vmatpush1.msra.mxu0 %v2051
  %2275 = vmatprep.subr.mxu0 %v2055
  %2276 = vmatpush1.msra.mxu0 %v2054
  %2277 = vmatprep.subr.mxu0 %v2058
  %2278 = vmatpush1.msra.mxu0 %v2057
  %2279 = vmatprep.subr.mxu0 %v2061
  %2280 = vmatpush1.msra.mxu0 %v2060
  %2281 = vmatprep.subr.mxu0 %v2064
  %2282 = vmatpush1.msra.mxu0 %v2063
  %2283 = vmatprep.subr.mxu0 %v2067
  %2284 = vmatpush1.msra.mxu0 %v2066
  %2285 = vmatprep.subr.mxu0 %v2070
  %2286 = vmatpush1.msra.mxu0 %v2069
  %2287 = vmatprep.subr.mxu0 %v2073
  %2288 = vmatpush1.msra.mxu0 %v2072
  %2289 = vmatprep.subr.mxu0 %v2076
  %2290 = vmatpush1.msra.mxu0 %v2075
  %2291 = vmatprep.subr.mxu0 %v2079
  %2292 = vmatpush1.msra.mxu0 %v2078
  %2293 = vmatprep.subr.mxu0 %v2082
  %2294 = vmatpush1.msra.mxu0 %v2081
  %2295 = vmatprep.subr.mxu0 %v2085
  %2296 = vmatpush1.msra.mxu0 %v2084
  %2297 = vmatprep.subr.mxu0 %v2088
  %2298 = vmatpush1.msra.mxu0 %v2087
  %2299 = vmatprep.subr.mxu0 %v2091
  %2300 = vmatpush1.msra.mxu0 %v2090
  %2301 = vmatprep.subr.mxu0 %v2094
  %2302 = vmatpush1.msra.mxu0 %v2093
  %2303 = vmatprep.subr.mxu0 0.0
  %2304 = vmatpush1.msra.mxu0 0.0
  %2305 = vmatprep.subr.mxu0 0.0
  %2306 = vmatpush1.msra.mxu0 0.0
  %2307 = vmatprep.subr.mxu0 0.0
  %2308 = vmatpush1.msra.mxu0 0.0
  %2309 = vmatprep.subr.mxu0 0.0
  %2310 = vmatpush1.msra.mxu0 0.0
  %2311 = vmatprep.subr.mxu0 0.0
  %2312 = vmatpush1.msra.mxu0 0.0
  %2313 = vmatprep.subr.mxu0 0.0
  %2314 = vmatpush1.msra.mxu0 0.0
  %2315 = vmatprep.subr.mxu0 0.0
  %2316 = vmatpush1.msra.mxu0 0.0
  %2317 = vmatprep.subr.mxu0 0.0
  %2318 = vmatpush1.msra.mxu0 0.0
  %2319 = vmatprep.subr.mxu0 0.0
  %2320 = vmatpush1.msra.mxu0 0.0
  %2321 = vmatprep.subr.mxu0 0.0
  %2322 = vmatpush1.msra.mxu0 0.0
  %2323 = vmatprep.subr.mxu0 0.0
  %2324 = vmatpush1.msra.mxu0 0.0
  %2325 = vmatprep.subr.mxu0 0.0
  %2326 = vmatpush1.msra.mxu0 0.0
  %2327 = vmatprep.subr.mxu0 0.0
  %2328 = vmatpush1.msra.mxu0 0.0
  %2329 = vmatprep.subr.mxu0 0.0
  %2330 = vmatpush1.msra.mxu0 0.0
  %2331 = vmatprep.subr.mxu0 0.0
  %2332 = vmatpush1.msra.mxu0 0.0
  %2333 = vmatprep.subr.mxu0 0.0
  %2334 = vmatpush1.msra.mxu0 0.0
  %2335 = vmatprep.mubr.f32.mxu0 0.0
  %2336 = vmatmul.mubr.f32.gmra.mrb[0].mxu0 %v2267
  %v2337 = vpop.f32.mrb[0].mxu0
  %v2338 = vadd.f32 0.0, %v2337
  %v2339 = vpop.f32.mrb[0].mxu0
  %v2340 = vadd.f32 0.0, %v2339
  %2341 = vdwg.mxu0
  %2342 = vmatprep.subr.mxu0 0.0
  %2343 = vmatpush1.msra.mxu0 %v2050
  %2344 = vmatprep.subr.mxu0 0.0
  %2345 = vmatpush1.msra.mxu0 %v2053
  %2346 = vmatprep.subr.mxu0 0.0
  %2347 = vmatpush1.msra.mxu0 %v2056
  %2348 = vmatprep.subr.mxu0 0.0
  %2349 = vmatpush1.msra.mxu0 %v2059
  %2350 = vmatprep.subr.mxu0 0.0
  %2351 = vmatpush1.msra.mxu0 %v2062
  %2352 = vmatprep.subr.mxu0 0.0
  %2353 = vmatpush1.msra.mxu0 %v2065
  %2354 = vmatprep.subr.mxu0 0.0
  %2355 = vmatpush1.msra.mxu0 %v2068
  %2356 = vmatprep.subr.mxu0 0.0
  %2357 = vmatpush1.msra.mxu0 %v2071
  %2358 = vmatprep.subr.mxu0 0.0
  %2359 = vmatpush1.msra.mxu0 %v2074
  %2360 = vmatprep.subr.mxu0 0.0
  %2361 = vmatpush1.msra.mxu0 %v2077
  %2362 = vmatprep.subr.mxu0 0.0
  %2363 = vmatpush1.msra.mxu0 %v2080
  %2364 = vmatprep.subr.mxu0 0.0
  %2365 = vmatpush1.msra.mxu0 %v2083
  %2366 = vmatprep.subr.mxu0 0.0
  %2367 = vmatpush1.msra.mxu0 %v2086
  %2368 = vmatprep.subr.mxu0 0.0
  %2369 = vmatpush1.msra.mxu0 %v2089
  %2370 = vmatprep.subr.mxu0 0.0
  %2371 = vmatpush1.msra.mxu0 %v2092
  %2372 = vmatprep.subr.mxu0 0.0
  %2373 = vmatpush1.msra.mxu0 %v2095
  %2374 = vmatprep.subr.mxu0 0.0
  %2375 = vmatpush1.msra.mxu0 0.0
  %2376 = vmatprep.subr.mxu0 0.0
  %2377 = vmatpush1.msra.mxu0 0.0
  %2378 = vmatprep.subr.mxu0 0.0
  %2379 = vmatpush1.msra.mxu0 0.0
  %2380 = vmatprep.subr.mxu0 0.0
  %2381 = vmatpush1.msra.mxu0 0.0
  %2382 = vmatprep.subr.mxu0 0.0
  %2383 = vmatpush1.msra.mxu0 0.0
  %2384 = vmatprep.subr.mxu0 0.0
  %2385 = vmatpush1.msra.mxu0 0.0
  %2386 = vmatprep.subr.mxu0 0.0
  %2387 = vmatpush1.msra.mxu0 0.0
  %2388 = vmatprep.subr.mxu0 0.0
  %2389 = vmatpush1.msra.mxu0 0.0
  %2390 = vmatprep.subr.mxu0 0.0
  %2391 = vmatpush1.msra.mxu0 0.0
  %2392 = vmatprep.subr.mxu0 0.0
  %2393 = vmatpush1.msra.mxu0 0.0
  %2394 = vmatprep.subr.mxu0 0.0
  %2395 = vmatpush1.msra.mxu0 0.0
  %2396 = vmatprep.subr.mxu0 0.0
  %2397 = vmatpush1.msra.mxu0 0.0
  %2398 = vmatprep.subr.mxu0 0.0
  %2399 = vmatpush1.msra.mxu0 0.0
  %2400 = vmatprep.subr.mxu0 0.0
  %2401 = vmatpush1.msra.mxu0 0.0
  %2402 = vmatprep.subr.mxu0 0.0
  %2403 = vmatpush1.msra.mxu0 0.0
  %2404 = vmatprep.subr.mxu0 0.0
  %2405 = vmatpush1.msra.mxu0 0.0
  %2406 = vmatprep.mubr.f32.mxu0 0.0
  %2407 = vmatmul.mubr.f32.gmra.mrb[0].mxu0 %v2267
  %v2408 = vpop.f32.mrb[0].mxu0
  %v2409 = vadd.f32 0.0, %v2408
  %v2410 = vpop.f32.mrb[0].mxu0
  %2411 = vdwg.mxu0
  %v2412 = vadd.f32 %v2268, %v2338
  %v2413 = vxor.u32 %v2412, 2147483648
  %v2414 = vmul.f32 %v2413, 1.442695
  %v2415 = vpow.pop %v2414
  %v2416 = vadd.f32 %v2415, 1.0
  %v2417 = vrcp.pop %v2416
  %v2418 = vmul.f32 1.0, %v2417
  %v2419 = vadd.f32 %v2269, %v2340
  %v2420 = vxor.u32 %v2419, 2147483648
  %v2421 = vmul.f32 %v2420, 1.442695
  %v2422 = vpow.pop %v2421
  %v2423 = vadd.f32 %v2422, 1.0
  %v2424 = vrcp.pop %v2423
  %v2425 = vmul.f32 1.0, %v2424
  %v2426 = vadd.f32 %v2409, %v2101
  %v2427 = vmul.f32 %v2418, %v2426
  %v2428 = vadd.f32 %v2270, %v2427
  %v2429 = vtanh.pop %v2428
  %v2430 = vsub.f32 %v2267, %v2429
  %v2431 = vmul.f32 %v2425, %v2430
  %v2432 = vadd.f32 %v2429, %v2431
  %v2433 = vld [vmem:[%s725] sm:$0xff]
  %v2434 = vld [vmem:[%s725 + $0x8] sm:$0xff]
  %v2435 = vld [vmem:[%s725 + $0x10] sm:$0xff]
  %2436 = vmatprep.subr.mxu0 %v2049
  %2437 = vmatpush1.msra.mxu0 %v2048
  %2438 = vmatprep.subr.mxu0 %v2052
  %2439 = vmatpush1.msra.mxu0 %v2051
  %2440 = vmatprep.subr.mxu0 %v2055
  %2441 = vmatpush1.msra.mxu0 %v2054
  %2442 = vmatprep.subr.mxu0 %v2058
  %2443 = vmatpush1.msra.mxu0 %v2057
  %2444 = vmatprep.subr.mxu0 %v2061
  %2445 = vmatpush1.msra.mxu0 %v2060
  %2446 = vmatprep.subr.mxu0 %v2064
  %2447 = vmatpush1.msra.mxu0 %v2063
  %2448 = vmatprep.subr.mxu0 %v2067
  %2449 = vmatpush1.msra.mxu0 %v2066
  %2450 = vmatprep.subr.mxu0 %v2070
  %2451 = vmatpush1.msra.mxu0 %v2069
  %2452 = vmatprep.subr.mxu0 %v2073
  %2453 = vmatpush1.msra.mxu0 %v2072
  %2454 = vmatprep.subr.mxu0 %v2076
  %2455 = vmatpush1.msra.mxu0 %v2075
  %2456 = vmatprep.subr.mxu0 %v2079
  %2457 = vmatpush1.msra.mxu0 %v2078
  %2458 = vmatprep.subr.mxu0 %v2082
  %2459 = vmatpush1.msra.mxu0 %v2081
  %2460 = vmatprep.subr.mxu0 %v2085
  %2461 = vmatpush1.msra.mxu0 %v2084
  %2462 = vmatprep.subr.mxu0 %v2088
  %2463 = vmatpush1.msra.mxu0 %v2087
  %2464 = vmatprep.subr.mxu0 %v2091
  %2465 = vmatpush1.msra.mxu0 %v2090
  %2466 = vmatprep.subr.mxu0 %v2094
  %2467 = vmatpush1.msra.mxu0 %v2093
  %2468 = vmatprep.subr.mxu0 0.0
  %2469 = vmatpush1.msra.mxu0 0.0
  %2470 = vmatprep.subr.mxu0 0.0
  %2471 = vmatpush1.msra.mxu0 0.0
  %2472 = vmatprep.subr.mxu0 0.0
  %2473 = vmatpush1.msra.mxu0 0.0
  %2474 = vmatprep.subr.mxu0 0.0
  %2475 = vmatpush1.msra.mxu0 0.0
  %2476 = vmatprep.subr.mxu0 0.0
  %2477 = vmatpush1.msra.mxu0 0.0
  %2478 = vmatprep.subr.mxu0 0.0
  %2479 = vmatpush1.msra.mxu0 0.0
  %2480 = vmatprep.subr.mxu0 0.0
  %2481 = vmatpush1.msra.mxu0 0.0
  %2482 = vmatprep.subr.mxu0 0.0
  %2483 = vmatpush1.msra.mxu0 0.0
  %2484 = vmatprep.subr.mxu0 0.0
  %2485 = vmatpush1.msra.mxu0 0.0
  %2486 = vmatprep.subr.mxu0 0.0
  %2487 = vmatpush1.msra.mxu0 0.0
  %2488 = vmatprep.subr.mxu0 0.0
  %2489 = vmatpush1.msra.mxu0 0.0
  %2490 = vmatprep.subr.mxu0 0.0
  %2491 = vmatpush1.msra.mxu0 0.0
  %2492 = vmatprep.subr.mxu0 0.0
  %2493 = vmatpush1.msra.mxu0 0.0
  %2494 = vmatprep.subr.mxu0 0.0
  %2495 = vmatpush1.msra.mxu0 0.0
  %2496 = vmatprep.subr.mxu0 0.0
  %2497 = vmatpush1.msra.mxu0 0.0
  %2498 = vmatprep.subr.mxu0 0.0
  %2499 = vmatpush1.msra.mxu0 0.0
  %2500 = vmatprep.mubr.f32.mxu0 0.0
  %2501 = vmatmul.mubr.f32.gmra.mrb[0].mxu0 %v2432
  %v2502 = vpop.f32.mrb[0].mxu0
  %v2503 = vadd.f32 0.0, %v2502
  %v2504 = vpop.f32.mrb[0].mxu0
  %v2505 = vadd.f32 0.0, %v2504
  %2506 = vdwg.mxu0
  %2507 = vmatprep.subr.mxu0 0.0
  %2508 = vmatpush1.msra.mxu0 %v2050
  %2509 = vmatprep.subr.mxu0 0.0
  %2510 = vmatpush1.msra.mxu0 %v2053
  %2511 = vmatprep.subr.mxu0 0.0
  %2512 = vmatpush1.msra.mxu0 %v2056
  %2513 = vmatprep.subr.mxu0 0.0
  %2514 = vmatpush1.msra.mxu0 %v2059
  %2515 = vmatprep.subr.mxu0 0.0
  %2516 = vmatpush1.msra.mxu0 %v2062
  %2517 = vmatprep.subr.mxu0 0.0
  %2518 = vmatpush1.msra.mxu0 %v2065
  %2519 = vmatprep.subr.mxu0 0.0
  %2520 = vmatpush1.msra.mxu0 %v2068
  %2521 = vmatprep.subr.mxu0 0.0
  %2522 = vmatpush1.msra.mxu0 %v2071
  %2523 = vmatprep.subr.mxu0 0.0
  %2524 = vmatpush1.msra.mxu0 %v2074
  %2525 = vmatprep.subr.mxu0 0.0
  %2526 = vmatpush1.msra.mxu0 %v2077
  %2527 = vmatprep.subr.mxu0 0.0
  %2528 = vmatpush1.msra.mxu0 %v2080
  %2529 = vmatprep.subr.mxu0 0.0
  %2530 = vmatpush1.msra.mxu0 %v2083
  %2531 = vmatprep.subr.mxu0 0.0
  %2532 = vmatpush1.msra.mxu0 %v2086
  %2533 = vmatprep.subr.mxu0 0.0
  %2534 = vmatpush1.msra.mxu0 %v2089
  %2535 = vmatprep.subr.mxu0 0.0
  %2536 = vmatpush1.msra.mxu0 %v2092
  %2537 = vmatprep.subr.mxu0 0.0
  %2538 = vmatpush1.msra.mxu0 %v2095
  %2539 = vmatprep.subr.mxu0 0.0
  %2540 = vmatpush1.msra.mxu0 0.0
  %2541 = vmatprep.subr.mxu0 0.0
  %2542 = vmatpush1.msra.mxu0 0.0
  %2543 = vmatprep.subr.mxu0 0.0
  %2544 = vmatpush1.msra.mxu0 0.0
  %2545 = vmatprep.subr.mxu0 0.0
  %2546 = vmatpush1.msra.mxu0 0.0
  %2547 = vmatprep.subr.mxu0 0.0
  %2548 = vmatpush1.msra.mxu0 0.0
  %2549 = vmatprep.subr.mxu0 0.0
  %2550 = vmatpush1.msra.mxu0 0.0
  %2551 = vmatprep.subr.mxu0 0.0
  %2552 = vmatpush1.msra.mxu0 0.0
  %2553 = vmatprep.subr.mxu0 0.0
  %2554 = vmatpush1.msra.mxu0 0.0
  %2555 = vmatprep.subr.mxu0 0.0
  %2556 = vmatpush1.msra.mxu0 0.0
  %2557 = vmatprep.subr.mxu0 0.0
  %2558 = vmatpush1.msra.mxu0 0.0
  %2559 = vmatprep.subr.mxu0 0.0
  %2560 = vmatpush1.msra.mxu0 0.0
  %2561 = vmatprep.subr.mxu0 0.0
  %2562 = vmatpush1.msra.mxu0 0.0
  %2563 = vmatprep.subr.mxu0 0.0
  %2564 = vmatpush1.msra.mxu0 0.0
  %2565 = vmatprep.subr.mxu0 0.0
  %2566 = vmatpush1.msra.mxu0 0.0
  %2567 = vmatprep.subr.mxu0 0.0
  %2568 = vmatpush1.msra.mxu0 0.0
  %2569 = vmatprep.subr.mxu0 0.0
  %2570 = vmatpush1.msra.mxu0 0.0
  %2571 = vmatprep.mubr.f32.mxu0 0.0
  %2572 = vmatmul.mubr.f32.gmra.mrb[0].mxu0 %v2432
  %v2573 = vpop.f32.mrb[0].mxu0
  %v2574 = vadd.f32 0.0, %v2573
  %v2575 = vpop.f32.mrb[0].mxu0
  %2576 = vdwg.mxu0
  %v2577 = vadd.f32 %v2433, %v2503
  %v2578 = vxor.u32 %v2577, 2147483648
  %v2579 = vmul.f32 %v2578, 1.442695
  %v2580 = vpow.pop %v2579
  %v2581 = vadd.f32 %v2580, 1.0
  %v2582 = vrcp.pop %v2581
  %v2583 = vmul.f32 1.0, %v2582
  %v2584 = vadd.f32 %v2434, %v2505
  %v2585 = vxor.u32 %v2584, 2147483648
  %v2586 = vmul.f32 %v2585, 1.442695
  %v2587 = vpow.pop %v2586
  %v2588 = vadd.f32 %v2587, 1.0
  %v2589 = vrcp.pop %v2588
  %v2590 = vmul.f32 1.0, %v2589
  %v2591 = vadd.f32 %v2574, %v2101
  %v2592 = vmul.f32 %v2583, %v2591
  %v2593 = vadd.f32 %v2435, %v2592
  %v2594 = vtanh.pop %v2593
  %v2595 = vsub.f32 %v2432, %v2594
  %v2596 = vmul.f32 %v2590, %v2595
  %v2597 = vadd.f32 %v2594, %v2596
  %v2598 = vld [vmem:[%s893] sm:$0xff]
  %v2599 = vld [vmem:[%s893 + $0x8] sm:$0xff]
  %v2600 = vld [vmem:[%s893 + $0x10] sm:$0xff]
  %2601 = vmatprep.subr.mxu0 %v2049
  %2602 = vmatpush1.msra.mxu0 %v2048
  %2603 = vmatprep.subr.mxu0 %v2052
  %2604 = vmatpush1.msra.mxu0 %v2051
  %2605 = vmatprep.subr.mxu0 %v2055
  %2606 = vmatpush1.msra.mxu0 %v2054
  %2607 = vmatprep.subr.mxu0 %v2058
  %2608 = vmatpush1.msra.mxu0 %v2057
  %2609 = vmatprep.subr.mxu0 %v2061
  %2610 = vmatpush1.msra.mxu0 %v2060
  %2611 = vmatprep.subr.mxu0 %v2064
  %2612 = vmatpush1.msra.mxu0 %v2063
  %2613 = vmatprep.subr.mxu0 %v2067
  %2614 = vmatpush1.msra.mxu0 %v2066
  %2615 = vmatprep.subr.mxu0 %v2070
  %2616 = vmatpush1.msra.mxu0 %v2069
  %2617 = vmatprep.subr.mxu0 %v2073
  %2618 = vmatpush1.msra.mxu0 %v2072
  %2619 = vmatprep.subr.mxu0 %v2076
  %2620 = vmatpush1.msra.mxu0 %v2075
  %2621 = vmatprep.subr.mxu0 %v2079
  %2622 = vmatpush1.msra.mxu0 %v2078
  %2623 = vmatprep.subr.mxu0 %v2082
  %2624 = vmatpush1.msra.mxu0 %v2081
  %2625 = vmatprep.subr.mxu0 %v2085
  %2626 = vmatpush1.msra.mxu0 %v2084
  %2627 = vmatprep.subr.mxu0 %v2088
  %2628 = vmatpush1.msra.mxu0 %v2087
  %2629 = vmatprep.subr.mxu0 %v2091
  %2630 = vmatpush1.msra.mxu0 %v2090
  %2631 = vmatprep.subr.mxu0 %v2094
  %2632 = vmatpush1.msra.mxu0 %v2093
  %2633 = vmatprep.subr.mxu0 0.0
  %2634 = vmatpush1.msra.mxu0 0.0
  %2635 = vmatprep.subr.mxu0 0.0
  %2636 = vmatpush1.msra.mxu0 0.0
  %2637 = vmatprep.subr.mxu0 0.0
  %2638 = vmatpush1.msra.mxu0 0.0
  %2639 = vmatprep.subr.mxu0 0.0
  %2640 = vmatpush1.msra.mxu0 0.0
  %2641 = vmatprep.subr.mxu0 0.0
  %2642 = vmatpush1.msra.mxu0 0.0
  %2643 = vmatprep.subr.mxu0 0.0
  %2644 = vmatpush1.msra.mxu0 0.0
  %2645 = vmatprep.subr.mxu0 0.0
  %2646 = vmatpush1.msra.mxu0 0.0
  %2647 = vmatprep.subr.mxu0 0.0
  %2648 = vmatpush1.msra.mxu0 0.0
  %2649 = vmatprep.subr.mxu0 0.0
  %2650 = vmatpush1.msra.mxu0 0.0
  %2651 = vmatprep.subr.mxu0 0.0
  %2652 = vmatpush1.msra.mxu0 0.0
  %2653 = vmatprep.subr.mxu0 0.0
  %2654 = vmatpush1.msra.mxu0 0.0
  %2655 = vmatprep.subr.mxu0 0.0
  %2656 = vmatpush1.msra.mxu0 0.0
  %2657 = vmatprep.subr.mxu0 0.0
  %2658 = vmatpush1.msra.mxu0 0.0
  %2659 = vmatprep.subr.mxu0 0.0
  %2660 = vmatpush1.msra.mxu0 0.0
  %2661 = vmatprep.subr.mxu0 0.0
  %2662 = vmatpush1.msra.mxu0 0.0
  %2663 = vmatprep.subr.mxu0 0.0
  %2664 = vmatpush1.msra.mxu0 0.0
  %2665 = vmatprep.mubr.f32.mxu0 0.0
  %2666 = vmatmul.mubr.f32.gmra.mrb[0].mxu0 %v2597
  %v2667 = vpop.f32.mrb[0].mxu0
  %v2668 = vadd.f32 0.0, %v2667
  %v2669 = vpop.f32.mrb[0].mxu0
  %v2670 = vadd.f32 0.0, %v2669
  %2671 = vdwg.mxu0
  %2672 = vmatprep.subr.mxu0 0.0
  %2673 = vmatpush1.msra.mxu0 %v2050
  %2674 = vmatprep.subr.mxu0 0.0
  %2675 = vmatpush1.msra.mxu0 %v2053
  %2676 = vmatprep.subr.mxu0 0.0
  %2677 = vmatpush1.msra.mxu0 %v2056
  %2678 = vmatprep.subr.mxu0 0.0
  %2679 = vmatpush1.msra.mxu0 %v2059
  %2680 = vmatprep.subr.mxu0 0.0
  %2681 = vmatpush1.msra.mxu0 %v2062
  %2682 = vmatprep.subr.mxu0 0.0
  %2683 = vmatpush1.msra.mxu0 %v2065
  %2684 = vmatprep.subr.mxu0 0.0
  %2685 = vmatpush1.msra.mxu0 %v2068
  %2686 = vmatprep.subr.mxu0 0.0
  %2687 = vmatpush1.msra.mxu0 %v2071
  %2688 = vmatprep.subr.mxu0 0.0
  %2689 = vmatpush1.msra.mxu0 %v2074
  %2690 = vmatprep.subr.mxu0 0.0
  %2691 = vmatpush1.msra.mxu0 %v2077
  %2692 = vmatprep.subr.mxu0 0.0
  %2693 = vmatpush1.msra.mxu0 %v2080
  %2694 = vmatprep.subr.mxu0 0.0
  %2695 = vmatpush1.msra.mxu0 %v2083
  %2696 = vmatprep.subr.mxu0 0.0
  %2697 = vmatpush1.msra.mxu0 %v2086
  %2698 = vmatprep.subr.mxu0 0.0
  %2699 = vmatpush1.msra.mxu0 %v2089
  %2700 = vmatprep.subr.mxu0 0.0
  %2701 = vmatpush1.msra.mxu0 %v2092
  %2702 = vmatprep.subr.mxu0 0.0
  %2703 = vmatpush1.msra.mxu0 %v2095
  %2704 = vmatprep.subr.mxu0 0.0
  %2705 = vmatpush1.msra.mxu0 0.0
  %2706 = vmatprep.subr.mxu0 0.0
  %2707 = vmatpush1.msra.mxu0 0.0
  %2708 = vmatprep.subr.mxu0 0.0
  %2709 = vmatpush1.msra.mxu0 0.0
  %2710 = vmatprep.subr.mxu0 0.0
  %2711 = vmatpush1.msra.mxu0 0.0
  %2712 = vmatprep.subr.mxu0 0.0
  %2713 = vmatpush1.msra.mxu0 0.0
  %2714 = vmatprep.subr.mxu0 0.0
  %2715 = vmatpush1.msra.mxu0 0.0
  %2716 = vmatprep.subr.mxu0 0.0
  %2717 = vmatpush1.msra.mxu0 0.0
  %2718 = vmatprep.subr.mxu0 0.0
  %2719 = vmatpush1.msra.mxu0 0.0
  %2720 = vmatprep.subr.mxu0 0.0
  %2721 = vmatpush1.msra.mxu0 0.0
  %2722 = vmatprep.subr.mxu0 0.0
  %2723 = vmatpush1.msra.mxu0 0.0
  %2724 = vmatprep.subr.mxu0 0.0
  %2725 = vmatpush1.msra.mxu0 0.0
  %2726 = vmatprep.subr.mxu0 0.0
  %2727 = vmatpush1.msra.mxu0 0.0
  %2728 = vmatprep.subr.mxu0 0.0
  %2729 = vmatpush1.msra.mxu0 0.0
  %2730 = vmatprep.subr.mxu0 0.0
  %2731 = vmatpush1.msra.mxu0 0.0
  %2732 = vmatprep.subr.mxu0 0.0
  %2733 = vmatpush1.msra.mxu0 0.0
  %2734 = vmatprep.subr.mxu0 0.0
  %2735 = vmatpush1.msra.mxu0 0.0
  %2736 = vmatprep.mubr.f32.mxu0 0.0
  %2737 = vmatmul.mubr.f32.gmra.mrb[0].mxu0 %v2597
  %v2738 = vpop.f32.mrb[0].mxu0
  %v2739 = vadd.f32 0.0, %v2738
  %v2740 = vpop.f32.mrb[0].mxu0
  %2741 = vdwg.mxu0
  %v2742 = vadd.f32 %v2598, %v2668
  %v2743 = vxor.u32 %v2742, 2147483648
  %v2744 = vmul.f32 %v2743, 1.442695
  %v2745 = vpow.pop %v2744
  %v2746 = vadd.f32 %v2745, 1.0
  %v2747 = vrcp.pop %v2746
  %v2748 = vmul.f32 1.0, %v2747
  %v2749 = vadd.f32 %v2599, %v2670
  %v2750 = vxor.u32 %v2749, 2147483648
  %v2751 = vmul.f32 %v2750, 1.442695
  %v2752 = vpow.pop %v2751
  %v2753 = vadd.f32 %v2752, 1.0
  %v2754 = vrcp.pop %v2753
  %v2755 = vmul.f32 1.0, %v2754
  %v2756 = vadd.f32 %v2739, %v2101
  %v2757 = vmul.f32 %v2748, %v2756
  %v2758 = vadd.f32 %v2600, %v2757
  %v2759 = vtanh.pop %v2758
  %v2760 = vsub.f32 %v2597, %v2759
  %v2761 = vmul.f32 %v2755, %v2760
  %v2762 = vadd.f32 %v2759, %v2761
  %v2763 = vld [vmem:[%s1061] sm:$0xff]
  %v2764 = vld [vmem:[%s1061 + $0x8] sm:$0xff]
  %v2765 = vld [vmem:[%s1061 + $0x10] sm:$0xff]
  %2766 = vmatprep.subr.mxu0 %v2049
  %2767 = vmatpush1.msra.mxu0 %v2048
  %2768 = vmatprep.subr.mxu0 %v2052
  %2769 = vmatpush1.msra.mxu0 %v2051
  %2770 = vmatprep.subr.mxu0 %v2055
  %2771 = vmatpush1.msra.mxu0 %v2054
  %2772 = vmatprep.subr.mxu0 %v2058
  %2773 = vmatpush1.msra.mxu0 %v2057
  %2774 = vmatprep.subr.mxu0 %v2061
  %2775 = vmatpush1.msra.mxu0 %v2060
  %2776 = vmatprep.subr.mxu0 %v2064
  %2777 = vmatpush1.msra.mxu0 %v2063
  %2778 = vmatprep.subr.mxu0 %v2067
  %2779 = vmatpush1.msra.mxu0 %v2066
  %2780 = vmatprep.subr.mxu0 %v2070
  %2781 = vmatpush1.msra.mxu0 %v2069
  %2782 = vmatprep.subr.mxu0 %v2073
  %2783 = vmatpush1.msra.mxu0 %v2072
  %2784 = vmatprep.subr.mxu0 %v2076
  %2785 = vmatpush1.msra.mxu0 %v2075
  %2786 = vmatprep.subr.mxu0 %v2079
  %2787 = vmatpush1.msra.mxu0 %v2078
  %2788 = vmatprep.subr.mxu0 %v2082
  %2789 = vmatpush1.msra.mxu0 %v2081
  %2790 = vmatprep.subr.mxu0 %v2085
  %2791 = vmatpush1.msra.mxu0 %v2084
  %2792 = vmatprep.subr.mxu0 %v2088
  %2793 = vmatpush1.msra.mxu0 %v2087
  %2794 = vmatprep.subr.mxu0 %v2091
  %2795 = vmatpush1.msra.mxu0 %v2090
  %2796 = vmatprep.subr.mxu0 %v2094
  %2797 = vmatpush1.msra.mxu0 %v2093
  %2798 = vmatprep.subr.mxu0 0.0
  %2799 = vmatpush1.msra.mxu0 0.0
  %2800 = vmatprep.subr.mxu0 0.0
  %2801 = vmatpush1.msra.mxu0 0.0
  %2802 = vmatprep.subr.mxu0 0.0
  %2803 = vmatpush1.msra.mxu0 0.0
  %2804 = vmatprep.subr.mxu0 0.0
  %2805 = vmatpush1.msra.mxu0 0.0
  %2806 = vmatprep.subr.mxu0 0.0
  %2807 = vmatpush1.msra.mxu0 0.0
  %2808 = vmatprep.subr.mxu0 0.0
  %2809 = vmatpush1.msra.mxu0 0.0
  %2810 = vmatprep.subr.mxu0 0.0
  %2811 = vmatpush1.msra.mxu0 0.0
  %2812 = vmatprep.subr.mxu0 0.0
  %2813 = vmatpush1.msra.mxu0 0.0
  %2814 = vmatprep.subr.mxu0 0.0
  %2815 = vmatpush1.msra.mxu0 0.0
  %2816 = vmatprep.subr.mxu0 0.0
  %2817 = vmatpush1.msra.mxu0 0.0
  %2818 = vmatprep.subr.mxu0 0.0
  %2819 = vmatpush1.msra.mxu0 0.0
  %2820 = vmatprep.subr.mxu0 0.0
  %2821 = vmatpush1.msra.mxu0 0.0
  %2822 = vmatprep.subr.mxu0 0.0
  %2823 = vmatpush1.msra.mxu0 0.0
  %2824 = vmatprep.subr.mxu0 0.0
  %2825 = vmatpush1.msra.mxu0 0.0
  %2826 = vmatprep.subr.mxu0 0.0
  %2827 = vmatpush1.msra.mxu0 0.0
  %2828 = vmatprep.subr.mxu0 0.0
  %2829 = vmatpush1.msra.mxu0 0.0
  %2830 = vmatprep.mubr.f32.mxu0 0.0
  %2831 = vmatmul.mubr.f32.gmra.mrb[0].mxu0 %v2762
  %v2832 = vpop.f32.mrb[0].mxu0
  %v2833 = vadd.f32 0.0, %v2832
  %v2834 = vpop.f32.mrb[0].mxu0
  %v2835 = vadd.f32 0.0, %v2834
  %2836 = vdwg.mxu0
  %2837 = vmatprep.subr.mxu0 0.0
  %2838 = vmatpush1.msra.mxu0 %v2050
  %2839 = vmatprep.subr.mxu0 0.0
  %2840 = vmatpush1.msra.mxu0 %v2053
  %2841 = vmatprep.subr.mxu0 0.0
  %2842 = vmatpush1.msra.mxu0 %v2056
  %2843 = vmatprep.subr.mxu0 0.0
  %2844 = vmatpush1.msra.mxu0 %v2059
  %2845 = vmatprep.subr.mxu0 0.0
  %2846 = vmatpush1.msra.mxu0 %v2062
  %2847 = vmatprep.subr.mxu0 0.0
  %2848 = vmatpush1.msra.mxu0 %v2065
  %2849 = vmatprep.subr.mxu0 0.0
  %2850 = vmatpush1.msra.mxu0 %v2068
  %2851 = vmatprep.subr.mxu0 0.0
  %2852 = vmatpush1.msra.mxu0 %v2071
  %2853 = vmatprep.subr.mxu0 0.0
  %2854 = vmatpush1.msra.mxu0 %v2074
  %2855 = vmatprep.subr.mxu0 0.0
  %2856 = vmatpush1.msra.mxu0 %v2077
  %2857 = vmatprep.subr.mxu0 0.0
  %2858 = vmatpush1.msra.mxu0 %v2080
  %2859 = vmatprep.subr.mxu0 0.0
  %2860 = vmatpush1.msra.mxu0 %v2083
  %2861 = vmatprep.subr.mxu0 0.0
  %2862 = vmatpush1.msra.mxu0 %v2086
  %2863 = vmatprep.subr.mxu0 0.0
  %2864 = vmatpush1.msra.mxu0 %v2089
  %2865 = vmatprep.subr.mxu0 0.0
  %2866 = vmatpush1.msra.mxu0 %v2092
  %2867 = vmatprep.subr.mxu0 0.0
  %2868 = vmatpush1.msra.mxu0 %v2095
  %2869 = vmatprep.subr.mxu0 0.0
  %2870 = vmatpush1.msra.mxu0 0.0
  %2871 = vmatprep.subr.mxu0 0.0
  %2872 = vmatpush1.msra.mxu0 0.0
  %2873 = vmatprep.subr.mxu0 0.0
  %2874 = vmatpush1.msra.mxu0 0.0
  %2875 = vmatprep.subr.mxu0 0.0
  %2876 = vmatpush1.msra.mxu0 0.0
  %2877 = vmatprep.subr.mxu0 0.0
  %2878 = vmatpush1.msra.mxu0 0.0
  %2879 = vmatprep.subr.mxu0 0.0
  %2880 = vmatpush1.msra.mxu0 0.0
  %2881 = vmatprep.subr.mxu0 0.0
  %2882 = vmatpush1.msra.mxu0 0.0
  %2883 = vmatprep.subr.mxu0 0.0
  %2884 = vmatpush1.msra.mxu0 0.0
  %2885 = vmatprep.subr.mxu0 0.0
  %2886 = vmatpush1.msra.mxu0 0.0
  %2887 = vmatprep.subr.mxu0 0.0
  %2888 = vmatpush1.msra.mxu0 0.0
  %2889 = vmatprep.subr.mxu0 0.0
  %2890 = vmatpush1.msra.mxu0 0.0
  %2891 = vmatprep.subr.mxu0 0.0
  %2892 = vmatpush1.msra.mxu0 0.0
  %2893 = vmatprep.subr.mxu0 0.0
  %2894 = vmatpush1.msra.mxu0 0.0
  %2895 = vmatprep.subr.mxu0 0.0
  %2896 = vmatpush1.msra.mxu0 0.0
  %2897 = vmatprep.subr.mxu0 0.0
  %2898 = vmatpush1.msra.mxu0 0.0
  %2899 = vmatprep.subr.mxu0 0.0
  %2900 = vmatpush1.msra.mxu0 0.0
  %2901 = vmatprep.mubr.f32.mxu0 0.0
  %2902 = vmatmul.mubr.f32.gmra.mrb[0].mxu0 %v2762
  %v2903 = vpop.f32.mrb[0].mxu0
  %v2904 = vadd.f32 0.0, %v2903
  %v2905 = vpop.f32.mrb[0].mxu0
  %2906 = vdwg.mxu0
  %v2907 = vadd.f32 %v2763, %v2833
  %v2908 = vxor.u32 %v2907, 2147483648
  %v2909 = vmul.f32 %v2908, 1.442695
  %v2910 = vpow.pop %v2909
  %v2911 = vadd.f32 %v2910, 1.0
  %v2912 = vrcp.pop %v2911
  %v2913 = vmul.f32 1.0, %v2912
  %v2914 = vadd.f32 %v2764, %v2835
  %v2915 = vxor.u32 %v2914, 2147483648
  %v2916 = vmul.f32 %v2915, 1.442695
  %v2917 = vpow.pop %v2916
  %v2918 = vadd.f32 %v2917, 1.0
  %v2919 = vrcp.pop %v2918
  %v2920 = vmul.f32 1.0, %v2919
  %v2921 = vadd.f32 %v2904, %v2101
  %v2922 = vmul.f32 %v2913, %v2921
  %v2923 = vadd.f32 %v2765, %v2922
  %v2924 = vtanh.pop %v2923
  %v2925 = vsub.f32 %v2762, %v2924
  %v2926 = vmul.f32 %v2920, %v2925
  %v2927 = vadd.f32 %v2924, %v2926
  %v2928 = vld [vmem:[%s1229] sm:$0xff]
  %v2929 = vld [vmem:[%s1229 + $0x8] sm:$0xff]
  %v2930 = vld [vmem:[%s1229 + $0x10] sm:$0xff]
  %2931 = vmatprep.subr.mxu0 %v2049
  %2932 = vmatpush1.msra.mxu0 %v2048
  %2933 = vmatprep.subr.mxu0 %v2052
  %2934 = vmatpush1.msra.mxu0 %v2051
  %2935 = vmatprep.subr.mxu0 %v2055
  %2936 = vmatpush1.msra.mxu0 %v2054
  %2937 = vmatprep.subr.mxu0 %v2058
  %2938 = vmatpush1.msra.mxu0 %v2057
  %2939 = vmatprep.subr.mxu0 %v2061
  %2940 = vmatpush1.msra.mxu0 %v2060
  %2941 = vmatprep.subr.mxu0 %v2064
  %2942 = vmatpush1.msra.mxu0 %v2063
  %2943 = vmatprep.subr.mxu0 %v2067
  %2944 = vmatpush1.msra.mxu0 %v2066
  %2945 = vmatprep.subr.mxu0 %v2070
  %2946 = vmatpush1.msra.mxu0 %v2069
  %2947 = vmatprep.subr.mxu0 %v2073
  %2948 = vmatpush1.msra.mxu0 %v2072
  %2949 = vmatprep.subr.mxu0 %v2076
  %2950 = vmatpush1.msra.mxu0 %v2075
  %2951 = vmatprep.subr.mxu0 %v2079
  %2952 = vmatpush1.msra.mxu0 %v2078
  %2953 = vmatprep.subr.mxu0 %v2082
  %2954 = vmatpush1.msra.mxu0 %v2081
  %2955 = vmatprep.subr.mxu0 %v2085
  %2956 = vmatpush1.msra.mxu0 %v2084
  %2957 = vmatprep.subr.mxu0 %v2088
  %2958 = vmatpush1.msra.mxu0 %v2087
  %2959 = vmatprep.subr.mxu0 %v2091
  %2960 = vmatpush1.msra.mxu0 %v2090
  %2961 = vmatprep.subr.mxu0 %v2094
  %2962 = vmatpush1.msra.mxu0 %v2093
  %2963 = vmatprep.subr.mxu0 0.0
  %2964 = vmatpush1.msra.mxu0 0.0
  %2965 = vmatprep.subr.mxu0 0.0
  %2966 = vmatpush1.msra.mxu0 0.0
  %2967 = vmatprep.subr.mxu0 0.0
  %2968 = vmatpush1.msra.mxu0 0.0
  %2969 = vmatprep.subr.mxu0 0.0
  %2970 = vmatpush1.msra.mxu0 0.0
  %2971 = vmatprep.subr.mxu0 0.0
  %2972 = vmatpush1.msra.mxu0 0.0
  %2973 = vmatprep.subr.mxu0 0.0
  %2974 = vmatpush1.msra.mxu0 0.0
  %2975 = vmatprep.subr.mxu0 0.0
  %2976 = vmatpush1.msra.mxu0 0.0
  %2977 = vmatprep.subr.mxu0 0.0
  %2978 = vmatpush1.msra.mxu0 0.0
  %2979 = vmatprep.subr.mxu0 0.0
  %2980 = vmatpush1.msra.mxu0 0.0
  %2981 = vmatprep.subr.mxu0 0.0
  %2982 = vmatpush1.msra.mxu0 0.0
  %2983 = vmatprep.subr.mxu0 0.0
  %2984 = vmatpush1.msra.mxu0 0.0
  %2985 = vmatprep.subr.mxu0 0.0
  %2986 = vmatpush1.msra.mxu0 0.0
  %2987 = vmatprep.subr.mxu0 0.0
  %2988 = vmatpush1.msra.mxu0 0.0
  %2989 = vmatprep.subr.mxu0 0.0
  %2990 = vmatpush1.msra.mxu0 0.0
  %2991 = vmatprep.subr.mxu0 0.0
  %2992 = vmatpush1.msra.mxu0 0.0
  %2993 = vmatprep.subr.mxu0 0.0
  %2994 = vmatpush1.msra.mxu0 0.0
  %2995 = vmatprep.mubr.f32.mxu0 0.0
  %2996 = vmatmul.mubr.f32.gmra.mrb[0].mxu0 %v2927
  %v2997 = vpop.f32.mrb[0].mxu0
  %v2998 = vadd.f32 0.0, %v2997
  %v2999 = vpop.f32.mrb[0].mxu0
  %v3000 = vadd.f32 0.0, %v2999
  %3001 = vdwg.mxu0
  %3002 = vmatprep.subr.mxu0 0.0
  %3003 = vmatpush1.msra.mxu0 %v2050
  %3004 = vmatprep.subr.mxu0 0.0
  %3005 = vmatpush1.msra.mxu0 %v2053
  %3006 = vmatprep.subr.mxu0 0.0
  %3007 = vmatpush1.msra.mxu0 %v2056
  %3008 = vmatprep.subr.mxu0 0.0
  %3009 = vmatpush1.msra.mxu0 %v2059
  %3010 = vmatprep.subr.mxu0 0.0
  %3011 = vmatpush1.msra.mxu0 %v2062
  %3012 = vmatprep.subr.mxu0 0.0
  %3013 = vmatpush1.msra.mxu0 %v2065
  %3014 = vmatprep.subr.mxu0 0.0
  %3015 = vmatpush1.msra.mxu0 %v2068
  %3016 = vmatprep.subr.mxu0 0.0
  %3017 = vmatpush1.msra.mxu0 %v2071
  %3018 = vmatprep.subr.mxu0 0.0
  %3019 = vmatpush1.msra.mxu0 %v2074
  %3020 = vmatprep.subr.mxu0 0.0
  %3021 = vmatpush1.msra.mxu0 %v2077
  %3022 = vmatprep.subr.mxu0 0.0
  %3023 = vmatpush1.msra.mxu0 %v2080
  %3024 = vmatprep.subr.mxu0 0.0
  %3025 = vmatpush1.msra.mxu0 %v2083
  %3026 = vmatprep.subr.mxu0 0.0
  %3027 = vmatpush1.msra.mxu0 %v2086
  %3028 = vmatprep.subr.mxu0 0.0
  %3029 = vmatpush1.msra.mxu0 %v2089
  %3030 = vmatprep.subr.mxu0 0.0
  %3031 = vmatpush1.msra.mxu0 %v2092
  %3032 = vmatprep.subr.mxu0 0.0
  %3033 = vmatpush1.msra.mxu0 %v2095
  %3034 = vmatprep.subr.mxu0 0.0
  %3035 = vmatpush1.msra.mxu0 0.0
  %3036 = vmatprep.subr.mxu0 0.0
  %3037 = vmatpush1.msra.mxu0 0.0
  %3038 = vmatprep.subr.mxu0 0.0
  %3039 = vmatpush1.msra.mxu0 0.0
  %3040 = vmatprep.subr.mxu0 0.0
  %3041 = vmatpush1.msra.mxu0 0.0
  %3042 = vmatprep.subr.mxu0 0.0
  %3043 = vmatpush1.msra.mxu0 0.0
  %3044 = vmatprep.subr.mxu0 0.0
  %3045 = vmatpush1.msra.mxu0 0.0
  %3046 = vmatprep.subr.mxu0 0.0
  %3047 = vmatpush1.msra.mxu0 0.0
  %3048 = vmatprep.subr.mxu0 0.0
  %3049 = vmatpush1.msra.mxu0 0.0
  %3050 = vmatprep.subr.mxu0 0.0
  %3051 = vmatpush1.msra.mxu0 0.0
  %3052 = vmatprep.subr.mxu0 0.0
  %3053 = vmatpush1.msra.mxu0 0.0
  %3054 = vmatprep.subr.mxu0 0.0
  %3055 = vmatpush1.msra.mxu0 0.0
  %3056 = vmatprep.subr.mxu0 0.0
  %3057 = vmatpush1.msra.mxu0 0.0
  %3058 = vmatprep.subr.mxu0 0.0
  %3059 = vmatpush1.msra.mxu0 0.0
  %3060 = vmatprep.subr.mxu0 0.0
  %3061 = vmatpush1.msra.mxu0 0.0
  %3062 = vmatprep.subr.mxu0 0.0
  %3063 = vmatpush1.msra.mxu0 0.0
  %3064 = vmatprep.subr.mxu0 0.0
  %3065 = vmatpush1.msra.mxu0 0.0
  %3066 = vmatprep.mubr.f32.mxu0 0.0
  %3067 = vmatmul.mubr.f32.gmra.mrb[0].mxu0 %v2927
  %v3068 = vpop.f32.mrb[0].mxu0
  %v3069 = vadd.f32 0.0, %v3068
  %v3070 = vpop.f32.mrb[0].mxu0
  %3071 = vdwg.mxu0
  %v3072 = vadd.f32 %v2928, %v2998
  %v3073 = vxor.u32 %v3072, 2147483648
  %v3074 = vmul.f32 %v3073, 1.442695
  %v3075 = vpow.pop %v3074
  %v3076 = vadd.f32 %v3075, 1.0
  %v3077 = vrcp.pop %v3076
  %v3078 = vmul.f32 1.0, %v3077
  %v3079 = vadd.f32 %v2929, %v3000
  %v3080 = vxor.u32 %v3079, 2147483648
  %v3081 = vmul.f32 %v3080, 1.442695
  %v3082 = vpow.pop %v3081
  %v3083 = vadd.f32 %v3082, 1.0
  %v3084 = vrcp.pop %v3083
  %v3085 = vmul.f32 1.0, %v3084
  %v3086 = vadd.f32 %v3069, %v2101
  %v3087 = vmul.f32 %v3078, %v3086
  %v3088 = vadd.f32 %v2930, %v3087
  %v3089 = vtanh.pop %v3088
  %v3090 = vsub.f32 %v2927, %v3089
  %v3091 = vmul.f32 %v3085, %v3090
  %v3092 = vadd.f32 %v3089, %v3091
  %v3093 = vld [vmem:[%s1397] sm:$0xff]
  %v3094 = vld [vmem:[%s1397 + $0x8] sm:$0xff]
  %v3095 = vld [vmem:[%s1397 + $0x10] sm:$0xff]
  %3096 = vmatprep.subr.mxu0 %v2049
  %3097 = vmatpush1.msra.mxu0 %v2048
  %3098 = vmatprep.subr.mxu0 %v2052
  %3099 = vmatpush1.msra.mxu0 %v2051
  %3100 = vmatprep.subr.mxu0 %v2055
  %3101 = vmatpush1.msra.mxu0 %v2054
  %3102 = vmatprep.subr.mxu0 %v2058
  %3103 = vmatpush1.msra.mxu0 %v2057
  %3104 = vmatprep.subr.mxu0 %v2061
  %3105 = vmatpush1.msra.mxu0 %v2060
  %3106 = vmatprep.subr.mxu0 %v2064
  %3107 = vmatpush1.msra.mxu0 %v2063
  %3108 = vmatprep.subr.mxu0 %v2067
  %3109 = vmatpush1.msra.mxu0 %v2066
  %3110 = vmatprep.subr.mxu0 %v2070
  %3111 = vmatpush1.msra.mxu0 %v2069
  %3112 = vmatprep.subr.mxu0 %v2073
  %3113 = vmatpush1.msra.mxu0 %v2072
  %3114 = vmatprep.subr.mxu0 %v2076
  %3115 = vmatpush1.msra.mxu0 %v2075
  %3116 = vmatprep.subr.mxu0 %v2079
  %3117 = vmatpush1.msra.mxu0 %v2078
  %3118 = vmatprep.subr.mxu0 %v2082
  %3119 = vmatpush1.msra.mxu0 %v2081
  %3120 = vmatprep.subr.mxu0 %v2085
  %3121 = vmatpush1.msra.mxu0 %v2084
  %3122 = vmatprep.subr.mxu0 %v2088
  %3123 = vmatpush1.msra.mxu0 %v2087
  %3124 = vmatprep.subr.mxu0 %v2091
  %3125 = vmatpush1.msra.mxu0 %v2090
  %3126 = vmatprep.subr.mxu0 %v2094
  %3127 = vmatpush1.msra.mxu0 %v2093
  %3128 = vmatprep.subr.mxu0 0.0
  %3129 = vmatpush1.msra.mxu0 0.0
  %3130 = vmatprep.subr.mxu0 0.0
  %3131 = vmatpush1.msra.mxu0 0.0
  %3132 = vmatprep.subr.mxu0 0.0
  %3133 = vmatpush1.msra.mxu0 0.0
  %3134 = vmatprep.subr.mxu0 0.0
  %3135 = vmatpush1.msra.mxu0 0.0
  %3136 = vmatprep.subr.mxu0 0.0
  %3137 = vmatpush1.msra.mxu0 0.0
  %3138 = vmatprep.subr.mxu0 0.0
  %3139 = vmatpush1.msra.mxu0 0.0
  %3140 = vmatprep.subr.mxu0 0.0
  %3141 = vmatpush1.msra.mxu0 0.0
  %3142 = vmatprep.subr.mxu0 0.0
  %3143 = vmatpush1.msra.mxu0 0.0
  %3144 = vmatprep.subr.mxu0 0.0
  %3145 = vmatpush1.msra.mxu0 0.0
  %3146 = vmatprep.subr.mxu0 0.0
  %3147 = vmatpush1.msra.mxu0 0.0
  %3148 = vmatprep.subr.mxu0 0.0
  %3149 = vmatpush1.msra.mxu0 0.0
  %3150 = vmatprep.subr.mxu0 0.0
  %3151 = vmatpush1.msra.mxu0 0.0
  %3152 = vmatprep.subr.mxu0 0.0
  %3153 = vmatpush1.msra.mxu0 0.0
  %3154 = vmatprep.subr.mxu0 0.0
  %3155 = vmatpush1.msra.mxu0 0.0
  %3156 = vmatprep.subr.mxu0 0.0
  %3157 = vmatpush1.msra.mxu0 0.0
  %3158 = vmatprep.subr.mxu0 0.0
  %3159 = vmatpush1.msra.mxu0 0.0
  %3160 = vmatprep.mubr.f32.mxu0 0.0
  %3161 = vmatmul.mubr.f32.gmra.mrb[0].mxu0 %v3092
  %v3162 = vpop.f32.mrb[0].mxu0
  %v3163 = vadd.f32 0.0, %v3162
  %v3164 = vpop.f32.mrb[0].mxu0
  %v3165 = vadd.f32 0.0, %v3164
  %3166 = vdwg.mxu0
  %3167 = vmatprep.subr.mxu0 0.0
  %3168 = vmatpush1.msra.mxu0 %v2050
  %3169 = vmatprep.subr.mxu0 0.0
  %3170 = vmatpush1.msra.mxu0 %v2053
  %3171 = vmatprep.subr.mxu0 0.0
  %3172 = vmatpush1.msra.mxu0 %v2056
  %3173 = vmatprep.subr.mxu0 0.0
  %3174 = vmatpush1.msra.mxu0 %v2059
  %3175 = vmatprep.subr.mxu0 0.0
  %3176 = vmatpush1.msra.mxu0 %v2062
  %3177 = vmatprep.subr.mxu0 0.0
  %3178 = vmatpush1.msra.mxu0 %v2065
  %3179 = vmatprep.subr.mxu0 0.0
  %3180 = vmatpush1.msra.mxu0 %v2068
  %3181 = vmatprep.subr.mxu0 0.0
  %3182 = vmatpush1.msra.mxu0 %v2071
  %3183 = vmatprep.subr.mxu0 0.0
  %3184 = vmatpush1.msra.mxu0 %v2074
  %3185 = vmatprep.subr.mxu0 0.0
  %3186 = vmatpush1.msra.mxu0 %v2077
  %3187 = vmatprep.subr.mxu0 0.0
  %3188 = vmatpush1.msra.mxu0 %v2080
  %3189 = vmatprep.subr.mxu0 0.0
  %3190 = vmatpush1.msra.mxu0 %v2083
  %3191 = vmatprep.subr.mxu0 0.0
  %3192 = vmatpush1.msra.mxu0 %v2086
  %3193 = vmatprep.subr.mxu0 0.0
  %3194 = vmatpush1.msra.mxu0 %v2089
  %3195 = vmatprep.subr.mxu0 0.0
  %3196 = vmatpush1.msra.mxu0 %v2092
  %3197 = vmatprep.subr.mxu0 0.0
  %3198 = vmatpush1.msra.mxu0 %v2095
  %3199 = vmatprep.subr.mxu0 0.0
  %3200 = vmatpush1.msra.mxu0 0.0
  %3201 = vmatprep.subr.mxu0 0.0
  %3202 = vmatpush1.msra.mxu0 0.0
  %3203 = vmatprep.subr.mxu0 0.0
  %3204 = vmatpush1.msra.mxu0 0.0
  %3205 = vmatprep.subr.mxu0 0.0
  %3206 = vmatpush1.msra.mxu0 0.0
  %3207 = vmatprep.subr.mxu0 0.0
  %3208 = vmatpush1.msra.mxu0 0.0
  %3209 = vmatprep.subr.mxu0 0.0
  %3210 = vmatpush1.msra.mxu0 0.0
  %3211 = vmatprep.subr.mxu0 0.0
  %3212 = vmatpush1.msra.mxu0 0.0
  %3213 = vmatprep.subr.mxu0 0.0
  %3214 = vmatpush1.msra.mxu0 0.0
  %3215 = vmatprep.subr.mxu0 0.0
  %3216 = vmatpush1.msra.mxu0 0.0
  %3217 = vmatprep.subr.mxu0 0.0
  %3218 = vmatpush1.msra.mxu0 0.0
  %3219 = vmatprep.subr.mxu0 0.0
  %3220 = vmatpush1.msra.mxu0 0.0
  %3221 = vmatprep.subr.mxu0 0.0
  %3222 = vmatpush1.msra.mxu0 0.0
  %3223 = vmatprep.subr.mxu0 0.0
  %3224 = vmatpush1.msra.mxu0 0.0
  %3225 = vmatprep.subr.mxu0 0.0
  %3226 = vmatpush1.msra.mxu0 0.0
  %3227 = vmatprep.subr.mxu0 0.0
  %3228 = vmatpush1.msra.mxu0 0.0
  %3229 = vmatprep.subr.mxu0 0.0
  %3230 = vmatpush1.msra.mxu0 0.0
  %3231 = vmatprep.mubr.f32.mxu0 0.0
  %3232 = vmatmul.mubr.f32.gmra.mrb[0].mxu0 %v3092
  %v3233 = vpop.f32.mrb[0].mxu0
  %v3234 = vadd.f32 0.0, %v3233
  %v3235 = vpop.f32.mrb[0].mxu0
  %3236 = vdwg.mxu0
  %v3237 = vadd.f32 %v3093, %v3163
  %v3238 = vxor.u32 %v3237, 2147483648
  %v3239 = vmul.f32 %v3238, 1.442695
  %v3240 = vpow.pop %v3239
  %v3241 = vadd.f32 %v3240, 1.0
  %v3242 = vrcp.pop %v3241
  %v3243 = vmul.f32 1.0, %v3242
  %v3244 = vadd.f32 %v3094, %v3165
  %v3245 = vxor.u32 %v3244, 2147483648
  %v3246 = vmul.f32 %v3245, 1.442695
  %v3247 = vpow.pop %v3246
  %v3248 = vadd.f32 %v3247, 1.0
  %v3249 = vrcp.pop %v3248
  %v3250 = vmul.f32 1.0, %v3249
  %v3251 = vadd.f32 %v3234, %v2101
  %v3252 = vmul.f32 %v3243, %v3251
  %v3253 = vadd.f32 %v3095, %v3252
  %v3254 = vtanh.pop %v3253
  %v3255 = vsub.f32 %v3092, %v3254
  %v3256 = vmul.f32 %v3250, %v3255
  %v3257 = vadd.f32 %v3254, %v3256
  %v3258 = vld [vmem:[%s1565] sm:$0xff]
  %v3259 = vld [vmem:[%s1565 + $0x8] sm:$0xff]
  %v3260 = vld [vmem:[%s1565 + $0x10] sm:$0xff]
  %3261 = vmatprep.subr.mxu0 %v2049
  %3262 = vmatpush1.msra.mxu0 %v2048
  %3263 = vmatprep.subr.mxu0 %v2052
  %3264 = vmatpush1.msra.mxu0 %v2051
  %3265 = vmatprep.subr.mxu0 %v2055
  %3266 = vmatpush1.msra.mxu0 %v2054
  %3267 = vmatprep.subr.mxu0 %v2058
  %3268 = vmatpush1.msra.mxu0 %v2057
  %3269 = vmatprep.subr.mxu0 %v2061
  %3270 = vmatpush1.msra.mxu0 %v2060
  %3271 = vmatprep.subr.mxu0 %v2064
  %3272 = vmatpush1.msra.mxu0 %v2063
  %3273 = vmatprep.subr.mxu0 %v2067
  %3274 = vmatpush1.msra.mxu0 %v2066
  %3275 = vmatprep.subr.mxu0 %v2070
  %3276 = vmatpush1.msra.mxu0 %v2069
  %3277 = vmatprep.subr.mxu0 %v2073
  %3278 = vmatpush1.msra.mxu0 %v2072
  %3279 = vmatprep.subr.mxu0 %v2076
  %3280 = vmatpush1.msra.mxu0 %v2075
  %3281 = vmatprep.subr.mxu0 %v2079
  %3282 = vmatpush1.msra.mxu0 %v2078
  %3283 = vmatprep.subr.mxu0 %v2082
  %3284 = vmatpush1.msra.mxu0 %v2081
  %3285 = vmatprep.subr.mxu0 %v2085
  %3286 = vmatpush1.msra.mxu0 %v2084
  %3287 = vmatprep.subr.mxu0 %v2088
  %3288 = vmatpush1.msra.mxu0 %v2087
  %3289 = vmatprep.subr.mxu0 %v2091
  %3290 = vmatpush1.msra.mxu0 %v2090
  %3291 = vmatprep.subr.mxu0 %v2094
  %3292 = vmatpush1.msra.mxu0 %v2093
  %3293 = vmatprep.subr.mxu0 0.0
  %3294 = vmatpush1.msra.mxu0 0.0
  %3295 = vmatprep.subr.mxu0 0.0
  %3296 = vmatpush1.msra.mxu0 0.0
  %3297 = vmatprep.subr.mxu0 0.0
  %3298 = vmatpush1.msra.mxu0 0.0
  %3299 = vmatprep.subr.mxu0 0.0
  %3300 = vmatpush1.msra.mxu0 0.0
  %3301 = vmatprep.subr.mxu0 0.0
  %3302 = vmatpush1.msra.mxu0 0.0
  %3303 = vmatprep.subr.mxu0 0.0
  %3304 = vmatpush1.msra.mxu0 0.0
  %3305 = vmatprep.subr.mxu0 0.0
  %3306 = vmatpush1.msra.mxu0 0.0
  %3307 = vmatprep.subr.mxu0 0.0
  %3308 = vmatpush1.msra.mxu0 0.0
  %3309 = vmatprep.subr.mxu0 0.0
  %3310 = vmatpush1.msra.mxu0 0.0
  %3311 = vmatprep.subr.mxu0 0.0
  %3312 = vmatpush1.msra.mxu0 0.0
  %3313 = vmatprep.subr.mxu0 0.0
  %3314 = vmatpush1.msra.mxu0 0.0
  %3315 = vmatprep.subr.mxu0 0.0
  %3316 = vmatpush1.msra.mxu0 0.0
  %3317 = vmatprep.subr.mxu0 0.0
  %3318 = vmatpush1.msra.mxu0 0.0
  %3319 = vmatprep.subr.mxu0 0.0
  %3320 = vmatpush1.msra.mxu0 0.0
  %3321 = vmatprep.subr.mxu0 0.0
  %3322 = vmatpush1.msra.mxu0 0.0
  %3323 = vmatprep.subr.mxu0 0.0
  %3324 = vmatpush1.msra.mxu0 0.0
  %3325 = vmatprep.mubr.f32.mxu0 0.0
  %3326 = vmatmul.mubr.f32.gmra.mrb[0].mxu0 %v3257
  %v3327 = vpop.f32.mrb[0].mxu0
  %v3328 = vadd.f32 0.0, %v3327
  %v3329 = vpop.f32.mrb[0].mxu0
  %v3330 = vadd.f32 0.0, %v3329
  %3331 = vdwg.mxu0
  %3332 = vmatprep.subr.mxu0 0.0
  %3333 = vmatpush1.msra.mxu0 %v2050
  %3334 = vmatprep.subr.mxu0 0.0
  %3335 = vmatpush1.msra.mxu0 %v2053
  %3336 = vmatprep.subr.mxu0 0.0
  %3337 = vmatpush1.msra.mxu0 %v2056
  %3338 = vmatprep.subr.mxu0 0.0
  %3339 = vmatpush1.msra.mxu0 %v2059
  %3340 = vmatprep.subr.mxu0 0.0
  %3341 = vmatpush1.msra.mxu0 %v2062
  %3342 = vmatprep.subr.mxu0 0.0
  %3343 = vmatpush1.msra.mxu0 %v2065
  %3344 = vmatprep.subr.mxu0 0.0
  %3345 = vmatpush1.msra.mxu0 %v2068
  %3346 = vmatprep.subr.mxu0 0.0
  %3347 = vmatpush1.msra.mxu0 %v2071
  %3348 = vmatprep.subr.mxu0 0.0
  %3349 = vmatpush1.msra.mxu0 %v2074
  %3350 = vmatprep.subr.mxu0 0.0
  %3351 = vmatpush1.msra.mxu0 %v2077
  %3352 = vmatprep.subr.mxu0 0.0
  %3353 = vmatpush1.msra.mxu0 %v2080
  %3354 = vmatprep.subr.mxu0 0.0
  %3355 = vmatpush1.msra.mxu0 %v2083
  %3356 = vmatprep.subr.mxu0 0.0
  %3357 = vmatpush1.msra.mxu0 %v2086
  %3358 = vmatprep.subr.mxu0 0.0
  %3359 = vmatpush1.msra.mxu0 %v2089
  %3360 = vmatprep.subr.mxu0 0.0
  %3361 = vmatpush1.msra.mxu0 %v2092
  %3362 = vmatprep.subr.mxu0 0.0
  %3363 = vmatpush1.msra.mxu0 %v2095
  %3364 = vmatprep.subr.mxu0 0.0
  %3365 = vmatpush1.msra.mxu0 0.0
  %3366 = vmatprep.subr.mxu0 0.0
  %3367 = vmatpush1.msra.mxu0 0.0
  %3368 = vmatprep.subr.mxu0 0.0
  %3369 = vmatpush1.msra.mxu0 0.0
  %3370 = vmatprep.subr.mxu0 0.0
  %3371 = vmatpush1.msra.mxu0 0.0
  %3372 = vmatprep.subr.mxu0 0.0
  %3373 = vmatpush1.msra.mxu0 0.0
  %3374 = vmatprep.subr.mxu0 0.0
  %3375 = vmatpush1.msra.mxu0 0.0
  %3376 = vmatprep.subr.mxu0 0.0
  %3377 = vmatpush1.msra.mxu0 0.0
  %3378 = vmatprep.subr.mxu0 0.0
  %3379 = vmatpush1.msra.mxu0 0.0
  %3380 = vmatprep.subr.mxu0 0.0
  %3381 = vmatpush1.msra.mxu0 0.0
  %3382 = vmatprep.subr.mxu0 0.0
  %3383 = vmatpush1.msra.mxu0 0.0
  %3384 = vmatprep.subr.mxu0 0.0
  %3385 = vmatpush1.msra.mxu0 0.0
  %3386 = vmatprep.subr.mxu0 0.0
  %3387 = vmatpush1.msra.mxu0 0.0
  %3388 = vmatprep.subr.mxu0 0.0
  %3389 = vmatpush1.msra.mxu0 0.0
  %3390 = vmatprep.subr.mxu0 0.0
  %3391 = vmatpush1.msra.mxu0 0.0
  %3392 = vmatprep.subr.mxu0 0.0
  %3393 = vmatpush1.msra.mxu0 0.0
  %3394 = vmatprep.subr.mxu0 0.0
  %3395 = vmatpush1.msra.mxu0 0.0
  %3396 = vmatprep.mubr.f32.mxu0 0.0
  %3397 = vmatmul.mubr.f32.gmra.mrb[0].mxu0 %v3257
  %v3398 = vpop.f32.mrb[0].mxu0
  %v3399 = vadd.f32 0.0, %v3398
  %v3400 = vpop.f32.mrb[0].mxu0
  %3401 = vdwg.mxu0
  %v3402 = vadd.f32 %v3258, %v3328
  %v3403 = vxor.u32 %v3402, 2147483648
  %v3404 = vmul.f32 %v3403, 1.442695
  %v3405 = vpow.pop %v3404
  %v3406 = vadd.f32 %v3405, 1.0
  %v3407 = vrcp.pop %v3406
  %v3408 = vmul.f32 1.0, %v3407
  %v3409 = vadd.f32 %v3259, %v3330
  %v3410 = vxor.u32 %v3409, 2147483648
  %v3411 = vmul.f32 %v3410, 1.442695
  %v3412 = vpow.pop %v3411
  %v3413 = vadd.f32 %v3412, 1.0
  %v3414 = vrcp.pop %v3413
  %v3415 = vmul.f32 1.0, %v3414
  %v3416 = vadd.f32 %v3399, %v2101
  %v3417 = vmul.f32 %v3408, %v3416
  %v3418 = vadd.f32 %v3260, %v3417
  %v3419 = vtanh.pop %v3418
  %v3420 = vsub.f32 %v3257, %v3419
  %v3421 = vmul.f32 %v3415, %v3420
  %v3422 = vadd.f32 %v3419, %v3421
  %v3423 = vld [vmem:[%s9] sm:$0xff]
  %v3424 = vld [vmem:[%s9 + $0x8] sm:$0xff]
  %v3425 = vld [vmem:[%s9 + $0x10] sm:$0xff]
  %v3426 = vld [vmem:[%s9 + $0x18] sm:$0xff]
  %v3427 = vld [vmem:[%s9 + $0x20] sm:$0xff]
  %v3428 = vld [vmem:[%s9 + $0x28] sm:$0xff]
  %v3429 = vld [vmem:[%s9 + $0x30] sm:$0xff]
  %v3430 = vld [vmem:[%s9 + $0x38] sm:$0xff]
  %v3431 = vld [vmem:[%s9 + $0x40] sm:$0xff]
  %v3432 = vld [vmem:[%s9 + $0x48] sm:$0xff]
  %v3433 = vld [vmem:[%s9 + $0x50] sm:$0xff]
  %v3434 = vld [vmem:[%s9 + $0x58] sm:$0xff]
  %v3435 = vld [vmem:[%s9 + $0x60] sm:$0xff]
  %v3436 = vld [vmem:[%s9 + $0x68] sm:$0xff]
  %v3437 = vld [vmem:[%s9 + $0x70] sm:$0xff]
  %v3438 = vld [vmem:[%s9 + $0x78] sm:$0xff]
  %v3439 = vld [vmem:[%s10] sm:$0x1]
  %v3441 = vlaneseq
  %v3442 = vshrl.u32 %v3441, 7
  %v3443 = vsub.s32 0, %v3442
  %v3444 = vrot.slane %v3439, %v3443
  %3446 = vmatprep.subr.mxu0 0.0
  %3447 = vmatpush1.msra.mxu0 %v3423
  %3448 = vmatprep.subr.mxu0 0.0
  %3449 = vmatpush1.msra.mxu0 %v3424
  %3450 = vmatprep.subr.mxu0 0.0
  %3451 = vmatpush1.msra.mxu0 %v3425
  %3452 = vmatprep.subr.mxu0 0.0
  %3453 = vmatpush1.msra.mxu0 %v3426
  %3454 = vmatprep.subr.mxu0 0.0
  %3455 = vmatpush1.msra.mxu0 %v3427
  %3456 = vmatprep.subr.mxu0 0.0
  %3457 = vmatpush1.msra.mxu0 %v3428
  %3458 = vmatprep.subr.mxu0 0.0
  %3459 = vmatpush1.msra.mxu0 %v3429
  %3460 = vmatprep.subr.mxu0 0.0
  %3461 = vmatpush1.msra.mxu0 %v3430
  %3462 = vmatprep.subr.mxu0 0.0
  %3463 = vmatpush1.msra.mxu0 %v3431
  %3464 = vmatprep.subr.mxu0 0.0
  %3465 = vmatpush1.msra.mxu0 %v3432
  %3466 = vmatprep.subr.mxu0 0.0
  %3467 = vmatpush1.msra.mxu0 %v3433
  %3468 = vmatprep.subr.mxu0 0.0
  %3469 = vmatpush1.msra.mxu0 %v3434
  %3470 = vmatprep.subr.mxu0 0.0
  %3471 = vmatpush1.msra.mxu0 %v3435
  %3472 = vmatprep.subr.mxu0 0.0
  %3473 = vmatpush1.msra.mxu0 %v3436
  %3474 = vmatprep.subr.mxu0 0.0
  %3475 = vmatpush1.msra.mxu0 %v3437
  %3476 = vmatprep.subr.mxu0 0.0
  %3477 = vmatpush1.msra.mxu0 %v3438
  %3478 = vmatprep.subr.mxu0 0.0
  %3479 = vmatpush1.msra.mxu0 0.0
  %3480 = vmatprep.subr.mxu0 0.0
  %3481 = vmatpush1.msra.mxu0 0.0
  %3482 = vmatprep.subr.mxu0 0.0
  %3483 = vmatpush1.msra.mxu0 0.0
  %3484 = vmatprep.subr.mxu0 0.0
  %3485 = vmatpush1.msra.mxu0 0.0
  %3486 = vmatprep.subr.mxu0 0.0
  %3487 = vmatpush1.msra.mxu0 0.0
  %3488 = vmatprep.subr.mxu0 0.0
  %3489 = vmatpush1.msra.mxu0 0.0
  %3490 = vmatprep.subr.mxu0 0.0
  %3491 = vmatpush1.msra.mxu0 0.0
  %3492 = vmatprep.subr.mxu0 0.0
  %3493 = vmatpush1.msra.mxu0 0.0
  %3494 = vmatprep.subr.mxu0 0.0
  %3495 = vmatpush1.msra.mxu0 0.0
  %3496 = vmatprep.subr.mxu0 0.0
  %3497 = vmatpush1.msra.mxu0 0.0
  %3498 = vmatprep.subr.mxu0 0.0
  %3499 = vmatpush1.msra.mxu0 0.0
  %3500 = vmatprep.subr.mxu0 0.0
  %3501 = vmatpush1.msra.mxu0 0.0
  %3502 = vmatprep.subr.mxu0 0.0
  %3503 = vmatpush1.msra.mxu0 0.0
  %3504 = vmatprep.subr.mxu0 0.0
  %3505 = vmatpush1.msra.mxu0 0.0
  %3506 = vmatprep.subr.mxu0 0.0
  %3507 = vmatpush1.msra.mxu0 0.0
  %3508 = vmatprep.subr.mxu0 0.0
  %3509 = vmatpush1.msra.mxu0 0.0
  %3510 = vmatprep.mubr.f32.mxu0 0.0
  %3511 = vmatmul.mubr.f32.gmra.mrb[0].mxu0 %v3422
  %v3512 = vpop.f32.mrb[0].mxu0
  %v3513 = vadd.f32 %v3444, %v3512
  %v3514 = vpop.f32.mrb[0].mxu0
  %3515 = vdwg.mxu0
  %3516 = vst [vmem:[%s11] sm:$0xff] %v3513
  // Predicated region
  $region46: #{gru_model_forward.1} parent=0 // pred_check
    _
  $region47: #{gru_model_forward.1} parent=0 // pred_check_branch
    %3518 = sbr.rel (0) target = $region49
  $region48: #{gru_model_forward.1} parent=0 // pred_region
    _
  $region49: #{gru_model_forward.1} parent=0 // pred_fallthru
    _
  // Predicated region
  $region50: #{gru_model_forward.1} parent=0 // pred_check
    _
  $region51: #{gru_model_forward.1} parent=0 // pred_check_branch
    %3520 = sbr.rel (0) target = $region53
  $region52: #{gru_model_forward.1} parent=0 // pred_region
    _
  $region53: #{gru_model_forward.1} parent=0 // pred_fallthru
    _

</llo_original>
